<compile_context>
chip_gen: v7x
topology: tpu7x:2x2x1
jax: 0.10.0
libtpu: 0.0.40
codegen_flags: <defaults>
</compile_context>

<pallas_src>
import jax
import jax.numpy as jnp
from jax.experimental import pallas as pl
from jax.experimental.pallas import tpu as pltpu


_VMEM_LIMIT = 32 * 1024 * 1024   # raise v5e's 16 MiB scoped default; safe on v6e/v7x

_R1, _R1P = 14 * 14, 200         # conv1 pooled spatial rows (real, padded to mult of 8)
_R2, _R2P = 5 * 5, 32            # conv2 pooled spatial rows
_K1P, _K2P = 128, 256            # padded contraction dims (5*5*3 -> 128, 5*5*6 -> 256)
_BT1, _BT2 = 8, 16               # images per conv grid step (caps; VMEM-safe everywhere)


# ----------------------------- Pallas kernels ------------------------------ #

def _conv_pool_kernel(x_ref, w_ref, b_ref, o_ref):
    """Fused conv-as-matmul + bias + ReLU + 2x2 max-pool for one batch tile.

    x_ref: (4, M, Kp) bf16  im2col patches; axis 0 = pooling-window phase,
                            M = batch_tile * Rp (Rp = pooled H*W padded to mult of 8)
    w_ref: (Kp, 128)  bf16  conv weights (K and Cout zero-padded)
    b_ref: (1, 128)   f32   bias (zero-padded)
    o_ref: (M, 128)   bf16  pooled activations
    """
    w = w_ref[...]
    # max over the four pooling-window phases; bias + ReLU commute with the max.
    acc = jnp.dot(x_ref[0], w, preferred_element_type=jnp.float32)
    for p in range(1, 4):
        acc = jnp.maximum(
            acc, jnp.dot(x_ref[p], w, preferred_element_type=jnp.float32))
    o_ref[...] = jnp.maximum(acc + b_ref[...], 0.0).astype(o_ref.dtype)


def _fc_stack_kernel(x_ref, w1_ref, b1_ref, w2_ref, b2_ref, w3_ref, b3_ref, o_ref):
    """Fused fc1 -> ReLU -> fc2 -> ReLU -> fc3 (all dims padded to TPU-friendly sizes)."""
    h = jnp.dot(x_ref[...], w1_ref[...], preferred_element_type=jnp.float32)
    h = jnp.maximum(h + b1_ref[...], 0.0)
    h = jnp.dot(h.astype(jnp.bfloat16), w2_ref[...], preferred_element_type=jnp.float32)
    h = jnp.maximum(h + b2_ref[...], 0.0)
    h = jnp.dot(h.astype(jnp.bfloat16), w3_ref[...], preferred_element_type=jnp.float32)
    o_ref[...] = h + b3_ref[...]


# ----------------------------- Pallas wrappers ----------------------------- #

def conv_relu_pool(patches, w_mat, bias2d, *, block_rows):
    """patches: (4, Mtot, Kp) bf16 -> pooled activations (Mtot, 128) bf16."""
    _, m_tot, kp = patches.shape
    return pl.pallas_call(
        _conv_pool_kernel,
        out_shape=jax.ShapeDtypeStruct((m_tot, 128), jnp.bfloat16),
        grid=(m_tot // block_rows,),
        in_specs=[
            pl.BlockSpec((4, block_rows, kp), lambda i: (0, i, 0)),
            pl.BlockSpec((kp, 128), lambda i: (0, 0)),
            pl.BlockSpec((1, 128), lambda i: (0, 0)),
        ],
        out_specs=pl.BlockSpec((block_rows, 128), lambda i: (i, 0)),
        compiler_params=pltpu.CompilerParams(
            dimension_semantics=("parallel",),
            vmem_limit_bytes=_VMEM_LIMIT),
    )(patches, w_mat, bias2d)


def fc_stack(x, w1, b1, w2, b2, w3, b3, *, block_rows):
    """x: (Bp, 4096) bf16 (Bp a multiple of block_rows) -> logits (Bp, 128) f32."""
    bp, k1 = x.shape
    return pl.pallas_call(
        _fc_stack_kernel,
        out_shape=jax.ShapeDtypeStruct((bp, 128), jnp.float32),
        grid=(bp // block_rows,),
        in_specs=[
            pl.BlockSpec((block_rows, k1), lambda i: (i, 0)),
            pl.BlockSpec((k1, 128), lambda i: (0, 0)),
            pl.BlockSpec((1, 128), lambda i: (0, 0)),
            pl.BlockSpec((128, 128), lambda i: (0, 0)),
            pl.BlockSpec((1, 128), lambda i: (0, 0)),
            pl.BlockSpec((128, 128), lambda i: (0, 0)),
            pl.BlockSpec((1, 128), lambda i: (0, 0)),
        ],
        out_specs=pl.BlockSpec((block_rows, 128), lambda i: (i, 0)),
        compiler_params=pltpu.CompilerParams(
            dimension_semantics=("parallel",),
            vmem_limit_bytes=_VMEM_LIMIT),
    )(x, w1, b1, w2, b2, w3, b3)


# ------------------------------- XLA glue ----------------------------------- #

def _round_up(n, m):
    return ((n + m - 1) // m) * m


def _im2col_pool_phases(x_nhwc, k):
    """im2col patches for a valid stride-1 conv of size k, grouped by the 2x2
    max-pool window phase of the conv-output pixel they produce.

    Returns (4, B, OHh*OWh, k*k*C); phase p = 2*di + dj holds the patches of
    conv-output pixels (2*pi + di, 2*pj + dj); row order within a phase is (pi, pj),
    feature order is (ki, kj, c) — matching the weight-matrix layout below.
    """
    B, H, W, C = x_nhwc.shape
    OH, OW = H - k + 1, W - k + 1
    OHh, OWh = OH // 2, OW // 2
    phases = []
    for di in (0, 1):
        for dj in (0, 1):
            cols = []
            for ki in range(k):
                for kj in range(k):
                    sl = x_nhwc[:, di + ki: di + ki + 2 * OHh: 2,
                                   dj + kj: dj + kj + 2 * OWh: 2, :]
                    cols.append(sl)                       # (B, OHh, OWh, C)
            p = jnp.concatenate(cols, axis=-1)            # (B, OHh, OWh, k*k*C)
            phases.append(p.reshape(B, OHh * OWh, k * k * C))
    return jnp.stack(phases, axis=0)                      # (4, B, OHh*OWh, k*k*C)


def _pack_patches(p4, b_pad, r_pad, k_pad):
    """(4,B,R,K) -> (4, b_pad*r_pad, k_pad): zero-pad batch/rows/K and flatten (b,r)
    into the matmul M axis so conv blocks are (8,128)-tile aligned for any batch."""
    _, b, r, k = p4.shape
    p4 = jnp.pad(p4, ((0, 0), (0, b_pad - b), (0, r_pad - r), (0, k_pad - k)))
    return p4.reshape(4, b_pad * r_pad, k_pad)


# ------------------------------- parameters --------------------------------- #

def init_params(key):
    """Deterministic PyTorch-style (uniform +-1/sqrt(fan_in)) synthetic params."""
    def uni(k, shape, fan_in):
        bound = 1.0 / float(fan_in) ** 0.5
        return jax.random.uniform(k, shape, jnp.float32, -bound, bound)

    ks = jax.random.split(key, 10)
    return {
        # conv weights in PyTorch (Cout, Cin, KH, KW) layout
        "conv1_w": uni(ks[0], (6, 3, 5, 5), 3 * 5 * 5),
        "conv1_b": uni(ks[1], (6,), 3 * 5 * 5),
        "conv2_w": uni(ks[2], (16, 6, 5, 5), 6 * 5 * 5),
        "conv2_b": uni(ks[3], (16,), 6 * 5 * 5),
        # fc weights stored as (in, out) (== torch weight.T), rows in torch flatten order
        "fc1_w": uni(ks[4], (16 * 5 * 5, 120), 16 * 5 * 5),
        "fc1_b": uni(ks[5], (120,), 16 * 5 * 5),
        "fc2_w": uni(ks[6], (120, 84), 120),
        "fc2_b": uni(ks[7], (84,), 120),
        "fc3_w": uni(ks[8], (84, 10), 84),
        "fc3_b": uni(ks[9], (10,), 84),
    }


def _prep_conv(w_oihw, b, k_pad):
    """(Cout,Cin,KH,KW) -> bf16 (k_pad, 128) weight matrix (rows ordered (ki,kj,c)) + f32 bias."""
    cout, cin, kh, kw = w_oihw.shape
    wm = jnp.transpose(w_oihw, (2, 3, 1, 0)).reshape(kh * kw * cin, cout)
    wm = jnp.pad(wm, ((0, k_pad - wm.shape[0]), (0, 128 - cout)))
    bp = jnp.pad(b, (0, 128 - cout)).reshape(1, 128)
    return wm.astype(jnp.bfloat16), bp.astype(jnp.float32)


def _prep_fc(w_in_out, b):
    kin, mout = w_in_out.shape
    wm = jnp.pad(w_in_out, ((0, 128 - kin), (0, 128 - mout)))
    bp = jnp.pad(b, (0, 128 - mout)).reshape(1, 128)
    return wm.astype(jnp.bfloat16), bp.astype(jnp.float32)


def _prep_fc1(w_in_out, b):
    """Permute fc1 rows from torch's (c,h,w) flatten order to the conv2-kernel output
    order: (pooled-pixel r padded to 32) x (channel padded to 128), zero rows for pads."""
    w = w_in_out.reshape(16, 5, 5, 120)          # (c, h, w, out)
    w = jnp.transpose(w, (1, 2, 0, 3))           # (h, w, c, out)
    w = jnp.pad(w, ((0, 0), (0, 0), (0, 128 - 16), (0, 128 - 120)))
    wm = w.reshape(25 * 128, 128)
    wm = jnp.pad(wm, ((0, (_R2P - 25) * 128), (0, 0)))   # padded pooled rows are zero
    bp = jnp.pad(b, (0, 128 - 120)).reshape(1, 128)
    return wm.astype(jnp.bfloat16), bp.astype(jnp.float32)


def prepare_params(params):
    c1_w, c1_b = _prep_conv(params["conv1_w"], params["conv1_b"], _K1P)
    c2_w, c2_b = _prep_conv(params["conv2_w"], params["conv2_b"], _K2P)
    f1_w, f1_b = _prep_fc1(params["fc1_w"], params["fc1_b"])
    f2_w, f2_b = _prep_fc(params["fc2_w"], params["fc2_b"])
    f3_w, f3_b = _prep_fc(params["fc3_w"], params["fc3_b"])
    return {"c1_w": c1_w, "c1_b": c1_b, "c2_w": c2_w, "c2_b": c2_b,
            "fc1_w": f1_w, "fc1_b": f1_b, "fc2_w": f2_w, "fc2_b": f2_b,
            "fc3_w": f3_w, "fc3_b": f3_b}


# ------------------------------- forward ------------------------------------ #

def convnet_forward(prep, x_nchw):
    """Forward pass matching ConvNet.forward. x_nchw: (B, 3, 32, 32) float32."""
    B = x_nchw.shape[0]

    # ---- conv1 + ReLU + pool1 (one batch-tiled Pallas kernel, bf16 output) ----
    x = jnp.transpose(x_nchw, (0, 2, 3, 1)).astype(jnp.bfloat16)        # NCHW -> NHWC
    bt1 = min(B, _BT1)
    bp1 = _round_up(B, bt1)
    p1 = _pack_patches(_im2col_pool_phases(x, 5), bp1, _R1P, _K1P)      # (4, bp1*200, 128)
    y1 = conv_relu_pool(p1, prep["c1_w"], prep["c1_b"],
                        block_rows=bt1 * _R1P)                          # (bp1*200, 128) bf16
    y1 = y1.reshape(bp1, _R1P, 128)[:B, :_R1, :6].reshape(B, 14, 14, 6)

    # ---- conv2 + ReLU + pool2 ----
    bt2 = min(B, _BT2)
    bp2 = _round_up(B, bt2)
    p2 = _pack_patches(_im2col_pool_phases(y1, 5), bp2, _R2P, _K2P)     # (4, bp2*32, 256)
    y2 = conv_relu_pool(p2, prep["c2_w"], prep["c2_b"],
                        block_rows=bt2 * _R2P)                          # (bp2*32, 128) bf16

    # ---- fc1 -> ReLU -> fc2 -> ReLU -> fc3 (fused; fc1 consumes padded layout) ----
    feats = y2.reshape(bp2, _R2P * 128)[:B]                             # (B, 4096) bf16
    bp_fc = _round_up(B, 8)
    bt_fc = 128 if bp_fc >= 128 else bp_fc
    bp_fc = _round_up(B, bt_fc)
    feats = jnp.pad(feats, ((0, bp_fc - B), (0, 0)))
    logits = fc_stack(feats, prep["fc1_w"], prep["fc1_b"],
                      prep["fc2_w"], prep["fc2_b"],
                      prep["fc3_w"], prep["fc3_b"], block_rows=bt_fc)   # (bp_fc, 128) f32
    return logits[:B, :10]


if __name__ == "__main__":
    root = jax.random.PRNGKey(0)
    k_params, k_x = jax.random.split(root)

    params = init_params(k_params)
    prep = prepare_params(params)

    # CIFAR-10 input: batch=2, 3 channels, 32x32 (spatial size forced by fc1 = 16*5*5)
    x = jax.random.normal(k_x, (2, 3, 32, 32), dtype=jnp.float32)

    fwd = jax.jit(convnet_forward)
    logits = fwd(prep, x)
    jax.block_until_ready(logits)

    assert logits.shape == (2, 10) and logits.dtype == jnp.float32
    print("KERNEL_OK")
</pallas_src>

<mosaic_0001>
module attributes {stable_mosaic.version = 11 : i64} {
  func.func @_conv_pool_kernel(%arg0: i32, %arg1: memref<4x400x128xbf16, #tpu.memory_space<vmem>>, %arg2: memref<128x128xbf16, #tpu.memory_space<vmem>>, %arg3: memref<1x128xf32, #tpu.memory_space<vmem>>, %arg4: memref<400x128xbf16, #tpu.memory_space<vmem>>) attributes {dimension_semantics = [#tpu.dimension_semantics<parallel>], iteration_bounds = array<i64: 1>, scalar_prefetch = 0 : i64, scratch_operands = 0 : i64, tpu.core_type = #tpu.core_type<tc>, window_params = [{transform_indices = @transform_0, window_bounds = array<i64: 4, 400, 128>}, {pipeline_mode = #tpu.pipeline_mode<synchronous>, transform_indices = @transform_1, window_bounds = array<i64: 128, 128>}, {pipeline_mode = #tpu.pipeline_mode<synchronous>, transform_indices = @transform_2, window_bounds = array<i64: 1, 128>}, {transform_indices = @transform_3, window_bounds = array<i64: 400, 128>}]} {
    %c0 = arith.constant 0 : index
    %c0_0 = arith.constant 0 : index
    %0 = vector.load %arg2[%c0, %c0_0] : memref<128x128xbf16, #tpu.memory_space<vmem>>, vector<128x128xbf16>
    %c0_1 = arith.constant 0 : index
    %c0_2 = arith.constant 0 : index
    %c0_3 = arith.constant 0 : index
    %1 = vector.load %arg1[%c0_1, %c0_2, %c0_3] : memref<4x400x128xbf16, #tpu.memory_space<vmem>>, vector<1x400x128xbf16>
    %2 = vector.shape_cast %1 : vector<1x400x128xbf16> to vector<400x128xbf16>
    %cst = arith.constant dense<0.000000e+00> : vector<400x128xf32>
    %3 = tpu.matmul %2, %0, %cst {dimension_numbers = #tpu.dot_dimension_numbers<[1], [0], [0], [1], [0, 0, 1, 1], [], []>} : vector<400x128xbf16>, vector<128x128xbf16>, vector<400x128xf32> -> vector<400x128xf32>
    %c1 = arith.constant 1 : index
    %c0_4 = arith.constant 0 : index
    %c0_5 = arith.constant 0 : index
    %4 = vector.load %arg1[%c1, %c0_4, %c0_5] : memref<4x400x128xbf16, #tpu.memory_space<vmem>>, vector<1x400x128xbf16>
    %5 = vector.shape_cast %4 : vector<1x400x128xbf16> to vector<400x128xbf16>
    %cst_6 = arith.constant dense<0.000000e+00> : vector<400x128xf32>
    %6 = tpu.matmul %5, %0, %cst_6 {dimension_numbers = #tpu.dot_dimension_numbers<[1], [0], [0], [1], [0, 0, 1, 1], [], []>} : vector<400x128xbf16>, vector<128x128xbf16>, vector<400x128xf32> -> vector<400x128xf32>
    %7 = arith.maximumf %3, %6 : vector<400x128xf32>
    %c2 = arith.constant 2 : index
    %c0_7 = arith.constant 0 : index
    %c0_8 = arith.constant 0 : index
    %8 = vector.load %arg1[%c2, %c0_7, %c0_8] : memref<4x400x128xbf16, #tpu.memory_space<vmem>>, vector<1x400x128xbf16>
    %9 = vector.shape_cast %8 : vector<1x400x128xbf16> to vector<400x128xbf16>
    %cst_9 = arith.constant dense<0.000000e+00> : vector<400x128xf32>
    %10 = tpu.matmul %9, %0, %cst_9 {dimension_numbers = #tpu.dot_dimension_numbers<[1], [0], [0], [1], [0, 0, 1, 1], [], []>} : vector<400x128xbf16>, vector<128x128xbf16>, vector<400x128xf32> -> vector<400x128xf32>
    %11 = arith.maximumf %7, %10 : vector<400x128xf32>
    %c3 = arith.constant 3 : index
    %c0_10 = arith.constant 0 : index
    %c0_11 = arith.constant 0 : index
    %12 = vector.load %arg1[%c3, %c0_10, %c0_11] : memref<4x400x128xbf16, #tpu.memory_space<vmem>>, vector<1x400x128xbf16>
    %13 = vector.shape_cast %12 : vector<1x400x128xbf16> to vector<400x128xbf16>
    %cst_12 = arith.constant dense<0.000000e+00> : vector<400x128xf32>
    %14 = tpu.matmul %13, %0, %cst_12 {dimension_numbers = #tpu.dot_dimension_numbers<[1], [0], [0], [1], [0, 0, 1, 1], [], []>} : vector<400x128xbf16>, vector<128x128xbf16>, vector<400x128xf32> -> vector<400x128xf32>
    %15 = arith.maximumf %11, %14 : vector<400x128xf32>
    %c0_13 = arith.constant 0 : index
    %c0_14 = arith.constant 0 : index
    %16 = vector.load %arg3[%c0_13, %c0_14] : memref<1x128xf32, #tpu.memory_space<vmem>>, vector<1x128xf32>
    %17 = vector.broadcast %16 : vector<1x128xf32> to vector<400x128xf32>
    %18 = arith.addf %15, %17 : vector<400x128xf32>
    %cst_15 = arith.constant 0.000000e+00 : f32
    %19 = vector.broadcast %cst_15 : f32 to vector<400x128xf32>
    %20 = arith.maximumf %18, %19 : vector<400x128xf32>
    %21 = arith.truncf %20 : vector<400x128xf32> to vector<400x128xbf16>
    %c0_16 = arith.constant 0 : index
    %c0_17 = arith.constant 0 : index
    %22 = vector.load %arg4[%c0_16, %c0_17] : memref<400x128xbf16, #tpu.memory_space<vmem>>, vector<400x128xbf16>
    tpu.vector_store %arg4[%c0_16, %c0_17], %21 {strides = array<i32>} : memref<400x128xbf16, #tpu.memory_space<vmem>>, vector<400x128xbf16>,
    return
  }
  func.func @transform_0(%arg0: i32) -> (i32, i32, i32) {
    %c0_i32 = arith.constant 0 : i32
    %c0_i32_0 = arith.constant 0 : i32
    %c0_i32_1 = arith.constant 0 : i32
    return %c0_i32, %arg0, %c0_i32_0 : i32, i32, i32
  }
  func.func @transform_1(%arg0: i32) -> (i32, i32) {
    %c0_i32 = arith.constant 0 : i32
    %c0_i32_0 = arith.constant 0 : i32
    %c0_i32_1 = arith.constant 0 : i32
    return %c0_i32, %c0_i32_0 : i32, i32
  }
  func.func @transform_2(%arg0: i32) -> (i32, i32) {
    %c0_i32 = arith.constant 0 : i32
    %c0_i32_0 = arith.constant 0 : i32
    %c0_i32_1 = arith.constant 0 : i32
    return %c0_i32, %c0_i32_0 : i32, i32
  }
  func.func @transform_3(%arg0: i32) -> (i32, i32) {
    %c0_i32 = arith.constant 0 : i32
    %c0_i32_0 = arith.constant 0 : i32
    return %arg0, %c0_i32 : i32, i32
  }
}

module attributes {stable_mosaic.version = 11 : i64} {
  func.func @_conv_pool_kernel(%arg0: i32, %arg1: memref<4x64x256xbf16, #tpu.memory_space<vmem>>, %arg2: memref<256x128xbf16, #tpu.memory_space<vmem>>, %arg3: memref<1x128xf32, #tpu.memory_space<vmem>>, %arg4: memref<64x128xbf16, #tpu.memory_space<vmem>>) attributes {dimension_semantics = [#tpu.dimension_semantics<parallel>], iteration_bounds = array<i64: 1>, scalar_prefetch = 0 : i64, scratch_operands = 0 : i64, tpu.core_type = #tpu.core_type<tc>, window_params = [{transform_indices = @transform_0, window_bounds = array<i64: 4, 64, 256>}, {pipeline_mode = #tpu.pipeline_mode<synchronous>, transform_indices = @transform_1, window_bounds = array<i64: 256, 128>}, {pipeline_mode = #tpu.pipeline_mode<synchronous>, transform_indices = @transform_2, window_bounds = array<i64: 1, 128>}, {transform_indices = @transform_3, window_bounds = array<i64: 64, 128>}]} {
    %c0 = arith.constant 0 : index
    %c0_0 = arith.constant 0 : index
    %0 = vector.load %arg2[%c0, %c0_0] : memref<256x128xbf16, #tpu.memory_space<vmem>>, vector<256x128xbf16>
    %c0_1 = arith.constant 0 : index
    %c0_2 = arith.constant 0 : index
    %c0_3 = arith.constant 0 : index
    %1 = vector.load %arg1[%c0_1, %c0_2, %c0_3] : memref<4x64x256xbf16, #tpu.memory_space<vmem>>, vector<1x64x256xbf16>
    %2 = vector.shape_cast %1 : vector<1x64x256xbf16> to vector<64x256xbf16>
    %cst = arith.constant dense<0.000000e+00> : vector<64x128xf32>
    %3 = tpu.matmul %2, %0, %cst {dimension_numbers = #tpu.dot_dimension_numbers<[1], [0], [0], [1], [0, 0, 1, 1], [], []>} : vector<64x256xbf16>, vector<256x128xbf16>, vector<64x128xf32> -> vector<64x128xf32>
    %c1 = arith.constant 1 : index
    %c0_4 = arith.constant 0 : index
    %c0_5 = arith.constant 0 : index
    %4 = vector.load %arg1[%c1, %c0_4, %c0_5] : memref<4x64x256xbf16, #tpu.memory_space<vmem>>, vector<1x64x256xbf16>
    %5 = vector.shape_cast %4 : vector<1x64x256xbf16> to vector<64x256xbf16>
    %cst_6 = arith.constant dense<0.000000e+00> : vector<64x128xf32>
    %6 = tpu.matmul %5, %0, %cst_6 {dimension_numbers = #tpu.dot_dimension_numbers<[1], [0], [0], [1], [0, 0, 1, 1], [], []>} : vector<64x256xbf16>, vector<256x128xbf16>, vector<64x128xf32> -> vector<64x128xf32>
    %7 = arith.maximumf %3, %6 : vector<64x128xf32>
    %c2 = arith.constant 2 : index
    %c0_7 = arith.constant 0 : index
    %c0_8 = arith.constant 0 : index
    %8 = vector.load %arg1[%c2, %c0_7, %c0_8] : memref<4x64x256xbf16, #tpu.memory_space<vmem>>, vector<1x64x256xbf16>
    %9 = vector.shape_cast %8 : vector<1x64x256xbf16> to vector<64x256xbf16>
    %cst_9 = arith.constant dense<0.000000e+00> : vector<64x128xf32>
    %10 = tpu.matmul %9, %0, %cst_9 {dimension_numbers = #tpu.dot_dimension_numbers<[1], [0], [0], [1], [0, 0, 1, 1], [], []>} : vector<64x256xbf16>, vector<256x128xbf16>, vector<64x128xf32> -> vector<64x128xf32>
    %11 = arith.maximumf %7, %10 : vector<64x128xf32>
    %c3 = arith.constant 3 : index
    %c0_10 = arith.constant 0 : index
    %c0_11 = arith.constant 0 : index
    %12 = vector.load %arg1[%c3, %c0_10, %c0_11] : memref<4x64x256xbf16, #tpu.memory_space<vmem>>, vector<1x64x256xbf16>
    %13 = vector.shape_cast %12 : vector<1x64x256xbf16> to vector<64x256xbf16>
    %cst_12 = arith.constant dense<0.000000e+00> : vector<64x128xf32>
    %14 = tpu.matmul %13, %0, %cst_12 {dimension_numbers = #tpu.dot_dimension_numbers<[1], [0], [0], [1], [0, 0, 1, 1], [], []>} : vector<64x256xbf16>, vector<256x128xbf16>, vector<64x128xf32> -> vector<64x128xf32>
    %15 = arith.maximumf %11, %14 : vector<64x128xf32>
    %c0_13 = arith.constant 0 : index
    %c0_14 = arith.constant 0 : index
    %16 = vector.load %arg3[%c0_13, %c0_14] : memref<1x128xf32, #tpu.memory_space<vmem>>, vector<1x128xf32>
    %17 = vector.broadcast %16 : vector<1x128xf32> to vector<64x128xf32>
    %18 = arith.addf %15, %17 : vector<64x128xf32>
    %cst_15 = arith.constant 0.000000e+00 : f32
    %19 = vector.broadcast %cst_15 : f32 to vector<64x128xf32>
    %20 = arith.maximumf %18, %19 : vector<64x128xf32>
    %21 = arith.truncf %20 : vector<64x128xf32> to vector<64x128xbf16>
    %c0_16 = arith.constant 0 : index
    %c0_17 = arith.constant 0 : index
    %22 = vector.load %arg4[%c0_16, %c0_17] : memref<64x128xbf16, #tpu.memory_space<vmem>>, vector<64x128xbf16>
    tpu.vector_store %arg4[%c0_16, %c0_17], %21 {strides = array<i32>} : memref<64x128xbf16, #tpu.memory_space<vmem>>, vector<64x128xbf16>,
    return
  }
  func.func @transform_0(%arg0: i32) -> (i32, i32, i32) {
    %c0_i32 = arith.constant 0 : i32
    %c0_i32_0 = arith.constant 0 : i32
    %c0_i32_1 = arith.constant 0 : i32
    return %c0_i32, %arg0, %c0_i32_0 : i32, i32, i32
  }
  func.func @transform_1(%arg0: i32) -> (i32, i32) {
    %c0_i32 = arith.constant 0 : i32
    %c0_i32_0 = arith.constant 0 : i32
    %c0_i32_1 = arith.constant 0 : i32
    return %c0_i32, %c0_i32_0 : i32, i32
  }
  func.func @transform_2(%arg0: i32) -> (i32, i32) {
    %c0_i32 = arith.constant 0 : i32
    %c0_i32_0 = arith.constant 0 : i32
    %c0_i32_1 = arith.constant 0 : i32
    return %c0_i32, %c0_i32_0 : i32, i32
  }
  func.func @transform_3(%arg0: i32) -> (i32, i32) {
    %c0_i32 = arith.constant 0 : i32
    %c0_i32_0 = arith.constant 0 : i32
    return %arg0, %c0_i32 : i32, i32
  }
}

module attributes {stable_mosaic.version = 11 : i64} {
  func.func @_fc_stack_kernel(%arg0: i32, %arg1: memref<8x4096xbf16, #tpu.memory_space<vmem>>, %arg2: memref<4096x128xbf16, #tpu.memory_space<vmem>>, %arg3: memref<1x128xf32, #tpu.memory_space<vmem>>, %arg4: memref<128x128xbf16, #tpu.memory_space<vmem>>, %arg5: memref<1x128xf32, #tpu.memory_space<vmem>>, %arg6: memref<128x128xbf16, #tpu.memory_space<vmem>>, %arg7: memref<1x128xf32, #tpu.memory_space<vmem>>, %arg8: memref<8x128xf32, #tpu.memory_space<vmem>>) attributes {dimension_semantics = [#tpu.dimension_semantics<parallel>], iteration_bounds = array<i64: 1>, scalar_prefetch = 0 : i64, scratch_operands = 0 : i64, tpu.core_type = #tpu.core_type<tc>, window_params = [{transform_indices = @transform_0, window_bounds = array<i64: 8, 4096>}, {pipeline_mode = #tpu.pipeline_mode<synchronous>, transform_indices = @transform_1, window_bounds = array<i64: 4096, 128>}, {pipeline_mode = #tpu.pipeline_mode<synchronous>, transform_indices = @transform_2, window_bounds = array<i64: 1, 128>}, {pipeline_mode = #tpu.pipeline_mode<synchronous>, transform_indices = @transform_3, window_bounds = array<i64: 128, 128>}, {pipeline_mode = #tpu.pipeline_mode<synchronous>, transform_indices = @transform_4, window_bounds = array<i64: 1, 128>}, {pipeline_mode = #tpu.pipeline_mode<synchronous>, transform_indices = @transform_5, window_bounds = array<i64: 128, 128>}, {pipeline_mode = #tpu.pipeline_mode<synchronous>, transform_indices = @transform_6, window_bounds = array<i64: 1, 128>}, {transform_indices = @transform_7, window_bounds = array<i64: 8, 128>}]} {
    %c0 = arith.constant 0 : index
    %c0_0 = arith.constant 0 : index
    %0 = vector.load %arg1[%c0, %c0_0] : memref<8x4096xbf16, #tpu.memory_space<vmem>>, vector<8x4096xbf16>
    %c0_1 = arith.constant 0 : index
    %c0_2 = arith.constant 0 : index
    %1 = vector.load %arg2[%c0_1, %c0_2] : memref<4096x128xbf16, #tpu.memory_space<vmem>>, vector<4096x128xbf16>
    %cst = arith.constant dense<0.000000e+00> : vector<8x128xf32>
    %2 = tpu.matmul %0, %1, %cst {dimension_numbers = #tpu.dot_dimension_numbers<[1], [0], [0], [1], [0, 0, 1, 1], [], []>} : vector<8x4096xbf16>, vector<4096x128xbf16>, vector<8x128xf32> -> vector<8x128xf32>
    %c0_3 = arith.constant 0 : index
    %c0_4 = arith.constant 0 : index
    %3 = vector.load %arg3[%c0_3, %c0_4] : memref<1x128xf32, #tpu.memory_space<vmem>>, vector<1x128xf32>
    %4 = vector.broadcast %3 : vector<1x128xf32> to vector<8x128xf32>
    %5 = arith.addf %2, %4 : vector<8x128xf32>
    %cst_5 = arith.constant 0.000000e+00 : f32
    %6 = vector.broadcast %cst_5 : f32 to vector<8x128xf32>
    %7 = arith.maximumf %5, %6 : vector<8x128xf32>
    %8 = arith.truncf %7 : vector<8x128xf32> to vector<8x128xbf16>
    %c0_6 = arith.constant 0 : index
    %c0_7 = arith.constant 0 : index
    %9 = vector.load %arg4[%c0_6, %c0_7] : memref<128x128xbf16, #tpu.memory_space<vmem>>, vector<128x128xbf16>
    %cst_8 = arith.constant dense<0.000000e+00> : vector<8x128xf32>
    %10 = tpu.matmul %8, %9, %cst_8 {dimension_numbers = #tpu.dot_dimension_numbers<[1], [0], [0], [1], [0, 0, 1, 1], [], []>} : vector<8x128xbf16>, vector<128x128xbf16>, vector<8x128xf32> -> vector<8x128xf32>
    %c0_9 = arith.constant 0 : index
    %c0_10 = arith.constant 0 : index
    %11 = vector.load %arg5[%c0_9, %c0_10] : memref<1x128xf32, #tpu.memory_space<vmem>>, vector<1x128xf32>
    %12 = vector.broadcast %11 : vector<1x128xf32> to vector<8x128xf32>
    %13 = arith.addf %10, %12 : vector<8x128xf32>
    %cst_11 = arith.constant 0.000000e+00 : f32
    %14 = vector.broadcast %cst_11 : f32 to vector<8x128xf32>
    %15 = arith.maximumf %13, %14 : vector<8x128xf32>
    %16 = arith.truncf %15 : vector<8x128xf32> to vector<8x128xbf16>
    %c0_12 = arith.constant 0 : index
    %c0_13 = arith.constant 0 : index
    %17 = vector.load %arg6[%c0_12, %c0_13] : memref<128x128xbf16, #tpu.memory_space<vmem>>, vector<128x128xbf16>
    %cst_14 = arith.constant dense<0.000000e+00> : vector<8x128xf32>
    %18 = tpu.matmul %16, %17, %cst_14 {dimension_numbers = #tpu.dot_dimension_numbers<[1], [0], [0], [1], [0, 0, 1, 1], [], []>} : vector<8x128xbf16>, vector<128x128xbf16>, vector<8x128xf32> -> vector<8x128xf32>
    %c0_15 = arith.constant 0 : index
    %c0_16 = arith.constant 0 : index
    %19 = vector.load %arg7[%c0_15, %c0_16] : memref<1x128xf32, #tpu.memory_space<vmem>>, vector<1x128xf32>
    %20 = vector.broadcast %19 : vector<1x128xf32> to vector<8x128xf32>
    %21 = arith.addf %18, %20 : vector<8x128xf32>
    %c0_17 = arith.constant 0 : index
    %c0_18 = arith.constant 0 : index
    %22 = vector.load %arg8[%c0_17, %c0_18] : memref<8x128xf32, #tpu.memory_space<vmem>>, vector<8x128xf32>
    tpu.vector_store %arg8[%c0_17, %c0_18], %21 {strides = array<i32>} : memref<8x128xf32, #tpu.memory_space<vmem>>, vector<8x128xf32>,
    return
  }
  func.func @transform_0(%arg0: i32) -> (i32, i32) {
    %c0_i32 = arith.constant 0 : i32
    %c0_i32_0 = arith.constant 0 : i32
    return %arg0, %c0_i32 : i32, i32
  }
  func.func @transform_1(%arg0: i32) -> (i32, i32) {
    %c0_i32 = arith.constant 0 : i32
    %c0_i32_0 = arith.constant 0 : i32
    %c0_i32_1 = arith.constant 0 : i32
    return %c0_i32, %c0_i32_0 : i32, i32
  }
  func.func @transform_2(%arg0: i32) -> (i32, i32) {
    %c0_i32 = arith.constant 0 : i32
    %c0_i32_0 = arith.constant 0 : i32
    %c0_i32_1 = arith.constant 0 : i32
    return %c0_i32, %c0_i32_0 : i32, i32
  }
  func.func @transform_3(%arg0: i32) -> (i32, i32) {
    %c0_i32 = arith.constant 0 : i32
    %c0_i32_0 = arith.constant 0 : i32
    %c0_i32_1 = arith.constant 0 : i32
    return %c0_i32, %c0_i32_0 : i32, i32
  }
  func.func @transform_4(%arg0: i32) -> (i32, i32) {
    %c0_i32 = arith.constant 0 : i32
    %c0_i32_0 = arith.constant 0 : i32
    %c0_i32_1 = arith.constant 0 : i32
    return %c0_i32, %c0_i32_0 : i32, i32
  }
  func.func @transform_5(%arg0: i32) -> (i32, i32) {
    %c0_i32 = arith.constant 0 : i32
    %c0_i32_0 = arith.constant 0 : i32
    %c0_i32_1 = arith.constant 0 : i32
    return %c0_i32, %c0_i32_0 : i32, i32
  }
  func.func @transform_6(%arg0: i32) -> (i32, i32) {
    %c0_i32 = arith.constant 0 : i32
    %c0_i32_0 = arith.constant 0 : i32
    %c0_i32_1 = arith.constant 0 : i32
    return %c0_i32, %c0_i32_0 : i32, i32
  }
  func.func @transform_7(%arg0: i32) -> (i32, i32) {
    %c0_i32 = arith.constant 0 : i32
    %c0_i32_0 = arith.constant 0 : i32
    return %arg0, %c0_i32 : i32, i32
  }
}

</mosaic_0001>

<llo_original>
// kernel: convnet_forward.3
$region0: #{convnet_forward.3}
  #allocation0 [shape = 'u32[]', space=smem, size = 0x4, offset = 0x4, fixed_abs, tag = 'smem constant byte address 0x4 - core index']
  #allocation1 [shape = 'u32[144,128]{1,0:T(1,128)}', space=vmem, size = 0x12000, scoped, tag = 'internal scratch']
  %s0 = inlined_call_operand.vmem [shape: bf16[4,400,128], index: 0, kind: input, shape index: {}]
  %s1 = inlined_call_operand.vmem [shape: bf16[128,128], index: 1, kind: input, shape index: {}]
  %s2 = inlined_call_operand.vmem [shape: f32[1,128], index: 2, kind: input, shape index: {}]
  %s3 = inlined_call_operand.vmem [shape: bf16[400,128], index: 3, kind: output, shape index: {}]
  %s4 = sld [smem:[#allocation0]]
  $region22: #{convnet_forward.3} parent=0
    _
  %s6 = ssub.s32 1, %s4
  %s7 = scalar_select 0, %s6, %s4
  // Predicated region
  $region2: #{convnet_forward.3} parent=0 // pred_check
    _
  $region3: #{convnet_forward.3} parent=0 // pred_check_branch
    %9 = sbr.rel (0) target = $region5
  $region4: #{convnet_forward.3} parent=0 // pred_region
    _
  $region5: #{convnet_forward.3} parent=0 // pred_fallthru
    _
  // Predicated region
  $region6: #{convnet_forward.3} parent=0 // pred_check
    _
  $region7: #{convnet_forward.3} parent=0 // pred_check_branch
    %11 = sbr.rel (0) target = $region9
  $region8: #{convnet_forward.3} parent=0 // pred_region
    _
  $region9: #{convnet_forward.3} parent=0 // pred_fallthru
    _
  // Predicated region
  $region10: #{convnet_forward.3} parent=0 // pred_check
    _
  $region11: #{convnet_forward.3} parent=0 // pred_check_branch
    %13 = sbr.rel (0) target = $region13
  $region12: #{convnet_forward.3} parent=0 // pred_region
    _
  $region13: #{convnet_forward.3} parent=0 // pred_fallthru
    _
  %v15 = vld [vmem:[%s1] sm:$0xf]
  %v16 = vld [vmem:[%s1 + $0x4] sm:$0xf]
  %v17 = vld [vmem:[%s1 + $0x8] sm:$0xf]
  %v18 = vld [vmem:[%s1 + $0xc] sm:$0xf]
  %v19 = vld [vmem:[%s1 + $0x10] sm:$0xf]
  %v20 = vld [vmem:[%s1 + $0x14] sm:$0xf]
  %v21 = vld [vmem:[%s1 + $0x18] sm:$0xf]
  %v22 = vld [vmem:[%s1 + $0x1c] sm:$0xf]
  %v23 = vld [vmem:[%s1 + $0x20] sm:$0xf]
  %v24 = vld [vmem:[%s1 + $0x24] sm:$0xf]
  %v25 = vld [vmem:[%s1 + $0x28] sm:$0xf]
  %v26 = vld [vmem:[%s1 + $0x2c] sm:$0xf]
  %v27 = vld [vmem:[%s1 + $0x30] sm:$0xf]
  %v28 = vld [vmem:[%s1 + $0x34] sm:$0xf]
  %v29 = vld [vmem:[%s1 + $0x38] sm:$0xf]
  %v30 = vld [vmem:[%s1 + $0x3c] sm:$0xf]
  %v31 = vld [vmem:[%s0] sm:$0xf]
  %v32 = vld [vmem:[%s0 + $0x4] sm:$0xf]
  %v33 = vld [vmem:[%s0 + $0x8] sm:$0xf]
  %v34 = vld [vmem:[%s0 + $0xc] sm:$0xf]
  %v35 = vld [vmem:[%s0 + $0x10] sm:$0xf]
  %v36 = vld [vmem:[%s0 + $0x14] sm:$0xf]
  %v37 = vld [vmem:[%s0 + $0x18] sm:$0xf]
  %v38 = vld [vmem:[%s0 + $0x1c] sm:$0xf]
  %v39 = vld [vmem:[%s0 + $0x20] sm:$0xf]
  %v40 = vld [vmem:[%s0 + $0x24] sm:$0xf]
  %v41 = vld [vmem:[%s0 + $0x28] sm:$0xf]
  %v42 = vld [vmem:[%s0 + $0x2c] sm:$0xf]
  %v43 = vld [vmem:[%s0 + $0x30] sm:$0xf]
  %v44 = vld [vmem:[%s0 + $0x34] sm:$0xf]
  %v45 = vld [vmem:[%s0 + $0x38] sm:$0xf]
  %v46 = vld [vmem:[%s0 + $0x3c] sm:$0xf]
  %v47 = vld [vmem:[%s0 + $0x40] sm:$0xf]
  %v48 = vld [vmem:[%s0 + $0x44] sm:$0xf]
  %v49 = vld [vmem:[%s0 + $0x48] sm:$0xf]
  %v50 = vld [vmem:[%s0 + $0x4c] sm:$0xf]
  %v51 = vld [vmem:[%s0 + $0x50] sm:$0xf]
  %v52 = vld [vmem:[%s0 + $0x54] sm:$0xf]
  %v53 = vld [vmem:[%s0 + $0x58] sm:$0xf]
  %v54 = vld [vmem:[%s0 + $0x5c] sm:$0xf]
  %v55 = vld [vmem:[%s0 + $0x60] sm:$0xf]
  %v56 = vld [vmem:[%s0 + $0x64] sm:$0xf]
  %v57 = vld [vmem:[%s0 + $0x68] sm:$0xf]
  %v58 = vld [vmem:[%s0 + $0x6c] sm:$0xf]
  %v59 = vld [vmem:[%s0 + $0x70] sm:$0xf]
  %v60 = vld [vmem:[%s0 + $0x74] sm:$0xf]
  %v61 = vld [vmem:[%s0 + $0x78] sm:$0xf]
  %v62 = vld [vmem:[%s0 + $0x7c] sm:$0xf]
  %v63 = vld [vmem:[%s0 + $0x80] sm:$0xf]
  %v64 = vld [vmem:[%s0 + $0x84] sm:$0xf]
  %v65 = vld [vmem:[%s0 + $0x88] sm:$0xf]
  %v66 = vld [vmem:[%s0 + $0x8c] sm:$0xf]
  %v67 = vld [vmem:[%s0 + $0x90] sm:$0xf]
  %v68 = vld [vmem:[%s0 + $0x94] sm:$0xf]
  %v69 = vld [vmem:[%s0 + $0x98] sm:$0xf]
  %v70 = vld [vmem:[%s0 + $0x9c] sm:$0xf]
  %v71 = vld [vmem:[%s0 + $0xa0] sm:$0xf]
  %v72 = vld [vmem:[%s0 + $0xa4] sm:$0xf]
  %v73 = vld [vmem:[%s0 + $0xa8] sm:$0xf]
  %v74 = vld [vmem:[%s0 + $0xac] sm:$0xf]
  %v75 = vld [vmem:[%s0 + $0xb0] sm:$0xf]
  %v76 = vld [vmem:[%s0 + $0xb4] sm:$0xf]
  %v77 = vld [vmem:[%s0 + $0xb8] sm:$0xf]
  %v78 = vld [vmem:[%s0 + $0xbc] sm:$0xf]
  %v79 = vld [vmem:[%s0 + $0xc0] sm:$0xf]
  %v80 = vld [vmem:[%s0 + $0xc4] sm:$0xf]
  %v131 = vunpack.c.l.b16 %v31
  %v132 = vunpack.c.l.b16 %v32
  %v133 = vunpack.c.l.b16 %v33
  %v134 = vunpack.c.l.b16 %v34
  %v135 = vunpack.c.l.b16 %v35
  %v136 = vunpack.c.l.b16 %v36
  %v137 = vunpack.c.l.b16 %v37
  %v138 = vunpack.c.l.b16 %v38
  %v139 = vunpack.c.l.b16 %v39
  %v140 = vunpack.c.l.b16 %v40
  %v141 = vunpack.c.l.b16 %v41
  %v142 = vunpack.c.l.b16 %v42
  %v143 = vunpack.c.l.b16 %v43
  %v144 = vunpack.c.l.b16 %v44
  %v145 = vunpack.c.l.b16 %v45
  %v146 = vunpack.c.l.b16 %v46
  %v147 = vunpack.c.l.b16 %v47
  %v148 = vunpack.c.l.b16 %v48
  %v149 = vunpack.c.l.b16 %v49
  %v150 = vunpack.c.l.b16 %v50
  %v151 = vunpack.c.l.b16 %v51
  %v152 = vunpack.c.l.b16 %v52
  %v153 = vunpack.c.l.b16 %v53
  %v154 = vunpack.c.l.b16 %v54
  %v155 = vunpack.c.l.b16 %v55
  %v156 = vunpack.c.l.b16 %v56
  %v157 = vunpack.c.l.b16 %v57
  %v158 = vunpack.c.l.b16 %v58
  %v159 = vunpack.c.l.b16 %v59
  %v160 = vunpack.c.l.b16 %v60
  %v161 = vunpack.c.l.b16 %v61
  %v162 = vunpack.c.l.b16 %v62
  %v163 = vunpack.c.l.b16 %v63
  %v164 = vunpack.c.l.b16 %v64
  %v165 = vunpack.c.l.b16 %v65
  %v166 = vunpack.c.l.b16 %v66
  %v167 = vunpack.c.l.b16 %v67
  %v168 = vunpack.c.l.b16 %v68
  %v169 = vunpack.c.l.b16 %v69
  %v170 = vunpack.c.l.b16 %v70
  %v171 = vunpack.c.l.b16 %v71
  %v172 = vunpack.c.l.b16 %v72
  %v173 = vunpack.c.l.b16 %v73
  %v174 = vunpack.c.l.b16 %v74
  %v175 = vunpack.c.l.b16 %v75
  %v176 = vunpack.c.l.b16 %v76
  %v177 = vunpack.c.l.b16 %v77
  %v178 = vunpack.c.l.b16 %v78
  %v179 = vunpack.c.l.b16 %v79
  %v180 = vunpack.c.l.b16 %v80
  %v181 = vpack.c.b16 %v132, %v131
  %v182 = vpack.c.b16 %v134, %v133
  %v183 = vpack.c.b16 %v136, %v135
  %v184 = vpack.c.b16 %v138, %v137
  %v185 = vpack.c.b16 %v140, %v139
  %v186 = vpack.c.b16 %v142, %v141
  %v187 = vpack.c.b16 %v144, %v143
  %v188 = vpack.c.b16 %v146, %v145
  %v189 = vpack.c.b16 %v148, %v147
  %v190 = vpack.c.b16 %v150, %v149
  %v191 = vpack.c.b16 %v152, %v151
  %v192 = vpack.c.b16 %v154, %v153
  %v193 = vpack.c.b16 %v156, %v155
  %v194 = vpack.c.b16 %v158, %v157
  %v195 = vpack.c.b16 %v160, %v159
  %v196 = vpack.c.b16 %v162, %v161
  %v197 = vpack.c.b16 %v164, %v163
  %v198 = vpack.c.b16 %v166, %v165
  %v199 = vpack.c.b16 %v168, %v167
  %v200 = vpack.c.b16 %v170, %v169
  %v201 = vpack.c.b16 %v172, %v171
  %v202 = vpack.c.b16 %v174, %v173
  %v203 = vpack.c.b16 %v176, %v175
  %v204 = vpack.c.b16 %v178, %v177
  %v205 = vpack.c.b16 %v180, %v179
  %v247 = vunpack.c.l.b16 %v15
  %v248 = vunpack.c.l.b16 %v16
  %v249 = vunpack.c.l.b16 %v17
  %v250 = vunpack.c.l.b16 %v18
  %v251 = vunpack.c.l.b16 %v19
  %v252 = vunpack.c.l.b16 %v20
  %v253 = vunpack.c.l.b16 %v21
  %v254 = vunpack.c.l.b16 %v22
  %v255 = vunpack.c.l.b16 %v23
  %v256 = vunpack.c.l.b16 %v24
  %v257 = vunpack.c.l.b16 %v25
  %v258 = vunpack.c.l.b16 %v26
  %v259 = vunpack.c.l.b16 %v27
  %v260 = vunpack.c.l.b16 %v28
  %v261 = vunpack.c.l.b16 %v29
  %v262 = vunpack.c.l.b16 %v30
  %v263 = vpack.c.b16 %v248, %v247
  %v264 = vpack.c.b16 %v250, %v249
  %v265 = vpack.c.b16 %v252, %v251
  %v266 = vpack.c.b16 %v254, %v253
  %v267 = vpack.c.b16 %v256, %v255
  %v268 = vpack.c.b16 %v258, %v257
  %v269 = vpack.c.b16 %v260, %v259
  %v270 = vpack.c.b16 %v262, %v261
  %279 = vmatprep.subr.bf16.mxu0 0
  %280 = vmatpush1.bf16.msra.mxu0 %v263
  %281 = vmatprep.subr.bf16.mxu0 0
  %282 = vmatpush1.bf16.msra.mxu0 %v264
  %283 = vmatprep.subr.bf16.mxu0 0
  %284 = vmatpush1.bf16.msra.mxu0 %v265
  %285 = vmatprep.subr.bf16.mxu0 0
  %286 = vmatpush1.bf16.msra.mxu0 %v266
  %287 = vmatprep.subr.bf16.mxu0 0
  %288 = vmatpush1.bf16.msra.mxu0 %v267
  %289 = vmatprep.subr.bf16.mxu0 0
  %290 = vmatpush1.bf16.msra.mxu0 %v268
  %291 = vmatprep.subr.bf16.mxu0 0
  %292 = vmatpush1.bf16.msra.mxu0 %v269
  %293 = vmatprep.subr.bf16.mxu0 0
  %294 = vmatpush1.bf16.msra.mxu0 %v270
  %295 = vmatprep.subr.bf16.mxu0 0
  %296 = vmatpush1.bf16.msra.mxu0 0
  %297 = vmatprep.subr.bf16.mxu0 0
  %298 = vmatpush1.bf16.msra.mxu0 0
  %299 = vmatprep.subr.bf16.mxu0 0
  %300 = vmatpush1.bf16.msra.mxu0 0
  %301 = vmatprep.subr.bf16.mxu0 0
  %302 = vmatpush1.bf16.msra.mxu0 0
  %303 = vmatprep.subr.bf16.mxu0 0
  %304 = vmatpush1.bf16.msra.mxu0 0
  %305 = vmatprep.subr.bf16.mxu0 0
  %306 = vmatpush1.bf16.msra.mxu0 0
  %307 = vmatprep.subr.bf16.mxu0 0
  %308 = vmatpush1.bf16.msra.mxu0 0
  %309 = vmatprep.subr.bf16.mxu0 0
  %310 = vmatpush1.bf16.msra.mxu0 0
  %311 = vmatprep.mubr.bf16.mxu0 0
  %312 = vmatmul.mubr.bf16.gmra.mrb[0].mxu0 %v181
  %v313 = vpop.f32.mrb[0].mxu0
  %v314 = vadd.f32 0.0, %v313
  %v315 = vpop.f32.mrb[0].mxu0
  %v316 = vpop.f32.mrb[0].mxu0
  %v317 = vadd.f32 0.0, %v316
  %v318 = vpop.f32.mrb[0].mxu0
  %319 = vmatprep.mubr.bf16.mxu0 0
  %320 = vmatmul.mubr.bf16.gmra.mrb[0].mxu0 %v182
  %v321 = vpop.f32.mrb[0].mxu0
  %v322 = vadd.f32 0.0, %v321
  %v323 = vpop.f32.mrb[0].mxu0
  %v324 = vpop.f32.mrb[0].mxu0
  %v325 = vadd.f32 0.0, %v324
  %v326 = vpop.f32.mrb[0].mxu0
  %327 = vmatprep.mubr.bf16.mxu0 0
  %328 = vmatmul.mubr.bf16.gmra.mrb[0].mxu0 %v183
  %v329 = vpop.f32.mrb[0].mxu0
  %v330 = vadd.f32 0.0, %v329
  %v331 = vpop.f32.mrb[0].mxu0
  %v332 = vpop.f32.mrb[0].mxu0
  %v333 = vadd.f32 0.0, %v332
  %v334 = vpop.f32.mrb[0].mxu0
  %335 = vmatprep.mubr.bf16.mxu0 0
  %336 = vmatmul.mubr.bf16.gmra.mrb[0].mxu0 %v184
  %v337 = vpop.f32.mrb[0].mxu0
  %v338 = vadd.f32 0.0, %v337
  %v339 = vpop.f32.mrb[0].mxu0
  %v340 = vpop.f32.mrb[0].mxu0
  %v341 = vadd.f32 0.0, %v340
  %v342 = vpop.f32.mrb[0].mxu0
  %343 = vmatprep.mubr.bf16.mxu0 0
  %344 = vmatmul.mubr.bf16.gmra.mrb[0].mxu0 %v185
  %v345 = vpop.f32.mrb[0].mxu0
  %v346 = vadd.f32 0.0, %v345
  %v347 = vpop.f32.mrb[0].mxu0
  %v348 = vpop.f32.mrb[0].mxu0
  %v349 = vadd.f32 0.0, %v348
  %v350 = vpop.f32.mrb[0].mxu0
  %351 = vmatprep.mubr.bf16.mxu0 0
  %352 = vmatmul.mubr.bf16.gmra.mrb[0].mxu0 %v186
  %v353 = vpop.f32.mrb[0].mxu0
  %v354 = vadd.f32 0.0, %v353
  %v355 = vpop.f32.mrb[0].mxu0
  %v356 = vpop.f32.mrb[0].mxu0
  %v357 = vadd.f32 0.0, %v356
  %v358 = vpop.f32.mrb[0].mxu0
  %359 = vmatprep.mubr.bf16.mxu0 0
  %360 = vmatmul.mubr.bf16.gmra.mrb[0].mxu0 %v187
  %v361 = vpop.f32.mrb[0].mxu0
  %v362 = vadd.f32 0.0, %v361
  %v363 = vpop.f32.mrb[0].mxu0
  %v364 = vpop.f32.mrb[0].mxu0
  %v365 = vadd.f32 0.0, %v364
  %v366 = vpop.f32.mrb[0].mxu0
  %367 = vmatprep.mubr.bf16.mxu0 0
  %368 = vmatmul.mubr.bf16.gmra.mrb[0].mxu0 %v188
  %v369 = vpop.f32.mrb[0].mxu0
  %v370 = vadd.f32 0.0, %v369
  %v371 = vpop.f32.mrb[0].mxu0
  %v372 = vpop.f32.mrb[0].mxu0
  %v373 = vadd.f32 0.0, %v372
  %v374 = vpop.f32.mrb[0].mxu0
  %375 = vmatprep.mubr.bf16.mxu0 0
  %376 = vmatmul.mubr.bf16.gmra.mrb[0].mxu0 %v189
  %v377 = vpop.f32.mrb[0].mxu0
  %v378 = vadd.f32 0.0, %v377
  %v379 = vpop.f32.mrb[0].mxu0
  %v380 = vpop.f32.mrb[0].mxu0
  %v381 = vadd.f32 0.0, %v380
  %v382 = vpop.f32.mrb[0].mxu0
  %383 = vmatprep.mubr.bf16.mxu0 0
  %384 = vmatmul.mubr.bf16.gmra.mrb[0].mxu0 %v190
  %v385 = vpop.f32.mrb[0].mxu0
  %v386 = vadd.f32 0.0, %v385
  %v387 = vpop.f32.mrb[0].mxu0
  %v388 = vpop.f32.mrb[0].mxu0
  %v389 = vadd.f32 0.0, %v388
  %v390 = vpop.f32.mrb[0].mxu0
  %391 = vmatprep.mubr.bf16.mxu0 0
  %392 = vmatmul.mubr.bf16.gmra.mrb[0].mxu0 %v191
  %v393 = vpop.f32.mrb[0].mxu0
  %v394 = vadd.f32 0.0, %v393
  %v395 = vpop.f32.mrb[0].mxu0
  %v396 = vpop.f32.mrb[0].mxu0
  %v397 = vadd.f32 0.0, %v396
  %v398 = vpop.f32.mrb[0].mxu0
  %399 = vmatprep.mubr.bf16.mxu0 0
  %400 = vmatmul.mubr.bf16.gmra.mrb[0].mxu0 %v192
  %v401 = vpop.f32.mrb[0].mxu0
  %v402 = vadd.f32 0.0, %v401
  %v403 = vpop.f32.mrb[0].mxu0
  %v404 = vpop.f32.mrb[0].mxu0
  %v405 = vadd.f32 0.0, %v404
  %v406 = vpop.f32.mrb[0].mxu0
  %407 = vmatprep.mubr.bf16.mxu0 0
  %408 = vmatmul.mubr.bf16.gmra.mrb[0].mxu0 %v193
  %v409 = vpop.f32.mrb[0].mxu0
  %v410 = vadd.f32 0.0, %v409
  %v411 = vpop.f32.mrb[0].mxu0
  %v412 = vpop.f32.mrb[0].mxu0
  %v413 = vadd.f32 0.0, %v412
  %v414 = vpop.f32.mrb[0].mxu0
  %415 = vmatprep.mubr.bf16.mxu0 0
  %416 = vmatmul.mubr.bf16.gmra.mrb[0].mxu0 %v194
  %v417 = vpop.f32.mrb[0].mxu0
  %v418 = vadd.f32 0.0, %v417
  %v419 = vpop.f32.mrb[0].mxu0
  %v420 = vpop.f32.mrb[0].mxu0
  %v421 = vadd.f32 0.0, %v420
  %v422 = vpop.f32.mrb[0].mxu0
  %423 = vmatprep.mubr.bf16.mxu0 0
  %424 = vmatmul.mubr.bf16.gmra.mrb[0].mxu0 %v195
  %v425 = vpop.f32.mrb[0].mxu0
  %v426 = vadd.f32 0.0, %v425
  %v427 = vpop.f32.mrb[0].mxu0
  %v428 = vpop.f32.mrb[0].mxu0
  %v429 = vadd.f32 0.0, %v428
  %v430 = vpop.f32.mrb[0].mxu0
  %431 = vmatprep.mubr.bf16.mxu0 0
  %432 = vmatmul.mubr.bf16.gmra.mrb[0].mxu0 %v196
  %v433 = vpop.f32.mrb[0].mxu0
  %v434 = vadd.f32 0.0, %v433
  %v435 = vpop.f32.mrb[0].mxu0
  %v436 = vpop.f32.mrb[0].mxu0
  %v437 = vadd.f32 0.0, %v436
  %v438 = vpop.f32.mrb[0].mxu0
  %439 = vmatprep.mubr.bf16.mxu0 0
  %440 = vmatmul.mubr.bf16.gmra.mrb[0].mxu0 %v197
  %v441 = vpop.f32.mrb[0].mxu0
  %v442 = vadd.f32 0.0, %v441
  %v443 = vpop.f32.mrb[0].mxu0
  %v444 = vpop.f32.mrb[0].mxu0
  %v445 = vadd.f32 0.0, %v444
  %v446 = vpop.f32.mrb[0].mxu0
  %447 = vmatprep.mubr.bf16.mxu0 0
  %448 = vmatmul.mubr.bf16.gmra.mrb[0].mxu0 %v198
  %v449 = vpop.f32.mrb[0].mxu0
  %v450 = vadd.f32 0.0, %v449
  %v451 = vpop.f32.mrb[0].mxu0
  %v452 = vpop.f32.mrb[0].mxu0
  %v453 = vadd.f32 0.0, %v452
  %v454 = vpop.f32.mrb[0].mxu0
  %455 = vmatprep.mubr.bf16.mxu0 0
  %456 = vmatmul.mubr.bf16.gmra.mrb[0].mxu0 %v199
  %v457 = vpop.f32.mrb[0].mxu0
  %v458 = vadd.f32 0.0, %v457
  %v459 = vpop.f32.mrb[0].mxu0
  %v460 = vpop.f32.mrb[0].mxu0
  %v461 = vadd.f32 0.0, %v460
  %v462 = vpop.f32.mrb[0].mxu0
  %463 = vmatprep.mubr.bf16.mxu0 0
  %464 = vmatmul.mubr.bf16.gmra.mrb[0].mxu0 %v200
  %v465 = vpop.f32.mrb[0].mxu0
  %v466 = vadd.f32 0.0, %v465
  %v467 = vpop.f32.mrb[0].mxu0
  %v468 = vpop.f32.mrb[0].mxu0
  %v469 = vadd.f32 0.0, %v468
  %v470 = vpop.f32.mrb[0].mxu0
  %471 = vmatprep.mubr.bf16.mxu0 0
  %472 = vmatmul.mubr.bf16.gmra.mrb[0].mxu0 %v201
  %v473 = vpop.f32.mrb[0].mxu0
  %v474 = vadd.f32 0.0, %v473
  %v475 = vpop.f32.mrb[0].mxu0
  %v476 = vpop.f32.mrb[0].mxu0
  %v477 = vadd.f32 0.0, %v476
  %v478 = vpop.f32.mrb[0].mxu0
  %479 = vmatprep.mubr.bf16.mxu0 0
  %480 = vmatmul.mubr.bf16.gmra.mrb[0].mxu0 %v202
  %v481 = vpop.f32.mrb[0].mxu0
  %v482 = vadd.f32 0.0, %v481
  %v483 = vpop.f32.mrb[0].mxu0
  %v484 = vpop.f32.mrb[0].mxu0
  %v485 = vadd.f32 0.0, %v484
  %v486 = vpop.f32.mrb[0].mxu0
  %487 = vmatprep.mubr.bf16.mxu0 0
  %488 = vmatmul.mubr.bf16.gmra.mrb[0].mxu0 %v203
  %v489 = vpop.f32.mrb[0].mxu0
  %v490 = vadd.f32 0.0, %v489
  %v491 = vpop.f32.mrb[0].mxu0
  %v492 = vpop.f32.mrb[0].mxu0
  %v493 = vadd.f32 0.0, %v492
  %v494 = vpop.f32.mrb[0].mxu0
  %495 = vmatprep.mubr.bf16.mxu0 0
  %496 = vmatmul.mubr.bf16.gmra.mrb[0].mxu0 %v204
  %v497 = vpop.f32.mrb[0].mxu0
  %v498 = vadd.f32 0.0, %v497
  %v499 = vpop.f32.mrb[0].mxu0
  %v500 = vpop.f32.mrb[0].mxu0
  %v501 = vadd.f32 0.0, %v500
  %v502 = vpop.f32.mrb[0].mxu0
  %503 = vmatprep.mubr.bf16.mxu0 0
  %504 = vmatmul.mubr.bf16.gmra.mrb[0].mxu0 %v205
  %v505 = vpop.f32.mrb[0].mxu0
  %v506 = vadd.f32 0.0, %v505
  %v507 = vpop.f32.mrb[0].mxu0
  %v508 = vpop.f32.mrb[0].mxu0
  %v509 = vadd.f32 0.0, %v508
  %v510 = vpop.f32.mrb[0].mxu0
  %511 = vdwg.mxu0
  %s512 = scalar_lea.vmem %s0, 200
  %v513 = vld [vmem:[%s512] sm:$0xf]
  %v514 = vld [vmem:[%s512 + $0x4] sm:$0xf]
  %v515 = vld [vmem:[%s512 + $0x8] sm:$0xf]
  %v516 = vld [vmem:[%s512 + $0xc] sm:$0xf]
  %v517 = vld [vmem:[%s512 + $0x10] sm:$0xf]
  %v518 = vld [vmem:[%s512 + $0x14] sm:$0xf]
  %v519 = vld [vmem:[%s512 + $0x18] sm:$0xf]
  %v520 = vld [vmem:[%s512 + $0x1c] sm:$0xf]
  %v521 = vld [vmem:[%s512 + $0x20] sm:$0xf]
  %v522 = vld [vmem:[%s512 + $0x24] sm:$0xf]
  %v523 = vld [vmem:[%s512 + $0x28] sm:$0xf]
  %v524 = vld [vmem:[%s512 + $0x2c] sm:$0xf]
  %v525 = vld [vmem:[%s512 + $0x30] sm:$0xf]
  %v526 = vld [vmem:[%s512 + $0x34] sm:$0xf]
  %v527 = vld [vmem:[%s512 + $0x38] sm:$0xf]
  %v528 = vld [vmem:[%s512 + $0x3c] sm:$0xf]
  %v529 = vld [vmem:[%s512 + $0x40] sm:$0xf]
  %v530 = vld [vmem:[%s512 + $0x44] sm:$0xf]
  %v531 = vld [vmem:[%s512 + $0x48] sm:$0xf]
  %v532 = vld [vmem:[%s512 + $0x4c] sm:$0xf]
  %v533 = vld [vmem:[%s512 + $0x50] sm:$0xf]
  %v534 = vld [vmem:[%s512 + $0x54] sm:$0xf]
  %v535 = vld [vmem:[%s512 + $0x58] sm:$0xf]
  %v536 = vld [vmem:[%s512 + $0x5c] sm:$0xf]
  %v537 = vld [vmem:[%s512 + $0x60] sm:$0xf]
  %v538 = vld [vmem:[%s512 + $0x64] sm:$0xf]
  %v539 = vld [vmem:[%s512 + $0x68] sm:$0xf]
  %v540 = vld [vmem:[%s512 + $0x6c] sm:$0xf]
  %v541 = vld [vmem:[%s512 + $0x70] sm:$0xf]
  %v542 = vld [vmem:[%s512 + $0x74] sm:$0xf]
  %v543 = vld [vmem:[%s512 + $0x78] sm:$0xf]
  %v544 = vld [vmem:[%s512 + $0x7c] sm:$0xf]
  %v545 = vld [vmem:[%s512 + $0x80] sm:$0xf]
  %v546 = vld [vmem:[%s512 + $0x84] sm:$0xf]
  %v547 = vld [vmem:[%s512 + $0x88] sm:$0xf]
  %v548 = vld [vmem:[%s512 + $0x8c] sm:$0xf]
  %v549 = vld [vmem:[%s512 + $0x90] sm:$0xf]
  %v550 = vld [vmem:[%s512 + $0x94] sm:$0xf]
  %v551 = vld [vmem:[%s512 + $0x98] sm:$0xf]
  %v552 = vld [vmem:[%s512 + $0x9c] sm:$0xf]
  %v553 = vld [vmem:[%s512 + $0xa0] sm:$0xf]
  %v554 = vld [vmem:[%s512 + $0xa4] sm:$0xf]
  %v555 = vld [vmem:[%s512 + $0xa8] sm:$0xf]
  %v556 = vld [vmem:[%s512 + $0xac] sm:$0xf]
  %v557 = vld [vmem:[%s512 + $0xb0] sm:$0xf]
  %v558 = vld [vmem:[%s512 + $0xb4] sm:$0xf]
  %v559 = vld [vmem:[%s512 + $0xb8] sm:$0xf]
  %v560 = vld [vmem:[%s512 + $0xbc] sm:$0xf]
  %v561 = vld [vmem:[%s512 + $0xc0] sm:$0xf]
  %v562 = vld [vmem:[%s512 + $0xc4] sm:$0xf]
  %v613 = vunpack.c.l.b16 %v513
  %v614 = vunpack.c.l.b16 %v514
  %v615 = vunpack.c.l.b16 %v515
  %v616 = vunpack.c.l.b16 %v516
  %v617 = vunpack.c.l.b16 %v517
  %v618 = vunpack.c.l.b16 %v518
  %v619 = vunpack.c.l.b16 %v519
  %v620 = vunpack.c.l.b16 %v520
  %v621 = vunpack.c.l.b16 %v521
  %v622 = vunpack.c.l.b16 %v522
  %v623 = vunpack.c.l.b16 %v523
  %v624 = vunpack.c.l.b16 %v524
  %v625 = vunpack.c.l.b16 %v525
  %v626 = vunpack.c.l.b16 %v526
  %v627 = vunpack.c.l.b16 %v527
  %v628 = vunpack.c.l.b16 %v528
  %v629 = vunpack.c.l.b16 %v529
  %v630 = vunpack.c.l.b16 %v530
  %v631 = vunpack.c.l.b16 %v531
  %v632 = vunpack.c.l.b16 %v532
  %v633 = vunpack.c.l.b16 %v533
  %v634 = vunpack.c.l.b16 %v534
  %v635 = vunpack.c.l.b16 %v535
  %v636 = vunpack.c.l.b16 %v536
  %v637 = vunpack.c.l.b16 %v537
  %v638 = vunpack.c.l.b16 %v538
  %v639 = vunpack.c.l.b16 %v539
  %v640 = vunpack.c.l.b16 %v540
  %v641 = vunpack.c.l.b16 %v541
  %v642 = vunpack.c.l.b16 %v542
  %v643 = vunpack.c.l.b16 %v543
  %v644 = vunpack.c.l.b16 %v544
  %v645 = vunpack.c.l.b16 %v545
  %v646 = vunpack.c.l.b16 %v546
  %v647 = vunpack.c.l.b16 %v547
  %v648 = vunpack.c.l.b16 %v548
  %v649 = vunpack.c.l.b16 %v549
  %v650 = vunpack.c.l.b16 %v550
  %v651 = vunpack.c.l.b16 %v551
  %v652 = vunpack.c.l.b16 %v552
  %v653 = vunpack.c.l.b16 %v553
  %v654 = vunpack.c.l.b16 %v554
  %v655 = vunpack.c.l.b16 %v555
  %v656 = vunpack.c.l.b16 %v556
  %v657 = vunpack.c.l.b16 %v557
  %v658 = vunpack.c.l.b16 %v558
  %v659 = vunpack.c.l.b16 %v559
  %v660 = vunpack.c.l.b16 %v560
  %v661 = vunpack.c.l.b16 %v561
  %v662 = vunpack.c.l.b16 %v562
  %v663 = vpack.c.b16 %v614, %v613
  %v664 = vpack.c.b16 %v616, %v615
  %v665 = vpack.c.b16 %v618, %v617
  %v666 = vpack.c.b16 %v620, %v619
  %v667 = vpack.c.b16 %v622, %v621
  %v668 = vpack.c.b16 %v624, %v623
  %v669 = vpack.c.b16 %v626, %v625
  %v670 = vpack.c.b16 %v628, %v627
  %v671 = vpack.c.b16 %v630, %v629
  %v672 = vpack.c.b16 %v632, %v631
  %v673 = vpack.c.b16 %v634, %v633
  %v674 = vpack.c.b16 %v636, %v635
  %v675 = vpack.c.b16 %v638, %v637
  %v676 = vpack.c.b16 %v640, %v639
  %v677 = vpack.c.b16 %v642, %v641
  %v678 = vpack.c.b16 %v644, %v643
  %v679 = vpack.c.b16 %v646, %v645
  %v680 = vpack.c.b16 %v648, %v647
  %v681 = vpack.c.b16 %v650, %v649
  %v682 = vpack.c.b16 %v652, %v651
  %v683 = vpack.c.b16 %v654, %v653
  %v684 = vpack.c.b16 %v656, %v655
  %v685 = vpack.c.b16 %v658, %v657
  %v686 = vpack.c.b16 %v660, %v659
  %v687 = vpack.c.b16 %v662, %v661
  %713 = vmatprep.subr.bf16.mxu0 0
  %714 = vmatpush1.bf16.msra.mxu0 %v263
  %715 = vmatprep.subr.bf16.mxu0 0
  %716 = vmatpush1.bf16.msra.mxu0 %v264
  %717 = vmatprep.subr.bf16.mxu0 0
  %718 = vmatpush1.bf16.msra.mxu0 %v265
  %719 = vmatprep.subr.bf16.mxu0 0
  %720 = vmatpush1.bf16.msra.mxu0 %v266
  %721 = vmatprep.subr.bf16.mxu0 0
  %722 = vmatpush1.bf16.msra.mxu0 %v267
  %723 = vmatprep.subr.bf16.mxu0 0
  %724 = vmatpush1.bf16.msra.mxu0 %v268
  %725 = vmatprep.subr.bf16.mxu0 0
  %726 = vmatpush1.bf16.msra.mxu0 %v269
  %727 = vmatprep.subr.bf16.mxu0 0
  %728 = vmatpush1.bf16.msra.mxu0 %v270
  %729 = vmatprep.subr.bf16.mxu0 0
  %730 = vmatpush1.bf16.msra.mxu0 0
  %731 = vmatprep.subr.bf16.mxu0 0
  %732 = vmatpush1.bf16.msra.mxu0 0
  %733 = vmatprep.subr.bf16.mxu0 0
  %734 = vmatpush1.bf16.msra.mxu0 0
  %735 = vmatprep.subr.bf16.mxu0 0
  %736 = vmatpush1.bf16.msra.mxu0 0
  %737 = vmatprep.subr.bf16.mxu0 0
  %738 = vmatpush1.bf16.msra.mxu0 0
  %739 = vmatprep.subr.bf16.mxu0 0
  %740 = vmatpush1.bf16.msra.mxu0 0
  %741 = vmatprep.subr.bf16.mxu0 0
  %742 = vmatpush1.bf16.msra.mxu0 0
  %743 = vmatprep.subr.bf16.mxu0 0
  %744 = vmatpush1.bf16.msra.mxu0 0
  %745 = vmatprep.mubr.bf16.mxu0 0
  %746 = vmatmul.mubr.bf16.gmra.mrb[0].mxu0 %v663
  %v747 = vpop.f32.mrb[0].mxu0
  %v748 = vadd.f32 0.0, %v747
  %v749 = vpop.f32.mrb[0].mxu0
  %v750 = vpop.f32.mrb[0].mxu0
  %v751 = vadd.f32 0.0, %v750
  %v752 = vpop.f32.mrb[0].mxu0
  %753 = vmatprep.mubr.bf16.mxu0 0
  %754 = vmatmul.mubr.bf16.gmra.mrb[0].mxu0 %v664
  %v755 = vpop.f32.mrb[0].mxu0
  %v756 = vadd.f32 0.0, %v755
  %v757 = vpop.f32.mrb[0].mxu0
  %v758 = vpop.f32.mrb[0].mxu0
  %v759 = vadd.f32 0.0, %v758
  %v760 = vpop.f32.mrb[0].mxu0
  %761 = vmatprep.mubr.bf16.mxu0 0
  %762 = vmatmul.mubr.bf16.gmra.mrb[0].mxu0 %v665
  %v763 = vpop.f32.mrb[0].mxu0
  %v764 = vadd.f32 0.0, %v763
  %v765 = vpop.f32.mrb[0].mxu0
  %v766 = vpop.f32.mrb[0].mxu0
  %v767 = vadd.f32 0.0, %v766
  %v768 = vpop.f32.mrb[0].mxu0
  %769 = vmatprep.mubr.bf16.mxu0 0
  %770 = vmatmul.mubr.bf16.gmra.mrb[0].mxu0 %v666
  %v771 = vpop.f32.mrb[0].mxu0
  %v772 = vadd.f32 0.0, %v771
  %v773 = vpop.f32.mrb[0].mxu0
  %v774 = vpop.f32.mrb[0].mxu0
  %v775 = vadd.f32 0.0, %v774
  %v776 = vpop.f32.mrb[0].mxu0
  %777 = vmatprep.mubr.bf16.mxu0 0
  %778 = vmatmul.mubr.bf16.gmra.mrb[0].mxu0 %v667
  %v779 = vpop.f32.mrb[0].mxu0
  %v780 = vadd.f32 0.0, %v779
  %v781 = vpop.f32.mrb[0].mxu0
  %v782 = vpop.f32.mrb[0].mxu0
  %v783 = vadd.f32 0.0, %v782
  %v784 = vpop.f32.mrb[0].mxu0
  %785 = vmatprep.mubr.bf16.mxu0 0
  %786 = vmatmul.mubr.bf16.gmra.mrb[0].mxu0 %v668
  %v787 = vpop.f32.mrb[0].mxu0
  %v788 = vadd.f32 0.0, %v787
  %v789 = vpop.f32.mrb[0].mxu0
  %v790 = vpop.f32.mrb[0].mxu0
  %v791 = vadd.f32 0.0, %v790
  %v792 = vpop.f32.mrb[0].mxu0
  %793 = vmatprep.mubr.bf16.mxu0 0
  %794 = vmatmul.mubr.bf16.gmra.mrb[0].mxu0 %v669
  %v795 = vpop.f32.mrb[0].mxu0
  %v796 = vadd.f32 0.0, %v795
  %v797 = vpop.f32.mrb[0].mxu0
  %v798 = vpop.f32.mrb[0].mxu0
  %v799 = vadd.f32 0.0, %v798
  %v800 = vpop.f32.mrb[0].mxu0
  %801 = vmatprep.mubr.bf16.mxu0 0
  %802 = vmatmul.mubr.bf16.gmra.mrb[0].mxu0 %v670
  %v803 = vpop.f32.mrb[0].mxu0
  %v804 = vadd.f32 0.0, %v803
  %v805 = vpop.f32.mrb[0].mxu0
  %v806 = vpop.f32.mrb[0].mxu0
  %v807 = vadd.f32 0.0, %v806
  %v808 = vpop.f32.mrb[0].mxu0
  %809 = vmatprep.mubr.bf16.mxu0 0
  %810 = vmatmul.mubr.bf16.gmra.mrb[0].mxu0 %v671
  %v811 = vpop.f32.mrb[0].mxu0
  %v812 = vadd.f32 0.0, %v811
  %v813 = vpop.f32.mrb[0].mxu0
  %v814 = vpop.f32.mrb[0].mxu0
  %v815 = vadd.f32 0.0, %v814
  %v816 = vpop.f32.mrb[0].mxu0
  %817 = vmatprep.mubr.bf16.mxu0 0
  %818 = vmatmul.mubr.bf16.gmra.mrb[0].mxu0 %v672
  %v819 = vpop.f32.mrb[0].mxu0
  %v820 = vadd.f32 0.0, %v819
  %v821 = vpop.f32.mrb[0].mxu0
  %v822 = vpop.f32.mrb[0].mxu0
  %v823 = vadd.f32 0.0, %v822
  %v824 = vpop.f32.mrb[0].mxu0
  %825 = vmatprep.mubr.bf16.mxu0 0
  %826 = vmatmul.mubr.bf16.gmra.mrb[0].mxu0 %v673
  %v827 = vpop.f32.mrb[0].mxu0
  %v828 = vadd.f32 0.0, %v827
  %v829 = vpop.f32.mrb[0].mxu0
  %v830 = vpop.f32.mrb[0].mxu0
  %v831 = vadd.f32 0.0, %v830
  %v832 = vpop.f32.mrb[0].mxu0
  %833 = vmatprep.mubr.bf16.mxu0 0
  %834 = vmatmul.mubr.bf16.gmra.mrb[0].mxu0 %v674
  %v835 = vpop.f32.mrb[0].mxu0
  %v836 = vadd.f32 0.0, %v835
  %v837 = vpop.f32.mrb[0].mxu0
  %v838 = vpop.f32.mrb[0].mxu0
  %v839 = vadd.f32 0.0, %v838
  %v840 = vpop.f32.mrb[0].mxu0
  %841 = vmatprep.mubr.bf16.mxu0 0
  %842 = vmatmul.mubr.bf16.gmra.mrb[0].mxu0 %v675
  %v843 = vpop.f32.mrb[0].mxu0
  %v844 = vadd.f32 0.0, %v843
  %v845 = vpop.f32.mrb[0].mxu0
  %v846 = vpop.f32.mrb[0].mxu0
  %v847 = vadd.f32 0.0, %v846
  %v848 = vpop.f32.mrb[0].mxu0
  %849 = vmatprep.mubr.bf16.mxu0 0
  %850 = vmatmul.mubr.bf16.gmra.mrb[0].mxu0 %v676
  %v851 = vpop.f32.mrb[0].mxu0
  %v852 = vadd.f32 0.0, %v851
  %v853 = vpop.f32.mrb[0].mxu0
  %v854 = vpop.f32.mrb[0].mxu0
  %v855 = vadd.f32 0.0, %v854
  %v856 = vpop.f32.mrb[0].mxu0
  %857 = vmatprep.mubr.bf16.mxu0 0
  %858 = vmatmul.mubr.bf16.gmra.mrb[0].mxu0 %v677
  %v859 = vpop.f32.mrb[0].mxu0
  %v860 = vadd.f32 0.0, %v859
  %v861 = vpop.f32.mrb[0].mxu0
  %v862 = vpop.f32.mrb[0].mxu0
  %v863 = vadd.f32 0.0, %v862
  %v864 = vpop.f32.mrb[0].mxu0
  %865 = vmatprep.mubr.bf16.mxu0 0
  %866 = vmatmul.mubr.bf16.gmra.mrb[0].mxu0 %v678
  %v867 = vpop.f32.mrb[0].mxu0
  %v868 = vadd.f32 0.0, %v867
  %v869 = vpop.f32.mrb[0].mxu0
  %v870 = vpop.f32.mrb[0].mxu0
  %v871 = vadd.f32 0.0, %v870
  %v872 = vpop.f32.mrb[0].mxu0
  %873 = vmatprep.mubr.bf16.mxu0 0
  %874 = vmatmul.mubr.bf16.gmra.mrb[0].mxu0 %v679
  %v875 = vpop.f32.mrb[0].mxu0
  %v876 = vadd.f32 0.0, %v875
  %v877 = vpop.f32.mrb[0].mxu0
  %v878 = vpop.f32.mrb[0].mxu0
  %v879 = vadd.f32 0.0, %v878
  %v880 = vpop.f32.mrb[0].mxu0
  %881 = vmatprep.mubr.bf16.mxu0 0
  %882 = vmatmul.mubr.bf16.gmra.mrb[0].mxu0 %v680
  %v883 = vpop.f32.mrb[0].mxu0
  %v884 = vadd.f32 0.0, %v883
  %v885 = vpop.f32.mrb[0].mxu0
  %v886 = vpop.f32.mrb[0].mxu0
  %v887 = vadd.f32 0.0, %v886
  %v888 = vpop.f32.mrb[0].mxu0
  %889 = vmatprep.mubr.bf16.mxu0 0
  %890 = vmatmul.mubr.bf16.gmra.mrb[0].mxu0 %v681
  %v891 = vpop.f32.mrb[0].mxu0
  %v892 = vadd.f32 0.0, %v891
  %v893 = vpop.f32.mrb[0].mxu0
  %v894 = vpop.f32.mrb[0].mxu0
  %v895 = vadd.f32 0.0, %v894
  %v896 = vpop.f32.mrb[0].mxu0
  %897 = vmatprep.mubr.bf16.mxu0 0
  %898 = vmatmul.mubr.bf16.gmra.mrb[0].mxu0 %v682
  %v899 = vpop.f32.mrb[0].mxu0
  %v900 = vadd.f32 0.0, %v899
  %v901 = vpop.f32.mrb[0].mxu0
  %v902 = vpop.f32.mrb[0].mxu0
  %v903 = vadd.f32 0.0, %v902
  %v904 = vpop.f32.mrb[0].mxu0
  %905 = vmatprep.mubr.bf16.mxu0 0
  %906 = vmatmul.mubr.bf16.gmra.mrb[0].mxu0 %v683
  %v907 = vpop.f32.mrb[0].mxu0
  %v908 = vadd.f32 0.0, %v907
  %v909 = vpop.f32.mrb[0].mxu0
  %v910 = vpop.f32.mrb[0].mxu0
  %v911 = vadd.f32 0.0, %v910
  %v912 = vpop.f32.mrb[0].mxu0
  %913 = vmatprep.mubr.bf16.mxu0 0
  %914 = vmatmul.mubr.bf16.gmra.mrb[0].mxu0 %v684
  %v915 = vpop.f32.mrb[0].mxu0
  %v916 = vadd.f32 0.0, %v915
  %v917 = vpop.f32.mrb[0].mxu0
  %v918 = vpop.f32.mrb[0].mxu0
  %v919 = vadd.f32 0.0, %v918
  %v920 = vpop.f32.mrb[0].mxu0
  %921 = vmatprep.mubr.bf16.mxu0 0
  %922 = vmatmul.mubr.bf16.gmra.mrb[0].mxu0 %v685
  %v923 = vpop.f32.mrb[0].mxu0
  %v924 = vadd.f32 0.0, %v923
  %v925 = vpop.f32.mrb[0].mxu0
  %v926 = vpop.f32.mrb[0].mxu0
  %v927 = vadd.f32 0.0, %v926
  %v928 = vpop.f32.mrb[0].mxu0
  %929 = vmatprep.mubr.bf16.mxu0 0
  %930 = vmatmul.mubr.bf16.gmra.mrb[0].mxu0 %v686
  %v931 = vpop.f32.mrb[0].mxu0
  %v932 = vadd.f32 0.0, %v931
  %v933 = vpop.f32.mrb[0].mxu0
  %v934 = vpop.f32.mrb[0].mxu0
  %v935 = vadd.f32 0.0, %v934
  %v936 = vpop.f32.mrb[0].mxu0
  %937 = vmatprep.mubr.bf16.mxu0 0
  %938 = vmatmul.mubr.bf16.gmra.mrb[0].mxu0 %v687
  %v939 = vpop.f32.mrb[0].mxu0
  %v940 = vadd.f32 0.0, %v939
  %v941 = vpop.f32.mrb[0].mxu0
  %v942 = vpop.f32.mrb[0].mxu0
  %v943 = vadd.f32 0.0, %v942
  %v944 = vpop.f32.mrb[0].mxu0
  %945 = vdwg.mxu0
  %v946 = vmax.f32 %v314, %v748
  %v947 = vmax.f32 %v317, %v751
  %v948 = vmax.f32 %v322, %v756
  %v949 = vmax.f32 %v325, %v759
  %v950 = vmax.f32 %v330, %v764
  %v951 = vmax.f32 %v333, %v767
  %v952 = vmax.f32 %v338, %v772
  %v953 = vmax.f32 %v341, %v775
  %v954 = vmax.f32 %v346, %v780
  %v955 = vmax.f32 %v349, %v783
  %v956 = vmax.f32 %v354, %v788
  %v957 = vmax.f32 %v357, %v791
  %v958 = vmax.f32 %v362, %v796
  %v959 = vmax.f32 %v365, %v799
  %v960 = vmax.f32 %v370, %v804
  %v961 = vmax.f32 %v373, %v807
  %v962 = vmax.f32 %v378, %v812
  %v963 = vmax.f32 %v381, %v815
  %v964 = vmax.f32 %v386, %v820
  %v965 = vmax.f32 %v389, %v823
  %v966 = vmax.f32 %v394, %v828
  %v967 = vmax.f32 %v397, %v831
  %v968 = vmax.f32 %v402, %v836
  %v969 = vmax.f32 %v405, %v839
  %v970 = vmax.f32 %v410, %v844
  %v971 = vmax.f32 %v413, %v847
  %v972 = vmax.f32 %v418, %v852
  %v973 = vmax.f32 %v421, %v855
  %v974 = vmax.f32 %v426, %v860
  %v975 = vmax.f32 %v429, %v863
  %v976 = vmax.f32 %v434, %v868
  %v977 = vmax.f32 %v437, %v871
  %v978 = vmax.f32 %v442, %v876
  %v979 = vmax.f32 %v445, %v879
  %v980 = vmax.f32 %v450, %v884
  %v981 = vmax.f32 %v453, %v887
  %v982 = vmax.f32 %v458, %v892
  %v983 = vmax.f32 %v461, %v895
  %v984 = vmax.f32 %v466, %v900
  %v985 = vmax.f32 %v469, %v903
  %v986 = vmax.f32 %v474, %v908
  %v987 = vmax.f32 %v477, %v911
  %v988 = vmax.f32 %v482, %v916
  %v989 = vmax.f32 %v485, %v919
  %v990 = vmax.f32 %v490, %v924
  %v991 = vmax.f32 %v493, %v927
  %v992 = vmax.f32 %v498, %v932
  %v993 = vmax.f32 %v501, %v935
  %v994 = vmax.f32 %v506, %v940
  %v995 = vmax.f32 %v509, %v943
  %s996 = scalar_lea.vmem %s0, 400
  %v997 = vld [vmem:[%s996] sm:$0xf]
  %v998 = vld [vmem:[%s996 + $0x4] sm:$0xf]
  %v999 = vld [vmem:[%s996 + $0x8] sm:$0xf]
  %v1000 = vld [vmem:[%s996 + $0xc] sm:$0xf]
  %v1001 = vld [vmem:[%s996 + $0x10] sm:$0xf]
  %v1002 = vld [vmem:[%s996 + $0x14] sm:$0xf]
  %v1003 = vld [vmem:[%s996 + $0x18] sm:$0xf]
  %v1004 = vld [vmem:[%s996 + $0x1c] sm:$0xf]
  %v1005 = vld [vmem:[%s996 + $0x20] sm:$0xf]
  %v1006 = vld [vmem:[%s996 + $0x24] sm:$0xf]
  %v1007 = vld [vmem:[%s996 + $0x28] sm:$0xf]
  %v1008 = vld [vmem:[%s996 + $0x2c] sm:$0xf]
  %v1009 = vld [vmem:[%s996 + $0x30] sm:$0xf]
  %v1010 = vld [vmem:[%s996 + $0x34] sm:$0xf]
  %v1011 = vld [vmem:[%s996 + $0x38] sm:$0xf]
  %v1012 = vld [vmem:[%s996 + $0x3c] sm:$0xf]
  %v1013 = vld [vmem:[%s996 + $0x40] sm:$0xf]
  %v1014 = vld [vmem:[%s996 + $0x44] sm:$0xf]
  %v1015 = vld [vmem:[%s996 + $0x48] sm:$0xf]
  %v1016 = vld [vmem:[%s996 + $0x4c] sm:$0xf]
  %v1017 = vld [vmem:[%s996 + $0x50] sm:$0xf]
  %v1018 = vld [vmem:[%s996 + $0x54] sm:$0xf]
  %v1019 = vld [vmem:[%s996 + $0x58] sm:$0xf]
  %v1020 = vld [vmem:[%s996 + $0x5c] sm:$0xf]
  %v1021 = vld [vmem:[%s996 + $0x60] sm:$0xf]
  %v1022 = vld [vmem:[%s996 + $0x64] sm:$0xf]
  %v1023 = vld [vmem:[%s996 + $0x68] sm:$0xf]
  %v1024 = vld [vmem:[%s996 + $0x6c] sm:$0xf]
  %v1025 = vld [vmem:[%s996 + $0x70] sm:$0xf]
  %v1026 = vld [vmem:[%s996 + $0x74] sm:$0xf]
  %v1027 = vld [vmem:[%s996 + $0x78] sm:$0xf]
  %v1028 = vld [vmem:[%s996 + $0x7c] sm:$0xf]
  %v1029 = vld [vmem:[%s996 + $0x80] sm:$0xf]
  %v1030 = vld [vmem:[%s996 + $0x84] sm:$0xf]
  %v1031 = vld [vmem:[%s996 + $0x88] sm:$0xf]
  %v1032 = vld [vmem:[%s996 + $0x8c] sm:$0xf]
  %v1033 = vld [vmem:[%s996 + $0x90] sm:$0xf]
  %v1034 = vld [vmem:[%s996 + $0x94] sm:$0xf]
  %v1035 = vld [vmem:[%s996 + $0x98] sm:$0xf]
  %v1036 = vld [vmem:[%s996 + $0x9c] sm:$0xf]
  %v1037 = vld [vmem:[%s996 + $0xa0] sm:$0xf]
  %v1038 = vld [vmem:[%s996 + $0xa4] sm:$0xf]
  %v1039 = vld [vmem:[%s996 + $0xa8] sm:$0xf]
  %v1040 = vld [vmem:[%s996 + $0xac] sm:$0xf]
  %v1041 = vld [vmem:[%s996 + $0xb0] sm:$0xf]
  %v1042 = vld [vmem:[%s996 + $0xb4] sm:$0xf]
  %v1043 = vld [vmem:[%s996 + $0xb8] sm:$0xf]
  %v1044 = vld [vmem:[%s996 + $0xbc] sm:$0xf]
  %v1045 = vld [vmem:[%s996 + $0xc0] sm:$0xf]
  %v1046 = vld [vmem:[%s996 + $0xc4] sm:$0xf]
  %v1097 = vunpack.c.l.b16 %v997
  %v1098 = vunpack.c.l.b16 %v998
  %v1099 = vunpack.c.l.b16 %v999
  %v1100 = vunpack.c.l.b16 %v1000
  %v1101 = vunpack.c.l.b16 %v1001
  %v1102 = vunpack.c.l.b16 %v1002
  %v1103 = vunpack.c.l.b16 %v1003
  %v1104 = vunpack.c.l.b16 %v1004
  %v1105 = vunpack.c.l.b16 %v1005
  %v1106 = vunpack.c.l.b16 %v1006
  %v1107 = vunpack.c.l.b16 %v1007
  %v1108 = vunpack.c.l.b16 %v1008
  %v1109 = vunpack.c.l.b16 %v1009
  %v1110 = vunpack.c.l.b16 %v1010
  %v1111 = vunpack.c.l.b16 %v1011
  %v1112 = vunpack.c.l.b16 %v1012
  %v1113 = vunpack.c.l.b16 %v1013
  %v1114 = vunpack.c.l.b16 %v1014
  %v1115 = vunpack.c.l.b16 %v1015
  %v1116 = vunpack.c.l.b16 %v1016
  %v1117 = vunpack.c.l.b16 %v1017
  %v1118 = vunpack.c.l.b16 %v1018
  %v1119 = vunpack.c.l.b16 %v1019
  %v1120 = vunpack.c.l.b16 %v1020
  %v1121 = vunpack.c.l.b16 %v1021
  %v1122 = vunpack.c.l.b16 %v1022
  %v1123 = vunpack.c.l.b16 %v1023
  %v1124 = vunpack.c.l.b16 %v1024
  %v1125 = vunpack.c.l.b16 %v1025
  %v1126 = vunpack.c.l.b16 %v1026
  %v1127 = vunpack.c.l.b16 %v1027
  %v1128 = vunpack.c.l.b16 %v1028
  %v1129 = vunpack.c.l.b16 %v1029
  %v1130 = vunpack.c.l.b16 %v1030
  %v1131 = vunpack.c.l.b16 %v1031
  %v1132 = vunpack.c.l.b16 %v1032
  %v1133 = vunpack.c.l.b16 %v1033
  %v1134 = vunpack.c.l.b16 %v1034
  %v1135 = vunpack.c.l.b16 %v1035
  %v1136 = vunpack.c.l.b16 %v1036
  %v1137 = vunpack.c.l.b16 %v1037
  %v1138 = vunpack.c.l.b16 %v1038
  %v1139 = vunpack.c.l.b16 %v1039
  %v1140 = vunpack.c.l.b16 %v1040
  %v1141 = vunpack.c.l.b16 %v1041
  %v1142 = vunpack.c.l.b16 %v1042
  %v1143 = vunpack.c.l.b16 %v1043
  %v1144 = vunpack.c.l.b16 %v1044
  %v1145 = vunpack.c.l.b16 %v1045
  %v1146 = vunpack.c.l.b16 %v1046
  %v1147 = vpack.c.b16 %v1098, %v1097
  %v1148 = vpack.c.b16 %v1100, %v1099
  %v1149 = vpack.c.b16 %v1102, %v1101
  %v1150 = vpack.c.b16 %v1104, %v1103
  %v1151 = vpack.c.b16 %v1106, %v1105
  %v1152 = vpack.c.b16 %v1108, %v1107
  %v1153 = vpack.c.b16 %v1110, %v1109
  %v1154 = vpack.c.b16 %v1112, %v1111
  %v1155 = vpack.c.b16 %v1114, %v1113
  %v1156 = vpack.c.b16 %v1116, %v1115
  %v1157 = vpack.c.b16 %v1118, %v1117
  %v1158 = vpack.c.b16 %v1120, %v1119
  %v1159 = vpack.c.b16 %v1122, %v1121
  %v1160 = vpack.c.b16 %v1124, %v1123
  %v1161 = vpack.c.b16 %v1126, %v1125
  %v1162 = vpack.c.b16 %v1128, %v1127
  %v1163 = vpack.c.b16 %v1130, %v1129
  %v1164 = vpack.c.b16 %v1132, %v1131
  %v1165 = vpack.c.b16 %v1134, %v1133
  %v1166 = vpack.c.b16 %v1136, %v1135
  %v1167 = vpack.c.b16 %v1138, %v1137
  %v1168 = vpack.c.b16 %v1140, %v1139
  %v1169 = vpack.c.b16 %v1142, %v1141
  %v1170 = vpack.c.b16 %v1144, %v1143
  %v1171 = vpack.c.b16 %v1146, %v1145
  %1197 = vmatprep.subr.bf16.mxu0 0
  %1198 = vmatpush1.bf16.msra.mxu0 %v263
  %1199 = vmatprep.subr.bf16.mxu0 0
  %1200 = vmatpush1.bf16.msra.mxu0 %v264
  %1201 = vmatprep.subr.bf16.mxu0 0
  %1202 = vmatpush1.bf16.msra.mxu0 %v265
  %1203 = vmatprep.subr.bf16.mxu0 0
  %1204 = vmatpush1.bf16.msra.mxu0 %v266
  %1205 = vmatprep.subr.bf16.mxu0 0
  %1206 = vmatpush1.bf16.msra.mxu0 %v267
  %1207 = vmatprep.subr.bf16.mxu0 0
  %1208 = vmatpush1.bf16.msra.mxu0 %v268
  %1209 = vmatprep.subr.bf16.mxu0 0
  %1210 = vmatpush1.bf16.msra.mxu0 %v269
  %1211 = vmatprep.subr.bf16.mxu0 0
  %1212 = vmatpush1.bf16.msra.mxu0 %v270
  %1213 = vmatprep.subr.bf16.mxu0 0
  %1214 = vmatpush1.bf16.msra.mxu0 0
  %1215 = vmatprep.subr.bf16.mxu0 0
  %1216 = vmatpush1.bf16.msra.mxu0 0
  %1217 = vmatprep.subr.bf16.mxu0 0
  %1218 = vmatpush1.bf16.msra.mxu0 0
  %1219 = vmatprep.subr.bf16.mxu0 0
  %1220 = vmatpush1.bf16.msra.mxu0 0
  %1221 = vmatprep.subr.bf16.mxu0 0
  %1222 = vmatpush1.bf16.msra.mxu0 0
  %1223 = vmatprep.subr.bf16.mxu0 0
  %1224 = vmatpush1.bf16.msra.mxu0 0
  %1225 = vmatprep.subr.bf16.mxu0 0
  %1226 = vmatpush1.bf16.msra.mxu0 0
  %1227 = vmatprep.subr.bf16.mxu0 0
  %1228 = vmatpush1.bf16.msra.mxu0 0
  %1229 = vmatprep.mubr.bf16.mxu0 0
  %1230 = vmatmul.mubr.bf16.gmra.mrb[0].mxu0 %v1147
  %v1231 = vpop.f32.mrb[0].mxu0
  %v1232 = vadd.f32 0.0, %v1231
  %v1233 = vpop.f32.mrb[0].mxu0
  %v1234 = vpop.f32.mrb[0].mxu0
  %v1235 = vadd.f32 0.0, %v1234
  %v1236 = vpop.f32.mrb[0].mxu0
  %1237 = vmatprep.mubr.bf16.mxu0 0
  %1238 = vmatmul.mubr.bf16.gmra.mrb[0].mxu0 %v1148
  %v1239 = vpop.f32.mrb[0].mxu0
  %v1240 = vadd.f32 0.0, %v1239
  %v1241 = vpop.f32.mrb[0].mxu0
  %v1242 = vpop.f32.mrb[0].mxu0
  %v1243 = vadd.f32 0.0, %v1242
  %v1244 = vpop.f32.mrb[0].mxu0
  %1245 = vmatprep.mubr.bf16.mxu0 0
  %1246 = vmatmul.mubr.bf16.gmra.mrb[0].mxu0 %v1149
  %v1247 = vpop.f32.mrb[0].mxu0
  %v1248 = vadd.f32 0.0, %v1247
  %v1249 = vpop.f32.mrb[0].mxu0
  %v1250 = vpop.f32.mrb[0].mxu0
  %v1251 = vadd.f32 0.0, %v1250
  %v1252 = vpop.f32.mrb[0].mxu0
  %1253 = vmatprep.mubr.bf16.mxu0 0
  %1254 = vmatmul.mubr.bf16.gmra.mrb[0].mxu0 %v1150
  %v1255 = vpop.f32.mrb[0].mxu0
  %v1256 = vadd.f32 0.0, %v1255
  %v1257 = vpop.f32.mrb[0].mxu0
  %v1258 = vpop.f32.mrb[0].mxu0
  %v1259 = vadd.f32 0.0, %v1258
  %v1260 = vpop.f32.mrb[0].mxu0
  %1261 = vmatprep.mubr.bf16.mxu0 0
  %1262 = vmatmul.mubr.bf16.gmra.mrb[0].mxu0 %v1151
  %v1263 = vpop.f32.mrb[0].mxu0
  %v1264 = vadd.f32 0.0, %v1263
  %v1265 = vpop.f32.mrb[0].mxu0
  %v1266 = vpop.f32.mrb[0].mxu0
  %v1267 = vadd.f32 0.0, %v1266
  %v1268 = vpop.f32.mrb[0].mxu0
  %1269 = vmatprep.mubr.bf16.mxu0 0
  %1270 = vmatmul.mubr.bf16.gmra.mrb[0].mxu0 %v1152
  %v1271 = vpop.f32.mrb[0].mxu0
  %v1272 = vadd.f32 0.0, %v1271
  %v1273 = vpop.f32.mrb[0].mxu0
  %v1274 = vpop.f32.mrb[0].mxu0
  %v1275 = vadd.f32 0.0, %v1274
  %v1276 = vpop.f32.mrb[0].mxu0
  %1277 = vmatprep.mubr.bf16.mxu0 0
  %1278 = vmatmul.mubr.bf16.gmra.mrb[0].mxu0 %v1153
  %v1279 = vpop.f32.mrb[0].mxu0
  %v1280 = vadd.f32 0.0, %v1279
  %v1281 = vpop.f32.mrb[0].mxu0
  %v1282 = vpop.f32.mrb[0].mxu0
  %v1283 = vadd.f32 0.0, %v1282
  %v1284 = vpop.f32.mrb[0].mxu0
  %1285 = vmatprep.mubr.bf16.mxu0 0
  %1286 = vmatmul.mubr.bf16.gmra.mrb[0].mxu0 %v1154
  %v1287 = vpop.f32.mrb[0].mxu0
  %v1288 = vadd.f32 0.0, %v1287
  %v1289 = vpop.f32.mrb[0].mxu0
  %v1290 = vpop.f32.mrb[0].mxu0
  %v1291 = vadd.f32 0.0, %v1290
  %v1292 = vpop.f32.mrb[0].mxu0
  %1293 = vmatprep.mubr.bf16.mxu0 0
  %1294 = vmatmul.mubr.bf16.gmra.mrb[0].mxu0 %v1155
  %v1295 = vpop.f32.mrb[0].mxu0
  %v1296 = vadd.f32 0.0, %v1295
  %v1297 = vpop.f32.mrb[0].mxu0
  %v1298 = vpop.f32.mrb[0].mxu0
  %v1299 = vadd.f32 0.0, %v1298
  %v1300 = vpop.f32.mrb[0].mxu0
  %1301 = vmatprep.mubr.bf16.mxu0 0
  %1302 = vmatmul.mubr.bf16.gmra.mrb[0].mxu0 %v1156
  %v1303 = vpop.f32.mrb[0].mxu0
  %v1304 = vadd.f32 0.0, %v1303
  %v1305 = vpop.f32.mrb[0].mxu0
  %v1306 = vpop.f32.mrb[0].mxu0
  %v1307 = vadd.f32 0.0, %v1306
  %v1308 = vpop.f32.mrb[0].mxu0
  %1309 = vmatprep.mubr.bf16.mxu0 0
  %1310 = vmatmul.mubr.bf16.gmra.mrb[0].mxu0 %v1157
  %v1311 = vpop.f32.mrb[0].mxu0
  %v1312 = vadd.f32 0.0, %v1311
  %v1313 = vpop.f32.mrb[0].mxu0
  %v1314 = vpop.f32.mrb[0].mxu0
  %v1315 = vadd.f32 0.0, %v1314
  %v1316 = vpop.f32.mrb[0].mxu0
  %1317 = vmatprep.mubr.bf16.mxu0 0
  %1318 = vmatmul.mubr.bf16.gmra.mrb[0].mxu0 %v1158
  %v1319 = vpop.f32.mrb[0].mxu0
  %v1320 = vadd.f32 0.0, %v1319
  %v1321 = vpop.f32.mrb[0].mxu0
  %v1322 = vpop.f32.mrb[0].mxu0
  %v1323 = vadd.f32 0.0, %v1322
  %v1324 = vpop.f32.mrb[0].mxu0
  %1325 = vmatprep.mubr.bf16.mxu0 0
  %1326 = vmatmul.mubr.bf16.gmra.mrb[0].mxu0 %v1159
  %v1327 = vpop.f32.mrb[0].mxu0
  %v1328 = vadd.f32 0.0, %v1327
  %v1329 = vpop.f32.mrb[0].mxu0
  %v1330 = vpop.f32.mrb[0].mxu0
  %v1331 = vadd.f32 0.0, %v1330
  %v1332 = vpop.f32.mrb[0].mxu0
  %1333 = vmatprep.mubr.bf16.mxu0 0
  %1334 = vmatmul.mubr.bf16.gmra.mrb[0].mxu0 %v1160
  %v1335 = vpop.f32.mrb[0].mxu0
  %v1336 = vadd.f32 0.0, %v1335
  %v1337 = vpop.f32.mrb[0].mxu0
  %v1338 = vpop.f32.mrb[0].mxu0
  %v1339 = vadd.f32 0.0, %v1338
  %v1340 = vpop.f32.mrb[0].mxu0
  %1341 = vmatprep.mubr.bf16.mxu0 0
  %1342 = vmatmul.mubr.bf16.gmra.mrb[0].mxu0 %v1161
  %v1343 = vpop.f32.mrb[0].mxu0
  %v1344 = vadd.f32 0.0, %v1343
  %v1345 = vpop.f32.mrb[0].mxu0
  %v1346 = vpop.f32.mrb[0].mxu0
  %v1347 = vadd.f32 0.0, %v1346
  %v1348 = vpop.f32.mrb[0].mxu0
  %1349 = vmatprep.mubr.bf16.mxu0 0
  %1350 = vmatmul.mubr.bf16.gmra.mrb[0].mxu0 %v1162
  %v1351 = vpop.f32.mrb[0].mxu0
  %v1352 = vadd.f32 0.0, %v1351
  %v1353 = vpop.f32.mrb[0].mxu0
  %v1354 = vpop.f32.mrb[0].mxu0
  %v1355 = vadd.f32 0.0, %v1354
  %v1356 = vpop.f32.mrb[0].mxu0
  %1357 = vmatprep.mubr.bf16.mxu0 0
  %1358 = vmatmul.mubr.bf16.gmra.mrb[0].mxu0 %v1163
  %v1359 = vpop.f32.mrb[0].mxu0
  %v1360 = vadd.f32 0.0, %v1359
  %v1361 = vpop.f32.mrb[0].mxu0
  %v1362 = vpop.f32.mrb[0].mxu0
  %v1363 = vadd.f32 0.0, %v1362
  %v1364 = vpop.f32.mrb[0].mxu0
  %1365 = vmatprep.mubr.bf16.mxu0 0
  %1366 = vmatmul.mubr.bf16.gmra.mrb[0].mxu0 %v1164
  %v1367 = vpop.f32.mrb[0].mxu0
  %v1368 = vadd.f32 0.0, %v1367
  %v1369 = vpop.f32.mrb[0].mxu0
  %v1370 = vpop.f32.mrb[0].mxu0
  %v1371 = vadd.f32 0.0, %v1370
  %v1372 = vpop.f32.mrb[0].mxu0
  %1373 = vmatprep.mubr.bf16.mxu0 0
  %1374 = vmatmul.mubr.bf16.gmra.mrb[0].mxu0 %v1165
  %v1375 = vpop.f32.mrb[0].mxu0
  %v1376 = vadd.f32 0.0, %v1375
  %v1377 = vpop.f32.mrb[0].mxu0
  %v1378 = vpop.f32.mrb[0].mxu0
  %v1379 = vadd.f32 0.0, %v1378
  %v1380 = vpop.f32.mrb[0].mxu0
  %1381 = vmatprep.mubr.bf16.mxu0 0
  %1382 = vmatmul.mubr.bf16.gmra.mrb[0].mxu0 %v1166
  %v1383 = vpop.f32.mrb[0].mxu0
  %v1384 = vadd.f32 0.0, %v1383
  %v1385 = vpop.f32.mrb[0].mxu0
  %v1386 = vpop.f32.mrb[0].mxu0
  %v1387 = vadd.f32 0.0, %v1386
  %v1388 = vpop.f32.mrb[0].mxu0
  %1389 = vmatprep.mubr.bf16.mxu0 0
  %1390 = vmatmul.mubr.bf16.gmra.mrb[0].mxu0 %v1167
  %v1391 = vpop.f32.mrb[0].mxu0
  %v1392 = vadd.f32 0.0, %v1391
  %v1393 = vpop.f32.mrb[0].mxu0
  %v1394 = vpop.f32.mrb[0].mxu0
  %v1395 = vadd.f32 0.0, %v1394
  %v1396 = vpop.f32.mrb[0].mxu0
  %1397 = vmatprep.mubr.bf16.mxu0 0
  %1398 = vmatmul.mubr.bf16.gmra.mrb[0].mxu0 %v1168
  %v1399 = vpop.f32.mrb[0].mxu0
  %v1400 = vadd.f32 0.0, %v1399
  %v1401 = vpop.f32.mrb[0].mxu0
  %v1402 = vpop.f32.mrb[0].mxu0
  %v1403 = vadd.f32 0.0, %v1402
  %v1404 = vpop.f32.mrb[0].mxu0
  %1405 = vmatprep.mubr.bf16.mxu0 0
  %1406 = vmatmul.mubr.bf16.gmra.mrb[0].mxu0 %v1169
  %v1407 = vpop.f32.mrb[0].mxu0
  %v1408 = vadd.f32 0.0, %v1407
  %v1409 = vpop.f32.mrb[0].mxu0
  %v1410 = vpop.f32.mrb[0].mxu0
  %v1411 = vadd.f32 0.0, %v1410
  %v1412 = vpop.f32.mrb[0].mxu0
  %1413 = vmatprep.mubr.bf16.mxu0 0
  %1414 = vmatmul.mubr.bf16.gmra.mrb[0].mxu0 %v1170
  %v1415 = vpop.f32.mrb[0].mxu0
  %v1416 = vadd.f32 0.0, %v1415
  %v1417 = vpop.f32.mrb[0].mxu0
  %v1418 = vpop.f32.mrb[0].mxu0
  %v1419 = vadd.f32 0.0, %v1418
  %v1420 = vpop.f32.mrb[0].mxu0
  %1421 = vmatprep.mubr.bf16.mxu0 0
  %1422 = vmatmul.mubr.bf16.gmra.mrb[0].mxu0 %v1171
  %v1423 = vpop.f32.mrb[0].mxu0
  %v1424 = vadd.f32 0.0, %v1423
  %v1425 = vpop.f32.mrb[0].mxu0
  %v1426 = vpop.f32.mrb[0].mxu0
  %v1427 = vadd.f32 0.0, %v1426
  %v1428 = vpop.f32.mrb[0].mxu0
  %1429 = vdwg.mxu0
  %v1430 = vmax.f32 %v946, %v1232
  %v1431 = vmax.f32 %v947, %v1235
  %v1432 = vmax.f32 %v948, %v1240
  %v1433 = vmax.f32 %v949, %v1243
  %v1434 = vmax.f32 %v950, %v1248
  %v1435 = vmax.f32 %v951, %v1251
  %v1436 = vmax.f32 %v952, %v1256
  %v1437 = vmax.f32 %v953, %v1259
  %v1438 = vmax.f32 %v954, %v1264
  %v1439 = vmax.f32 %v955, %v1267
  %v1440 = vmax.f32 %v956, %v1272
  %v1441 = vmax.f32 %v957, %v1275
  %v1442 = vmax.f32 %v958, %v1280
  %v1443 = vmax.f32 %v959, %v1283
  %v1444 = vmax.f32 %v960, %v1288
  %v1445 = vmax.f32 %v961, %v1291
  %v1446 = vmax.f32 %v962, %v1296
  %v1447 = vmax.f32 %v963, %v1299
  %v1448 = vmax.f32 %v964, %v1304
  %v1449 = vmax.f32 %v965, %v1307
  %v1450 = vmax.f32 %v966, %v1312
  %v1451 = vmax.f32 %v967, %v1315
  %v1452 = vmax.f32 %v968, %v1320
  %v1453 = vmax.f32 %v969, %v1323
  %v1454 = vmax.f32 %v970, %v1328
  %v1455 = vmax.f32 %v971, %v1331
  %v1456 = vmax.f32 %v972, %v1336
  %v1457 = vmax.f32 %v973, %v1339
  %v1458 = vmax.f32 %v974, %v1344
  %v1459 = vmax.f32 %v975, %v1347
  %v1460 = vmax.f32 %v976, %v1352
  %v1461 = vmax.f32 %v977, %v1355
  %v1462 = vmax.f32 %v978, %v1360
  %v1463 = vmax.f32 %v979, %v1363
  %v1464 = vmax.f32 %v980, %v1368
  %v1465 = vmax.f32 %v981, %v1371
  %v1466 = vmax.f32 %v982, %v1376
  %v1467 = vmax.f32 %v983, %v1379
  %v1468 = vmax.f32 %v984, %v1384
  %v1469 = vmax.f32 %v985, %v1387
  %v1470 = vmax.f32 %v986, %v1392
  %v1471 = vmax.f32 %v987, %v1395
  %v1472 = vmax.f32 %v988, %v1400
  %v1473 = vmax.f32 %v989, %v1403
  %v1474 = vmax.f32 %v990, %v1408
  %v1475 = vmax.f32 %v991, %v1411
  %v1476 = vmax.f32 %v992, %v1416
  %v1477 = vmax.f32 %v993, %v1419
  %v1478 = vmax.f32 %v994, %v1424
  %v1479 = vmax.f32 %v995, %v1427
  %s1480 = scalar_lea.vmem %s0, 600
  %v1481 = vld [vmem:[%s1480] sm:$0xf]
  %v1482 = vld [vmem:[%s1480 + $0x4] sm:$0xf]
  %v1483 = vld [vmem:[%s1480 + $0x8] sm:$0xf]
  %v1484 = vld [vmem:[%s1480 + $0xc] sm:$0xf]
  %v1485 = vld [vmem:[%s1480 + $0x10] sm:$0xf]
  %v1486 = vld [vmem:[%s1480 + $0x14] sm:$0xf]
  %v1487 = vld [vmem:[%s1480 + $0x18] sm:$0xf]
  %v1488 = vld [vmem:[%s1480 + $0x1c] sm:$0xf]
  %v1489 = vld [vmem:[%s1480 + $0x20] sm:$0xf]
  %v1490 = vld [vmem:[%s1480 + $0x24] sm:$0xf]
  %v1491 = vld [vmem:[%s1480 + $0x28] sm:$0xf]
  %v1492 = vld [vmem:[%s1480 + $0x2c] sm:$0xf]
  %v1493 = vld [vmem:[%s1480 + $0x30] sm:$0xf]
  %v1494 = vld [vmem:[%s1480 + $0x34] sm:$0xf]
  %v1495 = vld [vmem:[%s1480 + $0x38] sm:$0xf]
  %v1496 = vld [vmem:[%s1480 + $0x3c] sm:$0xf]
  %v1497 = vld [vmem:[%s1480 + $0x40] sm:$0xf]
  %v1498 = vld [vmem:[%s1480 + $0x44] sm:$0xf]
  %v1499 = vld [vmem:[%s1480 + $0x48] sm:$0xf]
  %v1500 = vld [vmem:[%s1480 + $0x4c] sm:$0xf]
  %v1501 = vld [vmem:[%s1480 + $0x50] sm:$0xf]
  %v1502 = vld [vmem:[%s1480 + $0x54] sm:$0xf]
  %v1503 = vld [vmem:[%s1480 + $0x58] sm:$0xf]
  %v1504 = vld [vmem:[%s1480 + $0x5c] sm:$0xf]
  %v1505 = vld [vmem:[%s1480 + $0x60] sm:$0xf]
  %v1506 = vld [vmem:[%s1480 + $0x64] sm:$0xf]
  %v1507 = vld [vmem:[%s1480 + $0x68] sm:$0xf]
  %v1508 = vld [vmem:[%s1480 + $0x6c] sm:$0xf]
  %v1509 = vld [vmem:[%s1480 + $0x70] sm:$0xf]
  %v1510 = vld [vmem:[%s1480 + $0x74] sm:$0xf]
  %v1511 = vld [vmem:[%s1480 + $0x78] sm:$0xf]
  %v1512 = vld [vmem:[%s1480 + $0x7c] sm:$0xf]
  %v1513 = vld [vmem:[%s1480 + $0x80] sm:$0xf]
  %v1514 = vld [vmem:[%s1480 + $0x84] sm:$0xf]
  %v1515 = vld [vmem:[%s1480 + $0x88] sm:$0xf]
  %v1516 = vld [vmem:[%s1480 + $0x8c] sm:$0xf]
  %v1517 = vld [vmem:[%s1480 + $0x90] sm:$0xf]
  %v1518 = vld [vmem:[%s1480 + $0x94] sm:$0xf]
  %v1519 = vld [vmem:[%s1480 + $0x98] sm:$0xf]
  %v1520 = vld [vmem:[%s1480 + $0x9c] sm:$0xf]
  %v1521 = vld [vmem:[%s1480 + $0xa0] sm:$0xf]
  %v1522 = vld [vmem:[%s1480 + $0xa4] sm:$0xf]
  %v1523 = vld [vmem:[%s1480 + $0xa8] sm:$0xf]
  %v1524 = vld [vmem:[%s1480 + $0xac] sm:$0xf]
  %v1525 = vld [vmem:[%s1480 + $0xb0] sm:$0xf]
  %v1526 = vld [vmem:[%s1480 + $0xb4] sm:$0xf]
  %v1527 = vld [vmem:[%s1480 + $0xb8] sm:$0xf]
  %v1528 = vld [vmem:[%s1480 + $0xbc] sm:$0xf]
  %v1529 = vld [vmem:[%s1480 + $0xc0] sm:$0xf]
  %v1530 = vld [vmem:[%s1480 + $0xc4] sm:$0xf]
  %v1581 = vunpack.c.l.b16 %v1481
  %v1582 = vunpack.c.l.b16 %v1482
  %v1583 = vunpack.c.l.b16 %v1483
  %v1584 = vunpack.c.l.b16 %v1484
  %v1585 = vunpack.c.l.b16 %v1485
  %v1586 = vunpack.c.l.b16 %v1486
  %v1587 = vunpack.c.l.b16 %v1487
  %v1588 = vunpack.c.l.b16 %v1488
  %v1589 = vunpack.c.l.b16 %v1489
  %v1590 = vunpack.c.l.b16 %v1490
  %v1591 = vunpack.c.l.b16 %v1491
  %v1592 = vunpack.c.l.b16 %v1492
  %v1593 = vunpack.c.l.b16 %v1493
  %v1594 = vunpack.c.l.b16 %v1494
  %v1595 = vunpack.c.l.b16 %v1495
  %v1596 = vunpack.c.l.b16 %v1496
  %v1597 = vunpack.c.l.b16 %v1497
  %v1598 = vunpack.c.l.b16 %v1498
  %v1599 = vunpack.c.l.b16 %v1499
  %v1600 = vunpack.c.l.b16 %v1500
  %v1601 = vunpack.c.l.b16 %v1501
  %v1602 = vunpack.c.l.b16 %v1502
  %v1603 = vunpack.c.l.b16 %v1503
  %v1604 = vunpack.c.l.b16 %v1504
  %v1605 = vunpack.c.l.b16 %v1505
  %v1606 = vunpack.c.l.b16 %v1506
  %v1607 = vunpack.c.l.b16 %v1507
  %v1608 = vunpack.c.l.b16 %v1508
  %v1609 = vunpack.c.l.b16 %v1509
  %v1610 = vunpack.c.l.b16 %v1510
  %v1611 = vunpack.c.l.b16 %v1511
  %v1612 = vunpack.c.l.b16 %v1512
  %v1613 = vunpack.c.l.b16 %v1513
  %v1614 = vunpack.c.l.b16 %v1514
  %v1615 = vunpack.c.l.b16 %v1515
  %v1616 = vunpack.c.l.b16 %v1516
  %v1617 = vunpack.c.l.b16 %v1517
  %v1618 = vunpack.c.l.b16 %v1518
  %v1619 = vunpack.c.l.b16 %v1519
  %v1620 = vunpack.c.l.b16 %v1520
  %v1621 = vunpack.c.l.b16 %v1521
  %v1622 = vunpack.c.l.b16 %v1522
  %v1623 = vunpack.c.l.b16 %v1523
  %v1624 = vunpack.c.l.b16 %v1524
  %v1625 = vunpack.c.l.b16 %v1525
  %v1626 = vunpack.c.l.b16 %v1526
  %v1627 = vunpack.c.l.b16 %v1527
  %v1628 = vunpack.c.l.b16 %v1528
  %v1629 = vunpack.c.l.b16 %v1529
  %v1630 = vunpack.c.l.b16 %v1530
  %v1631 = vpack.c.b16 %v1582, %v1581
  %v1632 = vpack.c.b16 %v1584, %v1583
  %v1633 = vpack.c.b16 %v1586, %v1585
  %v1634 = vpack.c.b16 %v1588, %v1587
  %v1635 = vpack.c.b16 %v1590, %v1589
  %v1636 = vpack.c.b16 %v1592, %v1591
  %v1637 = vpack.c.b16 %v1594, %v1593
  %v1638 = vpack.c.b16 %v1596, %v1595
  %v1639 = vpack.c.b16 %v1598, %v1597
  %v1640 = vpack.c.b16 %v1600, %v1599
  %v1641 = vpack.c.b16 %v1602, %v1601
  %v1642 = vpack.c.b16 %v1604, %v1603
  %v1643 = vpack.c.b16 %v1606, %v1605
  %v1644 = vpack.c.b16 %v1608, %v1607
  %v1645 = vpack.c.b16 %v1610, %v1609
  %v1646 = vpack.c.b16 %v1612, %v1611
  %v1647 = vpack.c.b16 %v1614, %v1613
  %v1648 = vpack.c.b16 %v1616, %v1615
  %v1649 = vpack.c.b16 %v1618, %v1617
  %v1650 = vpack.c.b16 %v1620, %v1619
  %v1651 = vpack.c.b16 %v1622, %v1621
  %v1652 = vpack.c.b16 %v1624, %v1623
  %v1653 = vpack.c.b16 %v1626, %v1625
  %v1654 = vpack.c.b16 %v1628, %v1627
  %v1655 = vpack.c.b16 %v1630, %v1629
  %1681 = vmatprep.subr.bf16.mxu0 0
  %1682 = vmatpush1.bf16.msra.mxu0 %v263
  %1683 = vmatprep.subr.bf16.mxu0 0
  %1684 = vmatpush1.bf16.msra.mxu0 %v264
  %1685 = vmatprep.subr.bf16.mxu0 0
  %1686 = vmatpush1.bf16.msra.mxu0 %v265
  %1687 = vmatprep.subr.bf16.mxu0 0
  %1688 = vmatpush1.bf16.msra.mxu0 %v266
  %1689 = vmatprep.subr.bf16.mxu0 0
  %1690 = vmatpush1.bf16.msra.mxu0 %v267
  %1691 = vmatprep.subr.bf16.mxu0 0
  %1692 = vmatpush1.bf16.msra.mxu0 %v268
  %1693 = vmatprep.subr.bf16.mxu0 0
  %1694 = vmatpush1.bf16.msra.mxu0 %v269
  %1695 = vmatprep.subr.bf16.mxu0 0
  %1696 = vmatpush1.bf16.msra.mxu0 %v270
  %1697 = vmatprep.subr.bf16.mxu0 0
  %1698 = vmatpush1.bf16.msra.mxu0 0
  %1699 = vmatprep.subr.bf16.mxu0 0
  %1700 = vmatpush1.bf16.msra.mxu0 0
  %1701 = vmatprep.subr.bf16.mxu0 0
  %1702 = vmatpush1.bf16.msra.mxu0 0
  %1703 = vmatprep.subr.bf16.mxu0 0
  %1704 = vmatpush1.bf16.msra.mxu0 0
  %1705 = vmatprep.subr.bf16.mxu0 0
  %1706 = vmatpush1.bf16.msra.mxu0 0
  %1707 = vmatprep.subr.bf16.mxu0 0
  %1708 = vmatpush1.bf16.msra.mxu0 0
  %1709 = vmatprep.subr.bf16.mxu0 0
  %1710 = vmatpush1.bf16.msra.mxu0 0
  %1711 = vmatprep.subr.bf16.mxu0 0
  %1712 = vmatpush1.bf16.msra.mxu0 0
  %1713 = vmatprep.mubr.bf16.mxu0 0
  %1714 = vmatmul.mubr.bf16.gmra.mrb[0].mxu0 %v1631
  %v1715 = vpop.f32.mrb[0].mxu0
  %v1716 = vadd.f32 0.0, %v1715
  %v1717 = vpop.f32.mrb[0].mxu0
  %v1718 = vpop.f32.mrb[0].mxu0
  %v1719 = vadd.f32 0.0, %v1718
  %v1720 = vpop.f32.mrb[0].mxu0
  %1721 = vmatprep.mubr.bf16.mxu0 0
  %1722 = vmatmul.mubr.bf16.gmra.mrb[0].mxu0 %v1632
  %v1723 = vpop.f32.mrb[0].mxu0
  %v1724 = vadd.f32 0.0, %v1723
  %v1725 = vpop.f32.mrb[0].mxu0
  %v1726 = vpop.f32.mrb[0].mxu0
  %v1727 = vadd.f32 0.0, %v1726
  %v1728 = vpop.f32.mrb[0].mxu0
  %1729 = vmatprep.mubr.bf16.mxu0 0
  %1730 = vmatmul.mubr.bf16.gmra.mrb[0].mxu0 %v1633
  %v1731 = vpop.f32.mrb[0].mxu0
  %v1732 = vadd.f32 0.0, %v1731
  %v1733 = vpop.f32.mrb[0].mxu0
  %v1734 = vpop.f32.mrb[0].mxu0
  %v1735 = vadd.f32 0.0, %v1734
  %v1736 = vpop.f32.mrb[0].mxu0
  %1737 = vmatprep.mubr.bf16.mxu0 0
  %1738 = vmatmul.mubr.bf16.gmra.mrb[0].mxu0 %v1634
  %v1739 = vpop.f32.mrb[0].mxu0
  %v1740 = vadd.f32 0.0, %v1739
  %v1741 = vpop.f32.mrb[0].mxu0
  %v1742 = vpop.f32.mrb[0].mxu0
  %v1743 = vadd.f32 0.0, %v1742
  %v1744 = vpop.f32.mrb[0].mxu0
  %1745 = vmatprep.mubr.bf16.mxu0 0
  %1746 = vmatmul.mubr.bf16.gmra.mrb[0].mxu0 %v1635
  %v1747 = vpop.f32.mrb[0].mxu0
  %v1748 = vadd.f32 0.0, %v1747
  %v1749 = vpop.f32.mrb[0].mxu0
  %v1750 = vpop.f32.mrb[0].mxu0
  %v1751 = vadd.f32 0.0, %v1750
  %v1752 = vpop.f32.mrb[0].mxu0
  %1753 = vmatprep.mubr.bf16.mxu0 0
  %1754 = vmatmul.mubr.bf16.gmra.mrb[0].mxu0 %v1636
  %v1755 = vpop.f32.mrb[0].mxu0
  %v1756 = vadd.f32 0.0, %v1755
  %v1757 = vpop.f32.mrb[0].mxu0
  %v1758 = vpop.f32.mrb[0].mxu0
  %v1759 = vadd.f32 0.0, %v1758
  %v1760 = vpop.f32.mrb[0].mxu0
  %1761 = vmatprep.mubr.bf16.mxu0 0
  %1762 = vmatmul.mubr.bf16.gmra.mrb[0].mxu0 %v1637
  %v1763 = vpop.f32.mrb[0].mxu0
  %v1764 = vadd.f32 0.0, %v1763
  %v1765 = vpop.f32.mrb[0].mxu0
  %v1766 = vpop.f32.mrb[0].mxu0
  %v1767 = vadd.f32 0.0, %v1766
  %v1768 = vpop.f32.mrb[0].mxu0
  %1769 = vmatprep.mubr.bf16.mxu0 0
  %1770 = vmatmul.mubr.bf16.gmra.mrb[0].mxu0 %v1638
  %v1771 = vpop.f32.mrb[0].mxu0
  %v1772 = vadd.f32 0.0, %v1771
  %v1773 = vpop.f32.mrb[0].mxu0
  %v1774 = vpop.f32.mrb[0].mxu0
  %v1775 = vadd.f32 0.0, %v1774
  %v1776 = vpop.f32.mrb[0].mxu0
  %1777 = vmatprep.mubr.bf16.mxu0 0
  %1778 = vmatmul.mubr.bf16.gmra.mrb[0].mxu0 %v1639
  %v1779 = vpop.f32.mrb[0].mxu0
  %v1780 = vadd.f32 0.0, %v1779
  %v1781 = vpop.f32.mrb[0].mxu0
  %v1782 = vpop.f32.mrb[0].mxu0
  %v1783 = vadd.f32 0.0, %v1782
  %v1784 = vpop.f32.mrb[0].mxu0
  %1785 = vmatprep.mubr.bf16.mxu0 0
  %1786 = vmatmul.mubr.bf16.gmra.mrb[0].mxu0 %v1640
  %v1787 = vpop.f32.mrb[0].mxu0
  %v1788 = vadd.f32 0.0, %v1787
  %v1789 = vpop.f32.mrb[0].mxu0
  %v1790 = vpop.f32.mrb[0].mxu0
  %v1791 = vadd.f32 0.0, %v1790
  %v1792 = vpop.f32.mrb[0].mxu0
  %1793 = vmatprep.mubr.bf16.mxu0 0
  %1794 = vmatmul.mubr.bf16.gmra.mrb[0].mxu0 %v1641
  %v1795 = vpop.f32.mrb[0].mxu0
  %v1796 = vadd.f32 0.0, %v1795
  %v1797 = vpop.f32.mrb[0].mxu0
  %v1798 = vpop.f32.mrb[0].mxu0
  %v1799 = vadd.f32 0.0, %v1798
  %v1800 = vpop.f32.mrb[0].mxu0
  %1801 = vmatprep.mubr.bf16.mxu0 0
  %1802 = vmatmul.mubr.bf16.gmra.mrb[0].mxu0 %v1642
  %v1803 = vpop.f32.mrb[0].mxu0
  %v1804 = vadd.f32 0.0, %v1803
  %v1805 = vpop.f32.mrb[0].mxu0
  %v1806 = vpop.f32.mrb[0].mxu0
  %v1807 = vadd.f32 0.0, %v1806
  %v1808 = vpop.f32.mrb[0].mxu0
  %1809 = vmatprep.mubr.bf16.mxu0 0
  %1810 = vmatmul.mubr.bf16.gmra.mrb[0].mxu0 %v1643
  %v1811 = vpop.f32.mrb[0].mxu0
  %v1812 = vadd.f32 0.0, %v1811
  %v1813 = vpop.f32.mrb[0].mxu0
  %v1814 = vpop.f32.mrb[0].mxu0
  %v1815 = vadd.f32 0.0, %v1814
  %v1816 = vpop.f32.mrb[0].mxu0
  %1817 = vmatprep.mubr.bf16.mxu0 0
  %1818 = vmatmul.mubr.bf16.gmra.mrb[0].mxu0 %v1644
  %v1819 = vpop.f32.mrb[0].mxu0
  %v1820 = vadd.f32 0.0, %v1819
  %v1821 = vpop.f32.mrb[0].mxu0
  %v1822 = vpop.f32.mrb[0].mxu0
  %v1823 = vadd.f32 0.0, %v1822
  %v1824 = vpop.f32.mrb[0].mxu0
  %1825 = vmatprep.mubr.bf16.mxu0 0
  %1826 = vmatmul.mubr.bf16.gmra.mrb[0].mxu0 %v1645
  %v1827 = vpop.f32.mrb[0].mxu0
  %v1828 = vadd.f32 0.0, %v1827
  %v1829 = vpop.f32.mrb[0].mxu0
  %v1830 = vpop.f32.mrb[0].mxu0
  %v1831 = vadd.f32 0.0, %v1830
  %v1832 = vpop.f32.mrb[0].mxu0
  %1833 = vmatprep.mubr.bf16.mxu0 0
  %1834 = vmatmul.mubr.bf16.gmra.mrb[0].mxu0 %v1646
  %v1835 = vpop.f32.mrb[0].mxu0
  %v1836 = vadd.f32 0.0, %v1835
  %v1837 = vpop.f32.mrb[0].mxu0
  %v1838 = vpop.f32.mrb[0].mxu0
  %v1839 = vadd.f32 0.0, %v1838
  %v1840 = vpop.f32.mrb[0].mxu0
  %1841 = vmatprep.mubr.bf16.mxu0 0
  %1842 = vmatmul.mubr.bf16.gmra.mrb[0].mxu0 %v1647
  %v1843 = vpop.f32.mrb[0].mxu0
  %v1844 = vadd.f32 0.0, %v1843
  %v1845 = vpop.f32.mrb[0].mxu0
  %v1846 = vpop.f32.mrb[0].mxu0
  %v1847 = vadd.f32 0.0, %v1846
  %v1848 = vpop.f32.mrb[0].mxu0
  %1849 = vmatprep.mubr.bf16.mxu0 0
  %1850 = vmatmul.mubr.bf16.gmra.mrb[0].mxu0 %v1648
  %v1851 = vpop.f32.mrb[0].mxu0
  %v1852 = vadd.f32 0.0, %v1851
  %v1853 = vpop.f32.mrb[0].mxu0
  %v1854 = vpop.f32.mrb[0].mxu0
  %v1855 = vadd.f32 0.0, %v1854
  %v1856 = vpop.f32.mrb[0].mxu0
  %1857 = vmatprep.mubr.bf16.mxu0 0
  %1858 = vmatmul.mubr.bf16.gmra.mrb[0].mxu0 %v1649
  %v1859 = vpop.f32.mrb[0].mxu0
  %v1860 = vadd.f32 0.0, %v1859
  %v1861 = vpop.f32.mrb[0].mxu0
  %v1862 = vpop.f32.mrb[0].mxu0
  %v1863 = vadd.f32 0.0, %v1862
  %v1864 = vpop.f32.mrb[0].mxu0
  %1865 = vmatprep.mubr.bf16.mxu0 0
  %1866 = vmatmul.mubr.bf16.gmra.mrb[0].mxu0 %v1650
  %v1867 = vpop.f32.mrb[0].mxu0
  %v1868 = vadd.f32 0.0, %v1867
  %v1869 = vpop.f32.mrb[0].mxu0
  %v1870 = vpop.f32.mrb[0].mxu0
  %v1871 = vadd.f32 0.0, %v1870
  %v1872 = vpop.f32.mrb[0].mxu0
  %1873 = vmatprep.mubr.bf16.mxu0 0
  %1874 = vmatmul.mubr.bf16.gmra.mrb[0].mxu0 %v1651
  %v1875 = vpop.f32.mrb[0].mxu0
  %v1876 = vadd.f32 0.0, %v1875
  %v1877 = vpop.f32.mrb[0].mxu0
  %v1878 = vpop.f32.mrb[0].mxu0
  %v1879 = vadd.f32 0.0, %v1878
  %v1880 = vpop.f32.mrb[0].mxu0
  %1881 = vmatprep.mubr.bf16.mxu0 0
  %1882 = vmatmul.mubr.bf16.gmra.mrb[0].mxu0 %v1652
  %v1883 = vpop.f32.mrb[0].mxu0
  %v1884 = vadd.f32 0.0, %v1883
  %v1885 = vpop.f32.mrb[0].mxu0
  %v1886 = vpop.f32.mrb[0].mxu0
  %v1887 = vadd.f32 0.0, %v1886
  %v1888 = vpop.f32.mrb[0].mxu0
  %1889 = vmatprep.mubr.bf16.mxu0 0
  %1890 = vmatmul.mubr.bf16.gmra.mrb[0].mxu0 %v1653
  %v1891 = vpop.f32.mrb[0].mxu0
  %v1892 = vadd.f32 0.0, %v1891
  %v1893 = vpop.f32.mrb[0].mxu0
  %v1894 = vpop.f32.mrb[0].mxu0
  %v1895 = vadd.f32 0.0, %v1894
  %v1896 = vpop.f32.mrb[0].mxu0
  %1897 = vmatprep.mubr.bf16.mxu0 0
  %1898 = vmatmul.mubr.bf16.gmra.mrb[0].mxu0 %v1654
  %v1899 = vpop.f32.mrb[0].mxu0
  %v1900 = vadd.f32 0.0, %v1899
  %v1901 = vpop.f32.mrb[0].mxu0
  %v1902 = vpop.f32.mrb[0].mxu0
  %v1903 = vadd.f32 0.0, %v1902
  %v1904 = vpop.f32.mrb[0].mxu0
  %1905 = vmatprep.mubr.bf16.mxu0 0
  %1906 = vmatmul.mubr.bf16.gmra.mrb[0].mxu0 %v1655
  %v1907 = vpop.f32.mrb[0].mxu0
  %v1908 = vadd.f32 0.0, %v1907
  %v1909 = vpop.f32.mrb[0].mxu0
  %v1910 = vpop.f32.mrb[0].mxu0
  %v1911 = vadd.f32 0.0, %v1910
  %v1912 = vpop.f32.mrb[0].mxu0
  %1913 = vdwg.mxu0
  %v1914 = vmax.f32 %v1430, %v1716
  %v1915 = vmax.f32 %v1431, %v1719
  %v1916 = vmax.f32 %v1432, %v1724
  %v1917 = vmax.f32 %v1433, %v1727
  %v1918 = vmax.f32 %v1434, %v1732
  %v1919 = vmax.f32 %v1435, %v1735
  %v1920 = vmax.f32 %v1436, %v1740
  %v1921 = vmax.f32 %v1437, %v1743
  %v1922 = vmax.f32 %v1438, %v1748
  %v1923 = vmax.f32 %v1439, %v1751
  %v1924 = vmax.f32 %v1440, %v1756
  %v1925 = vmax.f32 %v1441, %v1759
  %v1926 = vmax.f32 %v1442, %v1764
  %v1927 = vmax.f32 %v1443, %v1767
  %v1928 = vmax.f32 %v1444, %v1772
  %v1929 = vmax.f32 %v1445, %v1775
  %v1930 = vmax.f32 %v1446, %v1780
  %v1931 = vmax.f32 %v1447, %v1783
  %v1932 = vmax.f32 %v1448, %v1788
  %v1933 = vmax.f32 %v1449, %v1791
  %v1934 = vmax.f32 %v1450, %v1796
  %v1935 = vmax.f32 %v1451, %v1799
  %v1936 = vmax.f32 %v1452, %v1804
  %v1937 = vmax.f32 %v1453, %v1807
  %v1938 = vmax.f32 %v1454, %v1812
  %v1939 = vmax.f32 %v1455, %v1815
  %v1940 = vmax.f32 %v1456, %v1820
  %v1941 = vmax.f32 %v1457, %v1823
  %v1942 = vmax.f32 %v1458, %v1828
  %v1943 = vmax.f32 %v1459, %v1831
  %v1944 = vmax.f32 %v1460, %v1836
  %v1945 = vmax.f32 %v1461, %v1839
  %v1946 = vmax.f32 %v1462, %v1844
  %v1947 = vmax.f32 %v1463, %v1847
  %v1948 = vmax.f32 %v1464, %v1852
  %v1949 = vmax.f32 %v1465, %v1855
  %v1950 = vmax.f32 %v1466, %v1860
  %v1951 = vmax.f32 %v1467, %v1863
  %v1952 = vmax.f32 %v1468, %v1868
  %v1953 = vmax.f32 %v1469, %v1871
  %v1954 = vmax.f32 %v1470, %v1876
  %v1955 = vmax.f32 %v1471, %v1879
  %v1956 = vmax.f32 %v1472, %v1884
  %v1957 = vmax.f32 %v1473, %v1887
  %v1958 = vmax.f32 %v1474, %v1892
  %v1959 = vmax.f32 %v1475, %v1895
  %v1960 = vmax.f32 %v1476, %v1900
  %v1961 = vmax.f32 %v1477, %v1903
  %v1962 = vmax.f32 %v1478, %v1908
  %v1963 = vmax.f32 %v1479, %v1911
  %v1964 = vld [vmem:[%s2] sm:$0x1]
  %v1966 = vlaneseq
  %v1967 = vshrl.u32 %v1966, 7
  %v1968 = vsub.s32 0, %v1967
  %v1969 = vrot.slane %v1964, %v1968
  %v1971 = vadd.f32 %v1914, %v1969
  %v1972 = vadd.f32 %v1915, %v1969
  %v1973 = vadd.f32 %v1916, %v1969
  %v1974 = vadd.f32 %v1917, %v1969
  %v1975 = vadd.f32 %v1918, %v1969
  %v1976 = vadd.f32 %v1919, %v1969
  %v1977 = vadd.f32 %v1920, %v1969
  %v1978 = vadd.f32 %v1921, %v1969
  %v1979 = vadd.f32 %v1922, %v1969
  %v1980 = vadd.f32 %v1923, %v1969
  %v1981 = vadd.f32 %v1924, %v1969
  %v1982 = vadd.f32 %v1925, %v1969
  %v1983 = vadd.f32 %v1926, %v1969
  %v1984 = vadd.f32 %v1927, %v1969
  %v1985 = vadd.f32 %v1928, %v1969
  %v1986 = vadd.f32 %v1929, %v1969
  %v1987 = vadd.f32 %v1930, %v1969
  %v1988 = vadd.f32 %v1931, %v1969
  %v1989 = vadd.f32 %v1932, %v1969
  %v1990 = vadd.f32 %v1933, %v1969
  %v1991 = vadd.f32 %v1934, %v1969
  %v1992 = vadd.f32 %v1935, %v1969
  %v1993 = vadd.f32 %v1936, %v1969
  %v1994 = vadd.f32 %v1937, %v1969
  %v1995 = vadd.f32 %v1938, %v1969
  %v1996 = vadd.f32 %v1939, %v1969
  %v1997 = vadd.f32 %v1940, %v1969
  %v1998 = vadd.f32 %v1941, %v1969
  %v1999 = vadd.f32 %v1942, %v1969
  %v2000 = vadd.f32 %v1943, %v1969
  %v2001 = vadd.f32 %v1944, %v1969
  %v2002 = vadd.f32 %v1945, %v1969
  %v2003 = vadd.f32 %v1946, %v1969
  %v2004 = vadd.f32 %v1947, %v1969
  %v2005 = vadd.f32 %v1948, %v1969
  %v2006 = vadd.f32 %v1949, %v1969
  %v2007 = vadd.f32 %v1950, %v1969
  %v2008 = vadd.f32 %v1951, %v1969
  %v2009 = vadd.f32 %v1952, %v1969
  %v2010 = vadd.f32 %v1953, %v1969
  %v2011 = vadd.f32 %v1954, %v1969
  %v2012 = vadd.f32 %v1955, %v1969
  %v2013 = vadd.f32 %v1956, %v1969
  %v2014 = vadd.f32 %v1957, %v1969
  %v2015 = vadd.f32 %v1958, %v1969
  %v2016 = vadd.f32 %v1959, %v1969
  %v2017 = vadd.f32 %v1960, %v1969
  %v2018 = vadd.f32 %v1961, %v1969
  %v2019 = vadd.f32 %v1962, %v1969
  %v2020 = vadd.f32 %v1963, %v1969
  %v2021 = vmax.f32 %v1971, 0.0
  %v2022 = vmax.f32 %v1972, 0.0
  %v2023 = vmax.f32 %v1973, 0.0
  %v2024 = vmax.f32 %v1974, 0.0
  %v2025 = vmax.f32 %v1975, 0.0
  %v2026 = vmax.f32 %v1976, 0.0
  %v2027 = vmax.f32 %v1977, 0.0
  %v2028 = vmax.f32 %v1978, 0.0
  %v2029 = vmax.f32 %v1979, 0.0
  %v2030 = vmax.f32 %v1980, 0.0
  %v2031 = vmax.f32 %v1981, 0.0
  %v2032 = vmax.f32 %v1982, 0.0
  %v2033 = vmax.f32 %v1983, 0.0
  %v2034 = vmax.f32 %v1984, 0.0
  %v2035 = vmax.f32 %v1985, 0.0
  %v2036 = vmax.f32 %v1986, 0.0
  %v2037 = vmax.f32 %v1987, 0.0
  %v2038 = vmax.f32 %v1988, 0.0
  %v2039 = vmax.f32 %v1989, 0.0
  %v2040 = vmax.f32 %v1990, 0.0
  %v2041 = vmax.f32 %v1991, 0.0
  %v2042 = vmax.f32 %v1992, 0.0
  %v2043 = vmax.f32 %v1993, 0.0
  %v2044 = vmax.f32 %v1994, 0.0
  %v2045 = vmax.f32 %v1995, 0.0
  %v2046 = vmax.f32 %v1996, 0.0
  %v2047 = vmax.f32 %v1997, 0.0
  %v2048 = vmax.f32 %v1998, 0.0
  %v2049 = vmax.f32 %v1999, 0.0
  %v2050 = vmax.f32 %v2000, 0.0
  %v2051 = vmax.f32 %v2001, 0.0
  %v2052 = vmax.f32 %v2002, 0.0
  %v2053 = vmax.f32 %v2003, 0.0
  %v2054 = vmax.f32 %v2004, 0.0
  %v2055 = vmax.f32 %v2005, 0.0
  %v2056 = vmax.f32 %v2006, 0.0
  %v2057 = vmax.f32 %v2007, 0.0
  %v2058 = vmax.f32 %v2008, 0.0
  %v2059 = vmax.f32 %v2009, 0.0
  %v2060 = vmax.f32 %v2010, 0.0
  %v2061 = vmax.f32 %v2011, 0.0
  %v2062 = vmax.f32 %v2012, 0.0
  %v2063 = vmax.f32 %v2013, 0.0
  %v2064 = vmax.f32 %v2014, 0.0
  %v2065 = vmax.f32 %v2015, 0.0
  %v2066 = vmax.f32 %v2016, 0.0
  %v2067 = vmax.f32 %v2017, 0.0
  %v2068 = vmax.f32 %v2018, 0.0
  %v2069 = vmax.f32 %v2019, 0.0
  %v2070 = vmax.f32 %v2020, 0.0
  %v2071 = vpack.c.bf16 %v2022, %v2021
  %v2072 = vpack.c.bf16 %v2024, %v2023
  %v2073 = vpack.c.bf16 %v2026, %v2025
  %v2074 = vpack.c.bf16 %v2028, %v2027
  %v2075 = vpack.c.bf16 %v2030, %v2029
  %v2076 = vpack.c.bf16 %v2032, %v2031
  %v2077 = vpack.c.bf16 %v2034, %v2033
  %v2078 = vpack.c.bf16 %v2036, %v2035
  %v2079 = vpack.c.bf16 %v2038, %v2037
  %v2080 = vpack.c.bf16 %v2040, %v2039
  %v2081 = vpack.c.bf16 %v2042, %v2041
  %v2082 = vpack.c.bf16 %v2044, %v2043
  %v2083 = vpack.c.bf16 %v2046, %v2045
  %v2084 = vpack.c.bf16 %v2048, %v2047
  %v2085 = vpack.c.bf16 %v2050, %v2049
  %v2086 = vpack.c.bf16 %v2052, %v2051
  %v2087 = vpack.c.bf16 %v2054, %v2053
  %v2088 = vpack.c.bf16 %v2056, %v2055
  %v2089 = vpack.c.bf16 %v2058, %v2057
  %v2090 = vpack.c.bf16 %v2060, %v2059
  %v2091 = vpack.c.bf16 %v2062, %v2061
  %v2092 = vpack.c.bf16 %v2064, %v2063
  %v2093 = vpack.c.bf16 %v2066, %v2065
  %v2094 = vpack.c.bf16 %v2068, %v2067
  %v2095 = vpack.c.bf16 %v2070, %v2069
  %v2121 = vunpack.c.l.b16 %v2071
  %v2122 = vunpack.c.h.b16 %v2071
  %v2123 = vunpack.c.l.b16 %v2072
  %v2124 = vunpack.c.h.b16 %v2072
  %v2125 = vunpack.c.l.b16 %v2073
  %v2126 = vunpack.c.h.b16 %v2073
  %v2127 = vunpack.c.l.b16 %v2074
  %v2128 = vunpack.c.h.b16 %v2074
  %v2129 = vunpack.c.l.b16 %v2075
  %v2130 = vunpack.c.h.b16 %v2075
  %v2131 = vunpack.c.l.b16 %v2076
  %v2132 = vunpack.c.h.b16 %v2076
  %v2133 = vunpack.c.l.b16 %v2077
  %v2134 = vunpack.c.h.b16 %v2077
  %v2135 = vunpack.c.l.b16 %v2078
  %v2136 = vunpack.c.h.b16 %v2078
  %v2137 = vunpack.c.l.b16 %v2079
  %v2138 = vunpack.c.h.b16 %v2079
  %v2139 = vunpack.c.l.b16 %v2080
  %v2140 = vunpack.c.h.b16 %v2080
  %v2141 = vunpack.c.l.b16 %v2081
  %v2142 = vunpack.c.h.b16 %v2081
  %v2143 = vunpack.c.l.b16 %v2082
  %v2144 = vunpack.c.h.b16 %v2082
  %v2145 = vunpack.c.l.b16 %v2083
  %v2146 = vunpack.c.h.b16 %v2083
  %v2147 = vunpack.c.l.b16 %v2084
  %v2148 = vunpack.c.h.b16 %v2084
  %v2149 = vunpack.c.l.b16 %v2085
  %v2150 = vunpack.c.h.b16 %v2085
  %v2151 = vunpack.c.l.b16 %v2086
  %v2152 = vunpack.c.h.b16 %v2086
  %v2153 = vunpack.c.l.b16 %v2087
  %v2154 = vunpack.c.h.b16 %v2087
  %v2155 = vunpack.c.l.b16 %v2088
  %v2156 = vunpack.c.h.b16 %v2088
  %v2157 = vunpack.c.l.b16 %v2089
  %v2158 = vunpack.c.h.b16 %v2089
  %v2159 = vunpack.c.l.b16 %v2090
  %v2160 = vunpack.c.h.b16 %v2090
  %v2161 = vunpack.c.l.b16 %v2091
  %v2162 = vunpack.c.h.b16 %v2091
  %v2163 = vunpack.c.l.b16 %v2092
  %v2164 = vunpack.c.h.b16 %v2092
  %v2165 = vunpack.c.l.b16 %v2093
  %v2166 = vunpack.c.h.b16 %v2093
  %v2167 = vunpack.c.l.b16 %v2094
  %v2168 = vunpack.c.h.b16 %v2094
  %v2169 = vunpack.c.l.b16 %v2095
  %v2170 = vunpack.c.h.b16 %v2095
  %v2171 = vpack.c.b16 %v2121, %v2121
  %v2172 = vpack.c.b16 %v2122, %v2122
  %v2173 = vpack.c.b16 %v2123, %v2123
  %v2174 = vpack.c.b16 %v2124, %v2124
  %v2175 = vpack.c.b16 %v2125, %v2125
  %v2176 = vpack.c.b16 %v2126, %v2126
  %v2177 = vpack.c.b16 %v2127, %v2127
  %v2178 = vpack.c.b16 %v2128, %v2128
  %v2179 = vpack.c.b16 %v2129, %v2129
  %v2180 = vpack.c.b16 %v2130, %v2130
  %v2181 = vpack.c.b16 %v2131, %v2131
  %v2182 = vpack.c.b16 %v2132, %v2132
  %v2183 = vpack.c.b16 %v2133, %v2133
  %v2184 = vpack.c.b16 %v2134, %v2134
  %v2185 = vpack.c.b16 %v2135, %v2135
  %v2186 = vpack.c.b16 %v2136, %v2136
  %v2187 = vpack.c.b16 %v2137, %v2137
  %v2188 = vpack.c.b16 %v2138, %v2138
  %v2189 = vpack.c.b16 %v2139, %v2139
  %v2190 = vpack.c.b16 %v2140, %v2140
  %v2191 = vpack.c.b16 %v2141, %v2141
  %v2192 = vpack.c.b16 %v2142, %v2142
  %v2193 = vpack.c.b16 %v2143, %v2143
  %v2194 = vpack.c.b16 %v2144, %v2144
  %v2195 = vpack.c.b16 %v2145, %v2145
  %v2196 = vpack.c.b16 %v2146, %v2146
  %v2197 = vpack.c.b16 %v2147, %v2147
  %v2198 = vpack.c.b16 %v2148, %v2148
  %v2199 = vpack.c.b16 %v2149, %v2149
  %v2200 = vpack.c.b16 %v2150, %v2150
  %v2201 = vpack.c.b16 %v2151, %v2151
  %v2202 = vpack.c.b16 %v2152, %v2152
  %v2203 = vpack.c.b16 %v2153, %v2153
  %v2204 = vpack.c.b16 %v2154, %v2154
  %v2205 = vpack.c.b16 %v2155, %v2155
  %v2206 = vpack.c.b16 %v2156, %v2156
  %v2207 = vpack.c.b16 %v2157, %v2157
  %v2208 = vpack.c.b16 %v2158, %v2158
  %v2209 = vpack.c.b16 %v2159, %v2159
  %v2210 = vpack.c.b16 %v2160, %v2160
  %v2211 = vpack.c.b16 %v2161, %v2161
  %v2212 = vpack.c.b16 %v2162, %v2162
  %v2213 = vpack.c.b16 %v2163, %v2163
  %v2214 = vpack.c.b16 %v2164, %v2164
  %v2215 = vpack.c.b16 %v2165, %v2165
  %v2216 = vpack.c.b16 %v2166, %v2166
  %v2217 = vpack.c.b16 %v2167, %v2167
  %v2218 = vpack.c.b16 %v2168, %v2168
  %v2219 = vpack.c.b16 %v2169, %v2169
  %v2220 = vpack.c.b16 %v2170, %v2170
  %2271 = vst [vmem:[%s3] sm:$0xf] %v2171
  %2272 = vst [vmem:[%s3 + $0x4] sm:$0xf] %v2172
  %2273 = vst [vmem:[%s3 + $0x8] sm:$0xf] %v2173
  %2274 = vst [vmem:[%s3 + $0xc] sm:$0xf] %v2174
  %2275 = vst [vmem:[%s3 + $0x10] sm:$0xf] %v2175
  %2276 = vst [vmem:[%s3 + $0x14] sm:$0xf] %v2176
  %2277 = vst [vmem:[%s3 + $0x18] sm:$0xf] %v2177
  %2278 = vst [vmem:[%s3 + $0x1c] sm:$0xf] %v2178
  %2279 = vst [vmem:[%s3 + $0x20] sm:$0xf] %v2179
  %2280 = vst [vmem:[%s3 + $0x24] sm:$0xf] %v2180
  %2281 = vst [vmem:[%s3 + $0x28] sm:$0xf] %v2181
  %2282 = vst [vmem:[%s3 + $0x2c] sm:$0xf] %v2182
  %2283 = vst [vmem:[%s3 + $0x30] sm:$0xf] %v2183
  %2284 = vst [vmem:[%s3 + $0x34] sm:$0xf] %v2184
  %2285 = vst [vmem:[%s3 + $0x38] sm:$0xf] %v2185
  %2286 = vst [vmem:[%s3 + $0x3c] sm:$0xf] %v2186
  %2287 = vst [vmem:[%s3 + $0x40] sm:$0xf] %v2187
  %2288 = vst [vmem:[%s3 + $0x44] sm:$0xf] %v2188
  %2289 = vst [vmem:[%s3 + $0x48] sm:$0xf] %v2189
  %2290 = vst [vmem:[%s3 + $0x4c] sm:$0xf] %v2190
  %2291 = vst [vmem:[%s3 + $0x50] sm:$0xf] %v2191
  %2292 = vst [vmem:[%s3 + $0x54] sm:$0xf] %v2192
  %2293 = vst [vmem:[%s3 + $0x58] sm:$0xf] %v2193
  %2294 = vst [vmem:[%s3 + $0x5c] sm:$0xf] %v2194
  %2295 = vst [vmem:[%s3 + $0x60] sm:$0xf] %v2195
  %2296 = vst [vmem:[%s3 + $0x64] sm:$0xf] %v2196
  %2297 = vst [vmem:[%s3 + $0x68] sm:$0xf] %v2197
  %2298 = vst [vmem:[%s3 + $0x6c] sm:$0xf] %v2198
  %2299 = vst [vmem:[%s3 + $0x70] sm:$0xf] %v2199
  %2300 = vst [vmem:[%s3 + $0x74] sm:$0xf] %v2200
  %2301 = vst [vmem:[%s3 + $0x78] sm:$0xf] %v2201
  %2302 = vst [vmem:[%s3 + $0x7c] sm:$0xf] %v2202
  %2303 = vst [vmem:[%s3 + $0x80] sm:$0xf] %v2203
  %2304 = vst [vmem:[%s3 + $0x84] sm:$0xf] %v2204
  %2305 = vst [vmem:[%s3 + $0x88] sm:$0xf] %v2205
  %2306 = vst [vmem:[%s3 + $0x8c] sm:$0xf] %v2206
  %2307 = vst [vmem:[%s3 + $0x90] sm:$0xf] %v2207
  %2308 = vst [vmem:[%s3 + $0x94] sm:$0xf] %v2208
  %2309 = vst [vmem:[%s3 + $0x98] sm:$0xf] %v2209
  %2310 = vst [vmem:[%s3 + $0x9c] sm:$0xf] %v2210
  %2311 = vst [vmem:[%s3 + $0xa0] sm:$0xf] %v2211
  %2312 = vst [vmem:[%s3 + $0xa4] sm:$0xf] %v2212
  %2313 = vst [vmem:[%s3 + $0xa8] sm:$0xf] %v2213
  %2314 = vst [vmem:[%s3 + $0xac] sm:$0xf] %v2214
  %2315 = vst [vmem:[%s3 + $0xb0] sm:$0xf] %v2215
  %2316 = vst [vmem:[%s3 + $0xb4] sm:$0xf] %v2216
  %2317 = vst [vmem:[%s3 + $0xb8] sm:$0xf] %v2217
  %2318 = vst [vmem:[%s3 + $0xbc] sm:$0xf] %v2218
  %2319 = vst [vmem:[%s3 + $0xc0] sm:$0xf] %v2219
  %2320 = vst [vmem:[%s3 + $0xc4] sm:$0xf] %v2220
  // Predicated region
  $region14: #{convnet_forward.3} parent=0 // pred_check
    _
  $region15: #{convnet_forward.3} parent=0 // pred_check_branch
    %2322 = sbr.rel (0) target = $region17
  $region16: #{convnet_forward.3} parent=0 // pred_region
    _
  $region17: #{convnet_forward.3} parent=0 // pred_fallthru
    _
  // Predicated region
  $region18: #{convnet_forward.3} parent=0 // pred_check
    _
  $region19: #{convnet_forward.3} parent=0 // pred_check_branch
    %2324 = sbr.rel (0) target = $region21
  $region20: #{convnet_forward.3} parent=0 // pred_region
    _
  $region21: #{convnet_forward.3} parent=0 // pred_fallthru
    _

// kernel: convnet_forward.4
$region0: #{convnet_forward.4}
  #allocation0 [shape = 'u32[]', space=smem, size = 0x4, offset = 0x4, fixed_abs, tag = 'smem constant byte address 0x4 - core index']
  #allocation1 [shape = 'u32[144,128]{1,0:T(1,128)}', space=vmem, size = 0x12000, scoped, tag = 'internal scratch']
  %s0 = inlined_call_operand.vmem [shape: bf16[4,64,256], index: 0, kind: input, shape index: {}]
  %s1 = inlined_call_operand.vmem [shape: bf16[256,128], index: 1, kind: input, shape index: {}]
  %s2 = inlined_call_operand.vmem [shape: f32[1,128], index: 2, kind: input, shape index: {}]
  %s3 = inlined_call_operand.vmem [shape: bf16[64,128], index: 3, kind: output, shape index: {}]
  %s4 = sld [smem:[#allocation0]]
  $region22: #{convnet_forward.4} parent=0
    _
  %s6 = ssub.s32 1, %s4
  %s7 = scalar_select 0, %s6, %s4
  // Predicated region
  $region2: #{convnet_forward.4} parent=0 // pred_check
    _
  $region3: #{convnet_forward.4} parent=0 // pred_check_branch
    %9 = sbr.rel (0) target = $region5
  $region4: #{convnet_forward.4} parent=0 // pred_region
    _
  $region5: #{convnet_forward.4} parent=0 // pred_fallthru
    _
  // Predicated region
  $region6: #{convnet_forward.4} parent=0 // pred_check
    _
  $region7: #{convnet_forward.4} parent=0 // pred_check_branch
    %11 = sbr.rel (0) target = $region9
  $region8: #{convnet_forward.4} parent=0 // pred_region
    _
  $region9: #{convnet_forward.4} parent=0 // pred_fallthru
    _
  // Predicated region
  $region10: #{convnet_forward.4} parent=0 // pred_check
    _
  $region11: #{convnet_forward.4} parent=0 // pred_check_branch
    %13 = sbr.rel (0) target = $region13
  $region12: #{convnet_forward.4} parent=0 // pred_region
    _
  $region13: #{convnet_forward.4} parent=0 // pred_fallthru
    _
  %v15 = vld [vmem:[%s1] sm:$0xf]
  %v16 = vld [vmem:[%s1 + $0x4] sm:$0xf]
  %v17 = vld [vmem:[%s1 + $0x8] sm:$0xf]
  %v18 = vld [vmem:[%s1 + $0xc] sm:$0xf]
  %v19 = vld [vmem:[%s1 + $0x10] sm:$0xf]
  %v20 = vld [vmem:[%s1 + $0x14] sm:$0xf]
  %v21 = vld [vmem:[%s1 + $0x18] sm:$0xf]
  %v22 = vld [vmem:[%s1 + $0x1c] sm:$0xf]
  %v23 = vld [vmem:[%s1 + $0x20] sm:$0xf]
  %v24 = vld [vmem:[%s1 + $0x24] sm:$0xf]
  %v25 = vld [vmem:[%s1 + $0x28] sm:$0xf]
  %v26 = vld [vmem:[%s1 + $0x2c] sm:$0xf]
  %v27 = vld [vmem:[%s1 + $0x30] sm:$0xf]
  %v28 = vld [vmem:[%s1 + $0x34] sm:$0xf]
  %v29 = vld [vmem:[%s1 + $0x38] sm:$0xf]
  %v30 = vld [vmem:[%s1 + $0x3c] sm:$0xf]
  %v31 = vld [vmem:[%s1 + $0x40] sm:$0xf]
  %v32 = vld [vmem:[%s1 + $0x44] sm:$0xf]
  %v33 = vld [vmem:[%s1 + $0x48] sm:$0xf]
  %v34 = vld [vmem:[%s1 + $0x4c] sm:$0xf]
  %v35 = vld [vmem:[%s1 + $0x50] sm:$0xf]
  %v36 = vld [vmem:[%s1 + $0x54] sm:$0xf]
  %v37 = vld [vmem:[%s1 + $0x58] sm:$0xf]
  %v38 = vld [vmem:[%s1 + $0x5c] sm:$0xf]
  %v39 = vld [vmem:[%s1 + $0x60] sm:$0xf]
  %v40 = vld [vmem:[%s1 + $0x64] sm:$0xf]
  %v41 = vld [vmem:[%s1 + $0x68] sm:$0xf]
  %v42 = vld [vmem:[%s1 + $0x6c] sm:$0xf]
  %v43 = vld [vmem:[%s1 + $0x70] sm:$0xf]
  %v44 = vld [vmem:[%s1 + $0x74] sm:$0xf]
  %v45 = vld [vmem:[%s1 + $0x78] sm:$0xf]
  %v46 = vld [vmem:[%s1 + $0x7c] sm:$0xf]
  %v47 = vld [vmem:[%s0] sm:$0xff]
  %v48 = vld [vmem:[%s0 + $0x8] sm:$0xff]
  %v49 = vld [vmem:[%s0 + $0x10] sm:$0xff]
  %v50 = vld [vmem:[%s0 + $0x18] sm:$0xff]
  %v51 = vld [vmem:[%s0 + $0x20] sm:$0xff]
  %v52 = vld [vmem:[%s0 + $0x28] sm:$0xff]
  %v53 = vld [vmem:[%s0 + $0x30] sm:$0xff]
  %v54 = vld [vmem:[%s0 + $0x38] sm:$0xff]
  %v63 = vunpack.c.l.b16 %v47
  %v64 = vunpack.c.h.b16 %v47
  %v65 = vunpack.c.l.b16 %v48
  %v66 = vunpack.c.h.b16 %v48
  %v67 = vunpack.c.l.b16 %v49
  %v68 = vunpack.c.h.b16 %v49
  %v69 = vunpack.c.l.b16 %v50
  %v70 = vunpack.c.h.b16 %v50
  %v71 = vunpack.c.l.b16 %v51
  %v72 = vunpack.c.h.b16 %v51
  %v73 = vunpack.c.l.b16 %v52
  %v74 = vunpack.c.h.b16 %v52
  %v75 = vunpack.c.l.b16 %v53
  %v76 = vunpack.c.h.b16 %v53
  %v77 = vunpack.c.l.b16 %v54
  %v78 = vunpack.c.h.b16 %v54
  %v79 = vpack.c.b16 %v65, %v63
  %v80 = vpack.c.b16 %v66, %v64
  %v81 = vpack.c.b16 %v69, %v67
  %v82 = vpack.c.b16 %v70, %v68
  %v83 = vpack.c.b16 %v73, %v71
  %v84 = vpack.c.b16 %v74, %v72
  %v85 = vpack.c.b16 %v77, %v75
  %v86 = vpack.c.b16 %v78, %v76
  %v127 = vunpack.c.l.b16 %v15
  %v128 = vunpack.c.l.b16 %v16
  %v129 = vunpack.c.l.b16 %v17
  %v130 = vunpack.c.l.b16 %v18
  %v131 = vunpack.c.l.b16 %v19
  %v132 = vunpack.c.l.b16 %v20
  %v133 = vunpack.c.l.b16 %v21
  %v134 = vunpack.c.l.b16 %v22
  %v135 = vunpack.c.l.b16 %v23
  %v136 = vunpack.c.l.b16 %v24
  %v137 = vunpack.c.l.b16 %v25
  %v138 = vunpack.c.l.b16 %v26
  %v139 = vunpack.c.l.b16 %v27
  %v140 = vunpack.c.l.b16 %v28
  %v141 = vunpack.c.l.b16 %v29
  %v142 = vunpack.c.l.b16 %v30
  %v143 = vunpack.c.l.b16 %v31
  %v144 = vunpack.c.l.b16 %v32
  %v145 = vunpack.c.l.b16 %v33
  %v146 = vunpack.c.l.b16 %v34
  %v147 = vunpack.c.l.b16 %v35
  %v148 = vunpack.c.l.b16 %v36
  %v149 = vunpack.c.l.b16 %v37
  %v150 = vunpack.c.l.b16 %v38
  %v151 = vunpack.c.l.b16 %v39
  %v152 = vunpack.c.l.b16 %v40
  %v153 = vunpack.c.l.b16 %v41
  %v154 = vunpack.c.l.b16 %v42
  %v155 = vunpack.c.l.b16 %v43
  %v156 = vunpack.c.l.b16 %v44
  %v157 = vunpack.c.l.b16 %v45
  %v158 = vunpack.c.l.b16 %v46
  %v159 = vpack.c.b16 %v128, %v127
  %v160 = vpack.c.b16 %v130, %v129
  %v161 = vpack.c.b16 %v132, %v131
  %v162 = vpack.c.b16 %v134, %v133
  %v163 = vpack.c.b16 %v136, %v135
  %v164 = vpack.c.b16 %v138, %v137
  %v165 = vpack.c.b16 %v140, %v139
  %v166 = vpack.c.b16 %v142, %v141
  %v167 = vpack.c.b16 %v144, %v143
  %v168 = vpack.c.b16 %v146, %v145
  %v169 = vpack.c.b16 %v148, %v147
  %v170 = vpack.c.b16 %v150, %v149
  %v171 = vpack.c.b16 %v152, %v151
  %v172 = vpack.c.b16 %v154, %v153
  %v173 = vpack.c.b16 %v156, %v155
  %v174 = vpack.c.b16 %v158, %v157
  %191 = vmatprep.subr.bf16.mxu0 0
  %192 = vmatpush1.bf16.msra.mxu0 %v159
  %193 = vmatprep.subr.bf16.mxu0 0
  %194 = vmatpush1.bf16.msra.mxu0 %v160
  %195 = vmatprep.subr.bf16.mxu0 0
  %196 = vmatpush1.bf16.msra.mxu0 %v161
  %197 = vmatprep.subr.bf16.mxu0 0
  %198 = vmatpush1.bf16.msra.mxu0 %v162
  %199 = vmatprep.subr.bf16.mxu0 0
  %200 = vmatpush1.bf16.msra.mxu0 %v163
  %201 = vmatprep.subr.bf16.mxu0 0
  %202 = vmatpush1.bf16.msra.mxu0 %v164
  %203 = vmatprep.subr.bf16.mxu0 0
  %204 = vmatpush1.bf16.msra.mxu0 %v165
  %205 = vmatprep.subr.bf16.mxu0 0
  %206 = vmatpush1.bf16.msra.mxu0 %v166
  %207 = vmatprep.subr.bf16.mxu0 0
  %208 = vmatpush1.bf16.msra.mxu0 %v167
  %209 = vmatprep.subr.bf16.mxu0 0
  %210 = vmatpush1.bf16.msra.mxu0 %v168
  %211 = vmatprep.subr.bf16.mxu0 0
  %212 = vmatpush1.bf16.msra.mxu0 %v169
  %213 = vmatprep.subr.bf16.mxu0 0
  %214 = vmatpush1.bf16.msra.mxu0 %v170
  %215 = vmatprep.subr.bf16.mxu0 0
  %216 = vmatpush1.bf16.msra.mxu0 %v171
  %217 = vmatprep.subr.bf16.mxu0 0
  %218 = vmatpush1.bf16.msra.mxu0 %v172
  %219 = vmatprep.subr.bf16.mxu0 0
  %220 = vmatpush1.bf16.msra.mxu0 %v173
  %221 = vmatprep.subr.bf16.mxu0 0
  %222 = vmatpush1.bf16.msra.mxu0 %v174
  %223 = vmatprep.mubr.bf16.mxu0 %v80
  %224 = vmatmul.mubr.bf16.gmra.mrb[0].mxu0 %v79
  %v225 = vpop.f32.mrb[0].mxu0
  %v226 = vadd.f32 0.0, %v225
  %v227 = vpop.f32.mrb[0].mxu0
  %v228 = vpop.f32.mrb[0].mxu0
  %v229 = vadd.f32 0.0, %v228
  %v230 = vpop.f32.mrb[0].mxu0
  %231 = vmatprep.mubr.bf16.mxu0 %v82
  %232 = vmatmul.mubr.bf16.gmra.mrb[0].mxu0 %v81
  %v233 = vpop.f32.mrb[0].mxu0
  %v234 = vadd.f32 0.0, %v233
  %v235 = vpop.f32.mrb[0].mxu0
  %v236 = vpop.f32.mrb[0].mxu0
  %v237 = vadd.f32 0.0, %v236
  %v238 = vpop.f32.mrb[0].mxu0
  %239 = vmatprep.mubr.bf16.mxu0 %v84
  %240 = vmatmul.mubr.bf16.gmra.mrb[0].mxu0 %v83
  %v241 = vpop.f32.mrb[0].mxu0
  %v242 = vadd.f32 0.0, %v241
  %v243 = vpop.f32.mrb[0].mxu0
  %v244 = vpop.f32.mrb[0].mxu0
  %v245 = vadd.f32 0.0, %v244
  %v246 = vpop.f32.mrb[0].mxu0
  %247 = vmatprep.mubr.bf16.mxu0 %v86
  %248 = vmatmul.mubr.bf16.gmra.mrb[0].mxu0 %v85
  %v249 = vpop.f32.mrb[0].mxu0
  %v250 = vadd.f32 0.0, %v249
  %v251 = vpop.f32.mrb[0].mxu0
  %v252 = vpop.f32.mrb[0].mxu0
  %v253 = vadd.f32 0.0, %v252
  %v254 = vpop.f32.mrb[0].mxu0
  %255 = vdwg.mxu0
  %s256 = scalar_lea.vmem %s0, 64
  %v257 = vld [vmem:[%s256] sm:$0xff]
  %v258 = vld [vmem:[%s256 + $0x8] sm:$0xff]
  %v259 = vld [vmem:[%s256 + $0x10] sm:$0xff]
  %v260 = vld [vmem:[%s256 + $0x18] sm:$0xff]
  %v261 = vld [vmem:[%s256 + $0x20] sm:$0xff]
  %v262 = vld [vmem:[%s256 + $0x28] sm:$0xff]
  %v263 = vld [vmem:[%s256 + $0x30] sm:$0xff]
  %v264 = vld [vmem:[%s256 + $0x38] sm:$0xff]
  %v273 = vunpack.c.l.b16 %v257
  %v274 = vunpack.c.h.b16 %v257
  %v275 = vunpack.c.l.b16 %v258
  %v276 = vunpack.c.h.b16 %v258
  %v277 = vunpack.c.l.b16 %v259
  %v278 = vunpack.c.h.b16 %v259
  %v279 = vunpack.c.l.b16 %v260
  %v280 = vunpack.c.h.b16 %v260
  %v281 = vunpack.c.l.b16 %v261
  %v282 = vunpack.c.h.b16 %v261
  %v283 = vunpack.c.l.b16 %v262
  %v284 = vunpack.c.h.b16 %v262
  %v285 = vunpack.c.l.b16 %v263
  %v286 = vunpack.c.h.b16 %v263
  %v287 = vunpack.c.l.b16 %v264
  %v288 = vunpack.c.h.b16 %v264
  %v289 = vpack.c.b16 %v275, %v273
  %v290 = vpack.c.b16 %v276, %v274
  %v291 = vpack.c.b16 %v279, %v277
  %v292 = vpack.c.b16 %v280, %v278
  %v293 = vpack.c.b16 %v283, %v281
  %v294 = vpack.c.b16 %v284, %v282
  %v295 = vpack.c.b16 %v287, %v285
  %v296 = vpack.c.b16 %v288, %v286
  %305 = vmatprep.subr.bf16.mxu0 0
  %306 = vmatpush1.bf16.msra.mxu0 %v159
  %307 = vmatprep.subr.bf16.mxu0 0
  %308 = vmatpush1.bf16.msra.mxu0 %v160
  %309 = vmatprep.subr.bf16.mxu0 0
  %310 = vmatpush1.bf16.msra.mxu0 %v161
  %311 = vmatprep.subr.bf16.mxu0 0
  %312 = vmatpush1.bf16.msra.mxu0 %v162
  %313 = vmatprep.subr.bf16.mxu0 0
  %314 = vmatpush1.bf16.msra.mxu0 %v163
  %315 = vmatprep.subr.bf16.mxu0 0
  %316 = vmatpush1.bf16.msra.mxu0 %v164
  %317 = vmatprep.subr.bf16.mxu0 0
  %318 = vmatpush1.bf16.msra.mxu0 %v165
  %319 = vmatprep.subr.bf16.mxu0 0
  %320 = vmatpush1.bf16.msra.mxu0 %v166
  %321 = vmatprep.subr.bf16.mxu0 0
  %322 = vmatpush1.bf16.msra.mxu0 %v167
  %323 = vmatprep.subr.bf16.mxu0 0
  %324 = vmatpush1.bf16.msra.mxu0 %v168
  %325 = vmatprep.subr.bf16.mxu0 0
  %326 = vmatpush1.bf16.msra.mxu0 %v169
  %327 = vmatprep.subr.bf16.mxu0 0
  %328 = vmatpush1.bf16.msra.mxu0 %v170
  %329 = vmatprep.subr.bf16.mxu0 0
  %330 = vmatpush1.bf16.msra.mxu0 %v171
  %331 = vmatprep.subr.bf16.mxu0 0
  %332 = vmatpush1.bf16.msra.mxu0 %v172
  %333 = vmatprep.subr.bf16.mxu0 0
  %334 = vmatpush1.bf16.msra.mxu0 %v173
  %335 = vmatprep.subr.bf16.mxu0 0
  %336 = vmatpush1.bf16.msra.mxu0 %v174
  %337 = vmatprep.mubr.bf16.mxu0 %v290
  %338 = vmatmul.mubr.bf16.gmra.mrb[0].mxu0 %v289
  %v339 = vpop.f32.mrb[0].mxu0
  %v340 = vadd.f32 0.0, %v339
  %v341 = vpop.f32.mrb[0].mxu0
  %v342 = vpop.f32.mrb[0].mxu0
  %v343 = vadd.f32 0.0, %v342
  %v344 = vpop.f32.mrb[0].mxu0
  %345 = vmatprep.mubr.bf16.mxu0 %v292
  %346 = vmatmul.mubr.bf16.gmra.mrb[0].mxu0 %v291
  %v347 = vpop.f32.mrb[0].mxu0
  %v348 = vadd.f32 0.0, %v347
  %v349 = vpop.f32.mrb[0].mxu0
  %v350 = vpop.f32.mrb[0].mxu0
  %v351 = vadd.f32 0.0, %v350
  %v352 = vpop.f32.mrb[0].mxu0
  %353 = vmatprep.mubr.bf16.mxu0 %v294
  %354 = vmatmul.mubr.bf16.gmra.mrb[0].mxu0 %v293
  %v355 = vpop.f32.mrb[0].mxu0
  %v356 = vadd.f32 0.0, %v355
  %v357 = vpop.f32.mrb[0].mxu0
  %v358 = vpop.f32.mrb[0].mxu0
  %v359 = vadd.f32 0.0, %v358
  %v360 = vpop.f32.mrb[0].mxu0
  %361 = vmatprep.mubr.bf16.mxu0 %v296
  %362 = vmatmul.mubr.bf16.gmra.mrb[0].mxu0 %v295
  %v363 = vpop.f32.mrb[0].mxu0
  %v364 = vadd.f32 0.0, %v363
  %v365 = vpop.f32.mrb[0].mxu0
  %v366 = vpop.f32.mrb[0].mxu0
  %v367 = vadd.f32 0.0, %v366
  %v368 = vpop.f32.mrb[0].mxu0
  %369 = vdwg.mxu0
  %v370 = vmax.f32 %v226, %v340
  %v371 = vmax.f32 %v229, %v343
  %v372 = vmax.f32 %v234, %v348
  %v373 = vmax.f32 %v237, %v351
  %v374 = vmax.f32 %v242, %v356
  %v375 = vmax.f32 %v245, %v359
  %v376 = vmax.f32 %v250, %v364
  %v377 = vmax.f32 %v253, %v367
  %s378 = scalar_lea.vmem %s0, 128
  %v379 = vld [vmem:[%s378] sm:$0xff]
  %v380 = vld [vmem:[%s378 + $0x8] sm:$0xff]
  %v381 = vld [vmem:[%s378 + $0x10] sm:$0xff]
  %v382 = vld [vmem:[%s378 + $0x18] sm:$0xff]
  %v383 = vld [vmem:[%s378 + $0x20] sm:$0xff]
  %v384 = vld [vmem:[%s378 + $0x28] sm:$0xff]
  %v385 = vld [vmem:[%s378 + $0x30] sm:$0xff]
  %v386 = vld [vmem:[%s378 + $0x38] sm:$0xff]
  %v395 = vunpack.c.l.b16 %v379
  %v396 = vunpack.c.h.b16 %v379
  %v397 = vunpack.c.l.b16 %v380
  %v398 = vunpack.c.h.b16 %v380
  %v399 = vunpack.c.l.b16 %v381
  %v400 = vunpack.c.h.b16 %v381
  %v401 = vunpack.c.l.b16 %v382
  %v402 = vunpack.c.h.b16 %v382
  %v403 = vunpack.c.l.b16 %v383
  %v404 = vunpack.c.h.b16 %v383
  %v405 = vunpack.c.l.b16 %v384
  %v406 = vunpack.c.h.b16 %v384
  %v407 = vunpack.c.l.b16 %v385
  %v408 = vunpack.c.h.b16 %v385
  %v409 = vunpack.c.l.b16 %v386
  %v410 = vunpack.c.h.b16 %v386
  %v411 = vpack.c.b16 %v397, %v395
  %v412 = vpack.c.b16 %v398, %v396
  %v413 = vpack.c.b16 %v401, %v399
  %v414 = vpack.c.b16 %v402, %v400
  %v415 = vpack.c.b16 %v405, %v403
  %v416 = vpack.c.b16 %v406, %v404
  %v417 = vpack.c.b16 %v409, %v407
  %v418 = vpack.c.b16 %v410, %v408
  %427 = vmatprep.subr.bf16.mxu0 0
  %428 = vmatpush1.bf16.msra.mxu0 %v159
  %429 = vmatprep.subr.bf16.mxu0 0
  %430 = vmatpush1.bf16.msra.mxu0 %v160
  %431 = vmatprep.subr.bf16.mxu0 0
  %432 = vmatpush1.bf16.msra.mxu0 %v161
  %433 = vmatprep.subr.bf16.mxu0 0
  %434 = vmatpush1.bf16.msra.mxu0 %v162
  %435 = vmatprep.subr.bf16.mxu0 0
  %436 = vmatpush1.bf16.msra.mxu0 %v163
  %437 = vmatprep.subr.bf16.mxu0 0
  %438 = vmatpush1.bf16.msra.mxu0 %v164
  %439 = vmatprep.subr.bf16.mxu0 0
  %440 = vmatpush1.bf16.msra.mxu0 %v165
  %441 = vmatprep.subr.bf16.mxu0 0
  %442 = vmatpush1.bf16.msra.mxu0 %v166
  %443 = vmatprep.subr.bf16.mxu0 0
  %444 = vmatpush1.bf16.msra.mxu0 %v167
  %445 = vmatprep.subr.bf16.mxu0 0
  %446 = vmatpush1.bf16.msra.mxu0 %v168
  %447 = vmatprep.subr.bf16.mxu0 0
  %448 = vmatpush1.bf16.msra.mxu0 %v169
  %449 = vmatprep.subr.bf16.mxu0 0
  %450 = vmatpush1.bf16.msra.mxu0 %v170
  %451 = vmatprep.subr.bf16.mxu0 0
  %452 = vmatpush1.bf16.msra.mxu0 %v171
  %453 = vmatprep.subr.bf16.mxu0 0
  %454 = vmatpush1.bf16.msra.mxu0 %v172
  %455 = vmatprep.subr.bf16.mxu0 0
  %456 = vmatpush1.bf16.msra.mxu0 %v173
  %457 = vmatprep.subr.bf16.mxu0 0
  %458 = vmatpush1.bf16.msra.mxu0 %v174
  %459 = vmatprep.mubr.bf16.mxu0 %v412
  %460 = vmatmul.mubr.bf16.gmra.mrb[0].mxu0 %v411
  %v461 = vpop.f32.mrb[0].mxu0
  %v462 = vadd.f32 0.0, %v461
  %v463 = vpop.f32.mrb[0].mxu0
  %v464 = vpop.f32.mrb[0].mxu0
  %v465 = vadd.f32 0.0, %v464
  %v466 = vpop.f32.mrb[0].mxu0
  %467 = vmatprep.mubr.bf16.mxu0 %v414
  %468 = vmatmul.mubr.bf16.gmra.mrb[0].mxu0 %v413
  %v469 = vpop.f32.mrb[0].mxu0
  %v470 = vadd.f32 0.0, %v469
  %v471 = vpop.f32.mrb[0].mxu0
  %v472 = vpop.f32.mrb[0].mxu0
  %v473 = vadd.f32 0.0, %v472
  %v474 = vpop.f32.mrb[0].mxu0
  %475 = vmatprep.mubr.bf16.mxu0 %v416
  %476 = vmatmul.mubr.bf16.gmra.mrb[0].mxu0 %v415
  %v477 = vpop.f32.mrb[0].mxu0
  %v478 = vadd.f32 0.0, %v477
  %v479 = vpop.f32.mrb[0].mxu0
  %v480 = vpop.f32.mrb[0].mxu0
  %v481 = vadd.f32 0.0, %v480
  %v482 = vpop.f32.mrb[0].mxu0
  %483 = vmatprep.mubr.bf16.mxu0 %v418
  %484 = vmatmul.mubr.bf16.gmra.mrb[0].mxu0 %v417
  %v485 = vpop.f32.mrb[0].mxu0
  %v486 = vadd.f32 0.0, %v485
  %v487 = vpop.f32.mrb[0].mxu0
  %v488 = vpop.f32.mrb[0].mxu0
  %v489 = vadd.f32 0.0, %v488
  %v490 = vpop.f32.mrb[0].mxu0
  %491 = vdwg.mxu0
  %v492 = vmax.f32 %v370, %v462
  %v493 = vmax.f32 %v371, %v465
  %v494 = vmax.f32 %v372, %v470
  %v495 = vmax.f32 %v373, %v473
  %v496 = vmax.f32 %v374, %v478
  %v497 = vmax.f32 %v375, %v481
  %v498 = vmax.f32 %v376, %v486
  %v499 = vmax.f32 %v377, %v489
  %s500 = scalar_lea.vmem %s0, 192
  %v501 = vld [vmem:[%s500] sm:$0xff]
  %v502 = vld [vmem:[%s500 + $0x8] sm:$0xff]
  %v503 = vld [vmem:[%s500 + $0x10] sm:$0xff]
  %v504 = vld [vmem:[%s500 + $0x18] sm:$0xff]
  %v505 = vld [vmem:[%s500 + $0x20] sm:$0xff]
  %v506 = vld [vmem:[%s500 + $0x28] sm:$0xff]
  %v507 = vld [vmem:[%s500 + $0x30] sm:$0xff]
  %v508 = vld [vmem:[%s500 + $0x38] sm:$0xff]
  %v517 = vunpack.c.l.b16 %v501
  %v518 = vunpack.c.h.b16 %v501
  %v519 = vunpack.c.l.b16 %v502
  %v520 = vunpack.c.h.b16 %v502
  %v521 = vunpack.c.l.b16 %v503
  %v522 = vunpack.c.h.b16 %v503
  %v523 = vunpack.c.l.b16 %v504
  %v524 = vunpack.c.h.b16 %v504
  %v525 = vunpack.c.l.b16 %v505
  %v526 = vunpack.c.h.b16 %v505
  %v527 = vunpack.c.l.b16 %v506
  %v528 = vunpack.c.h.b16 %v506
  %v529 = vunpack.c.l.b16 %v507
  %v530 = vunpack.c.h.b16 %v507
  %v531 = vunpack.c.l.b16 %v508
  %v532 = vunpack.c.h.b16 %v508
  %v533 = vpack.c.b16 %v519, %v517
  %v534 = vpack.c.b16 %v520, %v518
  %v535 = vpack.c.b16 %v523, %v521
  %v536 = vpack.c.b16 %v524, %v522
  %v537 = vpack.c.b16 %v527, %v525
  %v538 = vpack.c.b16 %v528, %v526
  %v539 = vpack.c.b16 %v531, %v529
  %v540 = vpack.c.b16 %v532, %v530
  %549 = vmatprep.subr.bf16.mxu0 0
  %550 = vmatpush1.bf16.msra.mxu0 %v159
  %551 = vmatprep.subr.bf16.mxu0 0
  %552 = vmatpush1.bf16.msra.mxu0 %v160
  %553 = vmatprep.subr.bf16.mxu0 0
  %554 = vmatpush1.bf16.msra.mxu0 %v161
  %555 = vmatprep.subr.bf16.mxu0 0
  %556 = vmatpush1.bf16.msra.mxu0 %v162
  %557 = vmatprep.subr.bf16.mxu0 0
  %558 = vmatpush1.bf16.msra.mxu0 %v163
  %559 = vmatprep.subr.bf16.mxu0 0
  %560 = vmatpush1.bf16.msra.mxu0 %v164
  %561 = vmatprep.subr.bf16.mxu0 0
  %562 = vmatpush1.bf16.msra.mxu0 %v165
  %563 = vmatprep.subr.bf16.mxu0 0
  %564 = vmatpush1.bf16.msra.mxu0 %v166
  %565 = vmatprep.subr.bf16.mxu0 0
  %566 = vmatpush1.bf16.msra.mxu0 %v167
  %567 = vmatprep.subr.bf16.mxu0 0
  %568 = vmatpush1.bf16.msra.mxu0 %v168
  %569 = vmatprep.subr.bf16.mxu0 0
  %570 = vmatpush1.bf16.msra.mxu0 %v169
  %571 = vmatprep.subr.bf16.mxu0 0
  %572 = vmatpush1.bf16.msra.mxu0 %v170
  %573 = vmatprep.subr.bf16.mxu0 0
  %574 = vmatpush1.bf16.msra.mxu0 %v171
  %575 = vmatprep.subr.bf16.mxu0 0
  %576 = vmatpush1.bf16.msra.mxu0 %v172
  %577 = vmatprep.subr.bf16.mxu0 0
  %578 = vmatpush1.bf16.msra.mxu0 %v173
  %579 = vmatprep.subr.bf16.mxu0 0
  %580 = vmatpush1.bf16.msra.mxu0 %v174
  %581 = vmatprep.mubr.bf16.mxu0 %v534
  %582 = vmatmul.mubr.bf16.gmra.mrb[0].mxu0 %v533
  %v583 = vpop.f32.mrb[0].mxu0
  %v584 = vadd.f32 0.0, %v583
  %v585 = vpop.f32.mrb[0].mxu0
  %v586 = vpop.f32.mrb[0].mxu0
  %v587 = vadd.f32 0.0, %v586
  %v588 = vpop.f32.mrb[0].mxu0
  %589 = vmatprep.mubr.bf16.mxu0 %v536
  %590 = vmatmul.mubr.bf16.gmra.mrb[0].mxu0 %v535
  %v591 = vpop.f32.mrb[0].mxu0
  %v592 = vadd.f32 0.0, %v591
  %v593 = vpop.f32.mrb[0].mxu0
  %v594 = vpop.f32.mrb[0].mxu0
  %v595 = vadd.f32 0.0, %v594
  %v596 = vpop.f32.mrb[0].mxu0
  %597 = vmatprep.mubr.bf16.mxu0 %v538
  %598 = vmatmul.mubr.bf16.gmra.mrb[0].mxu0 %v537
  %v599 = vpop.f32.mrb[0].mxu0
  %v600 = vadd.f32 0.0, %v599
  %v601 = vpop.f32.mrb[0].mxu0
  %v602 = vpop.f32.mrb[0].mxu0
  %v603 = vadd.f32 0.0, %v602
  %v604 = vpop.f32.mrb[0].mxu0
  %605 = vmatprep.mubr.bf16.mxu0 %v540
  %606 = vmatmul.mubr.bf16.gmra.mrb[0].mxu0 %v539
  %v607 = vpop.f32.mrb[0].mxu0
  %v608 = vadd.f32 0.0, %v607
  %v609 = vpop.f32.mrb[0].mxu0
  %v610 = vpop.f32.mrb[0].mxu0
  %v611 = vadd.f32 0.0, %v610
  %v612 = vpop.f32.mrb[0].mxu0
  %613 = vdwg.mxu0
  %v614 = vmax.f32 %v492, %v584
  %v615 = vmax.f32 %v493, %v587
  %v616 = vmax.f32 %v494, %v592
  %v617 = vmax.f32 %v495, %v595
  %v618 = vmax.f32 %v496, %v600
  %v619 = vmax.f32 %v497, %v603
  %v620 = vmax.f32 %v498, %v608
  %v621 = vmax.f32 %v499, %v611
  %v622 = vld [vmem:[%s2] sm:$0x1]
  %v624 = vlaneseq
  %v625 = vshrl.u32 %v624, 7
  %v626 = vsub.s32 0, %v625
  %v627 = vrot.slane %v622, %v626
  %v629 = vadd.f32 %v614, %v627
  %v630 = vadd.f32 %v615, %v627
  %v631 = vadd.f32 %v616, %v627
  %v632 = vadd.f32 %v617, %v627
  %v633 = vadd.f32 %v618, %v627
  %v634 = vadd.f32 %v619, %v627
  %v635 = vadd.f32 %v620, %v627
  %v636 = vadd.f32 %v621, %v627
  %v637 = vmax.f32 %v629, 0.0
  %v638 = vmax.f32 %v630, 0.0
  %v639 = vmax.f32 %v631, 0.0
  %v640 = vmax.f32 %v632, 0.0
  %v641 = vmax.f32 %v633, 0.0
  %v642 = vmax.f32 %v634, 0.0
  %v643 = vmax.f32 %v635, 0.0
  %v644 = vmax.f32 %v636, 0.0
  %v645 = vpack.c.bf16 %v638, %v637
  %v646 = vpack.c.bf16 %v640, %v639
  %v647 = vpack.c.bf16 %v642, %v641
  %v648 = vpack.c.bf16 %v644, %v643
  %v653 = vunpack.c.l.b16 %v645
  %v654 = vunpack.c.h.b16 %v645
  %v655 = vunpack.c.l.b16 %v646
  %v656 = vunpack.c.h.b16 %v646
  %v657 = vunpack.c.l.b16 %v647
  %v658 = vunpack.c.h.b16 %v647
  %v659 = vunpack.c.l.b16 %v648
  %v660 = vunpack.c.h.b16 %v648
  %v661 = vpack.c.b16 %v653, %v653
  %v662 = vpack.c.b16 %v654, %v654
  %v663 = vpack.c.b16 %v655, %v655
  %v664 = vpack.c.b16 %v656, %v656
  %v665 = vpack.c.b16 %v657, %v657
  %v666 = vpack.c.b16 %v658, %v658
  %v667 = vpack.c.b16 %v659, %v659
  %v668 = vpack.c.b16 %v660, %v660
  %677 = vst [vmem:[%s3] sm:$0xf] %v661
  %678 = vst [vmem:[%s3 + $0x4] sm:$0xf] %v662
  %679 = vst [vmem:[%s3 + $0x8] sm:$0xf] %v663
  %680 = vst [vmem:[%s3 + $0xc] sm:$0xf] %v664
  %681 = vst [vmem:[%s3 + $0x10] sm:$0xf] %v665
  %682 = vst [vmem:[%s3 + $0x14] sm:$0xf] %v666
  %683 = vst [vmem:[%s3 + $0x18] sm:$0xf] %v667
  %684 = vst [vmem:[%s3 + $0x1c] sm:$0xf] %v668
  // Predicated region
  $region14: #{convnet_forward.4} parent=0 // pred_check
    _
  $region15: #{convnet_forward.4} parent=0 // pred_check_branch
    %686 = sbr.rel (0) target = $region17
  $region16: #{convnet_forward.4} parent=0 // pred_region
    _
  $region17: #{convnet_forward.4} parent=0 // pred_fallthru
    _
  // Predicated region
  $region18: #{convnet_forward.4} parent=0 // pred_check
    _
  $region19: #{convnet_forward.4} parent=0 // pred_check_branch
    %688 = sbr.rel (0) target = $region21
  $region20: #{convnet_forward.4} parent=0 // pred_region
    _
  $region21: #{convnet_forward.4} parent=0 // pred_fallthru
    _

// kernel: convnet_forward.5
$region0: #{convnet_forward.5}
  #allocation0 [shape = 'u32[]', space=smem, size = 0x4, offset = 0x4, fixed_abs, tag = 'smem constant byte address 0x4 - core index']
  #allocation1 [shape = 'u32[144,128]{1,0:T(1,128)}', space=vmem, size = 0x12000, scoped, tag = 'internal scratch']
  %s0 = inlined_call_operand.vmem [shape: bf16[8,4096], index: 0, kind: input, shape index: {}]
  %s1 = inlined_call_operand.vmem [shape: bf16[4096,128], index: 1, kind: input, shape index: {}]
  %s2 = inlined_call_operand.vmem [shape: f32[1,128], index: 2, kind: input, shape index: {}]
  %s3 = inlined_call_operand.vmem [shape: bf16[128,128], index: 3, kind: input, shape index: {}]
  %s4 = inlined_call_operand.vmem [shape: f32[1,128], index: 4, kind: input, shape index: {}]
  %s5 = inlined_call_operand.vmem [shape: bf16[128,128], index: 5, kind: input, shape index: {}]
  %s6 = inlined_call_operand.vmem [shape: f32[1,128], index: 6, kind: input, shape index: {}]
  %s7 = inlined_call_operand.vmem [shape: f32[8,128], index: 7, kind: output, shape index: {}]
  %s8 = sld [smem:[#allocation0]]
  $region38: #{convnet_forward.5} parent=0
    _
  %s10 = ssub.s32 1, %s8
  %s11 = scalar_select 0, %s10, %s8
  // Predicated region
  $region2: #{convnet_forward.5} parent=0 // pred_check
    _
  $region3: #{convnet_forward.5} parent=0 // pred_check_branch
    %13 = sbr.rel (0) target = $region5
  $region4: #{convnet_forward.5} parent=0 // pred_region
    _
  $region5: #{convnet_forward.5} parent=0 // pred_fallthru
    _
  // Predicated region
  $region6: #{convnet_forward.5} parent=0 // pred_check
    _
  $region7: #{convnet_forward.5} parent=0 // pred_check_branch
    %15 = sbr.rel (0) target = $region9
  $region8: #{convnet_forward.5} parent=0 // pred_region
    _
  $region9: #{convnet_forward.5} parent=0 // pred_fallthru
    _
  // Predicated region
  $region10: #{convnet_forward.5} parent=0 // pred_check
    _
  $region11: #{convnet_forward.5} parent=0 // pred_check_branch
    %17 = sbr.rel (0) target = $region13
  $region12: #{convnet_forward.5} parent=0 // pred_region
    _
  $region13: #{convnet_forward.5} parent=0 // pred_fallthru
    _
  // Predicated region
  $region14: #{convnet_forward.5} parent=0 // pred_check
    _
  $region15: #{convnet_forward.5} parent=0 // pred_check_branch
    %19 = sbr.rel (0) target = $region17
  $region16: #{convnet_forward.5} parent=0 // pred_region
    _
  $region17: #{convnet_forward.5} parent=0 // pred_fallthru
    _
  // Predicated region
  $region18: #{convnet_forward.5} parent=0 // pred_check
    _
  $region19: #{convnet_forward.5} parent=0 // pred_check_branch
    %21 = sbr.rel (0) target = $region21
  $region20: #{convnet_forward.5} parent=0 // pred_region
    _
  $region21: #{convnet_forward.5} parent=0 // pred_fallthru
    _
  // Predicated region
  $region22: #{convnet_forward.5} parent=0 // pred_check
    _
  $region23: #{convnet_forward.5} parent=0 // pred_check_branch
    %23 = sbr.rel (0) target = $region25
  $region24: #{convnet_forward.5} parent=0 // pred_region
    _
  $region25: #{convnet_forward.5} parent=0 // pred_fallthru
    _
  // Predicated region
  $region26: #{convnet_forward.5} parent=0 // pred_check
    _
  $region27: #{convnet_forward.5} parent=0 // pred_check_branch
    %25 = sbr.rel (0) target = $region29
  $region28: #{convnet_forward.5} parent=0 // pred_region
    _
  $region29: #{convnet_forward.5} parent=0 // pred_fallthru
    _
  %v27 = vld [vmem:[%s0] sm:$0xff]
  %v28 = vld [vmem:[%s0 + $0x8] sm:$0xff]
  %v29 = vld [vmem:[%s0 + $0x10] sm:$0xff]
  %v30 = vld [vmem:[%s0 + $0x18] sm:$0xff]
  %v31 = vld [vmem:[%s0 + $0x20] sm:$0xff]
  %v32 = vld [vmem:[%s0 + $0x28] sm:$0xff]
  %v33 = vld [vmem:[%s0 + $0x30] sm:$0xff]
  %v34 = vld [vmem:[%s0 + $0x38] sm:$0xff]
  %v35 = vld [vmem:[%s0 + $0x40] sm:$0xff]
  %v36 = vld [vmem:[%s0 + $0x48] sm:$0xff]
  %v37 = vld [vmem:[%s0 + $0x50] sm:$0xff]
  %v38 = vld [vmem:[%s0 + $0x58] sm:$0xff]
  %v39 = vld [vmem:[%s0 + $0x60] sm:$0xff]
  %v40 = vld [vmem:[%s0 + $0x68] sm:$0xff]
  %v41 = vld [vmem:[%s0 + $0x70] sm:$0xff]
  %v42 = vld [vmem:[%s0 + $0x78] sm:$0xff]
  %v43 = vld [vmem:[%s1] sm:$0xf]
  %v44 = vld [vmem:[%s1 + $0x4] sm:$0xf]
  %v45 = vld [vmem:[%s1 + $0x8] sm:$0xf]
  %v46 = vld [vmem:[%s1 + $0xc] sm:$0xf]
  %v47 = vld [vmem:[%s1 + $0x10] sm:$0xf]
  %v48 = vld [vmem:[%s1 + $0x14] sm:$0xf]
  %v49 = vld [vmem:[%s1 + $0x18] sm:$0xf]
  %v50 = vld [vmem:[%s1 + $0x1c] sm:$0xf]
  %v51 = vld [vmem:[%s1 + $0x20] sm:$0xf]
  %v52 = vld [vmem:[%s1 + $0x24] sm:$0xf]
  %v53 = vld [vmem:[%s1 + $0x28] sm:$0xf]
  %v54 = vld [vmem:[%s1 + $0x2c] sm:$0xf]
  %v55 = vld [vmem:[%s1 + $0x30] sm:$0xf]
  %v56 = vld [vmem:[%s1 + $0x34] sm:$0xf]
  %v57 = vld [vmem:[%s1 + $0x38] sm:$0xf]
  %v58 = vld [vmem:[%s1 + $0x3c] sm:$0xf]
  %v59 = vld [vmem:[%s1 + $0x40] sm:$0xf]
  %v60 = vld [vmem:[%s1 + $0x44] sm:$0xf]
  %v61 = vld [vmem:[%s1 + $0x48] sm:$0xf]
  %v62 = vld [vmem:[%s1 + $0x4c] sm:$0xf]
  %v63 = vld [vmem:[%s1 + $0x50] sm:$0xf]
  %v64 = vld [vmem:[%s1 + $0x54] sm:$0xf]
  %v65 = vld [vmem:[%s1 + $0x58] sm:$0xf]
  %v66 = vld [vmem:[%s1 + $0x5c] sm:$0xf]
  %v67 = vld [vmem:[%s1 + $0x60] sm:$0xf]
  %v68 = vld [vmem:[%s1 + $0x64] sm:$0xf]
  %v69 = vld [vmem:[%s1 + $0x68] sm:$0xf]
  %v70 = vld [vmem:[%s1 + $0x6c] sm:$0xf]
  %v71 = vld [vmem:[%s1 + $0x70] sm:$0xf]
  %v72 = vld [vmem:[%s1 + $0x74] sm:$0xf]
  %v73 = vld [vmem:[%s1 + $0x78] sm:$0xf]
  %v74 = vld [vmem:[%s1 + $0x7c] sm:$0xf]
  %v75 = vld [vmem:[%s1 + $0x80] sm:$0xf]
  %v76 = vld [vmem:[%s1 + $0x84] sm:$0xf]
  %v77 = vld [vmem:[%s1 + $0x88] sm:$0xf]
  %v78 = vld [vmem:[%s1 + $0x8c] sm:$0xf]
  %v79 = vld [vmem:[%s1 + $0x90] sm:$0xf]
  %v80 = vld [vmem:[%s1 + $0x94] sm:$0xf]
  %v81 = vld [vmem:[%s1 + $0x98] sm:$0xf]
  %v82 = vld [vmem:[%s1 + $0x9c] sm:$0xf]
  %v83 = vld [vmem:[%s1 + $0xa0] sm:$0xf]
  %v84 = vld [vmem:[%s1 + $0xa4] sm:$0xf]
  %v85 = vld [vmem:[%s1 + $0xa8] sm:$0xf]
  %v86 = vld [vmem:[%s1 + $0xac] sm:$0xf]
  %v87 = vld [vmem:[%s1 + $0xb0] sm:$0xf]
  %v88 = vld [vmem:[%s1 + $0xb4] sm:$0xf]
  %v89 = vld [vmem:[%s1 + $0xb8] sm:$0xf]
  %v90 = vld [vmem:[%s1 + $0xbc] sm:$0xf]
  %v91 = vld [vmem:[%s1 + $0xc0] sm:$0xf]
  %v92 = vld [vmem:[%s1 + $0xc4] sm:$0xf]
  %v93 = vld [vmem:[%s1 + $0xc8] sm:$0xf]
  %v94 = vld [vmem:[%s1 + $0xcc] sm:$0xf]
  %v95 = vld [vmem:[%s1 + $0xd0] sm:$0xf]
  %v96 = vld [vmem:[%s1 + $0xd4] sm:$0xf]
  %v97 = vld [vmem:[%s1 + $0xd8] sm:$0xf]
  %v98 = vld [vmem:[%s1 + $0xdc] sm:$0xf]
  %v99 = vld [vmem:[%s1 + $0xe0] sm:$0xf]
  %v100 = vld [vmem:[%s1 + $0xe4] sm:$0xf]
  %v101 = vld [vmem:[%s1 + $0xe8] sm:$0xf]
  %v102 = vld [vmem:[%s1 + $0xec] sm:$0xf]
  %v103 = vld [vmem:[%s1 + $0xf0] sm:$0xf]
  %v104 = vld [vmem:[%s1 + $0xf4] sm:$0xf]
  %v105 = vld [vmem:[%s1 + $0xf8] sm:$0xf]
  %v106 = vld [vmem:[%s1 + $0xfc] sm:$0xf]
  %v107 = vld [vmem:[%s1 + $0x100] sm:$0xf]
  %v108 = vld [vmem:[%s1 + $0x104] sm:$0xf]
  %v109 = vld [vmem:[%s1 + $0x108] sm:$0xf]
  %v110 = vld [vmem:[%s1 + $0x10c] sm:$0xf]
  %v111 = vld [vmem:[%s1 + $0x110] sm:$0xf]
  %v112 = vld [vmem:[%s1 + $0x114] sm:$0xf]
  %v113 = vld [vmem:[%s1 + $0x118] sm:$0xf]
  %v114 = vld [vmem:[%s1 + $0x11c] sm:$0xf]
  %v115 = vld [vmem:[%s1 + $0x120] sm:$0xf]
  %v116 = vld [vmem:[%s1 + $0x124] sm:$0xf]
  %v117 = vld [vmem:[%s1 + $0x128] sm:$0xf]
  %v118 = vld [vmem:[%s1 + $0x12c] sm:$0xf]
  %v119 = vld [vmem:[%s1 + $0x130] sm:$0xf]
  %v120 = vld [vmem:[%s1 + $0x134] sm:$0xf]
  %v121 = vld [vmem:[%s1 + $0x138] sm:$0xf]
  %v122 = vld [vmem:[%s1 + $0x13c] sm:$0xf]
  %v123 = vld [vmem:[%s1 + $0x140] sm:$0xf]
  %v124 = vld [vmem:[%s1 + $0x144] sm:$0xf]
  %v125 = vld [vmem:[%s1 + $0x148] sm:$0xf]
  %v126 = vld [vmem:[%s1 + $0x14c] sm:$0xf]
  %v127 = vld [vmem:[%s1 + $0x150] sm:$0xf]
  %v128 = vld [vmem:[%s1 + $0x154] sm:$0xf]
  %v129 = vld [vmem:[%s1 + $0x158] sm:$0xf]
  %v130 = vld [vmem:[%s1 + $0x15c] sm:$0xf]
  %v131 = vld [vmem:[%s1 + $0x160] sm:$0xf]
  %v132 = vld [vmem:[%s1 + $0x164] sm:$0xf]
  %v133 = vld [vmem:[%s1 + $0x168] sm:$0xf]
  %v134 = vld [vmem:[%s1 + $0x16c] sm:$0xf]
  %v135 = vld [vmem:[%s1 + $0x170] sm:$0xf]
  %v136 = vld [vmem:[%s1 + $0x174] sm:$0xf]
  %v137 = vld [vmem:[%s1 + $0x178] sm:$0xf]
  %v138 = vld [vmem:[%s1 + $0x17c] sm:$0xf]
  %v139 = vld [vmem:[%s1 + $0x180] sm:$0xf]
  %v140 = vld [vmem:[%s1 + $0x184] sm:$0xf]
  %v141 = vld [vmem:[%s1 + $0x188] sm:$0xf]
  %v142 = vld [vmem:[%s1 + $0x18c] sm:$0xf]
  %v143 = vld [vmem:[%s1 + $0x190] sm:$0xf]
  %v144 = vld [vmem:[%s1 + $0x194] sm:$0xf]
  %v145 = vld [vmem:[%s1 + $0x198] sm:$0xf]
  %v146 = vld [vmem:[%s1 + $0x19c] sm:$0xf]
  %v147 = vld [vmem:[%s1 + $0x1a0] sm:$0xf]
  %v148 = vld [vmem:[%s1 + $0x1a4] sm:$0xf]
  %v149 = vld [vmem:[%s1 + $0x1a8] sm:$0xf]
  %v150 = vld [vmem:[%s1 + $0x1ac] sm:$0xf]
  %v151 = vld [vmem:[%s1 + $0x1b0] sm:$0xf]
  %v152 = vld [vmem:[%s1 + $0x1b4] sm:$0xf]
  %v153 = vld [vmem:[%s1 + $0x1b8] sm:$0xf]
  %v154 = vld [vmem:[%s1 + $0x1bc] sm:$0xf]
  %v155 = vld [vmem:[%s1 + $0x1c0] sm:$0xf]
  %v156 = vld [vmem:[%s1 + $0x1c4] sm:$0xf]
  %v157 = vld [vmem:[%s1 + $0x1c8] sm:$0xf]
  %v158 = vld [vmem:[%s1 + $0x1cc] sm:$0xf]
  %v159 = vld [vmem:[%s1 + $0x1d0] sm:$0xf]
  %v160 = vld [vmem:[%s1 + $0x1d4] sm:$0xf]
  %v161 = vld [vmem:[%s1 + $0x1d8] sm:$0xf]
  %v162 = vld [vmem:[%s1 + $0x1dc] sm:$0xf]
  %v163 = vld [vmem:[%s1 + $0x1e0] sm:$0xf]
  %v164 = vld [vmem:[%s1 + $0x1e4] sm:$0xf]
  %v165 = vld [vmem:[%s1 + $0x1e8] sm:$0xf]
  %v166 = vld [vmem:[%s1 + $0x1ec] sm:$0xf]
  %v167 = vld [vmem:[%s1 + $0x1f0] sm:$0xf]
  %v168 = vld [vmem:[%s1 + $0x1f4] sm:$0xf]
  %v169 = vld [vmem:[%s1 + $0x1f8] sm:$0xf]
  %v170 = vld [vmem:[%s1 + $0x1fc] sm:$0xf]
  %v171 = vld [vmem:[%s1 + $0x200] sm:$0xf]
  %v172 = vld [vmem:[%s1 + $0x204] sm:$0xf]
  %v173 = vld [vmem:[%s1 + $0x208] sm:$0xf]
  %v174 = vld [vmem:[%s1 + $0x20c] sm:$0xf]
  %v175 = vld [vmem:[%s1 + $0x210] sm:$0xf]
  %v176 = vld [vmem:[%s1 + $0x214] sm:$0xf]
  %v177 = vld [vmem:[%s1 + $0x218] sm:$0xf]
  %v178 = vld [vmem:[%s1 + $0x21c] sm:$0xf]
  %v179 = vld [vmem:[%s1 + $0x220] sm:$0xf]
  %v180 = vld [vmem:[%s1 + $0x224] sm:$0xf]
  %v181 = vld [vmem:[%s1 + $0x228] sm:$0xf]
  %v182 = vld [vmem:[%s1 + $0x22c] sm:$0xf]
  %v183 = vld [vmem:[%s1 + $0x230] sm:$0xf]
  %v184 = vld [vmem:[%s1 + $0x234] sm:$0xf]
  %v185 = vld [vmem:[%s1 + $0x238] sm:$0xf]
  %v186 = vld [vmem:[%s1 + $0x23c] sm:$0xf]
  %v187 = vld [vmem:[%s1 + $0x240] sm:$0xf]
  %v188 = vld [vmem:[%s1 + $0x244] sm:$0xf]
  %v189 = vld [vmem:[%s1 + $0x248] sm:$0xf]
  %v190 = vld [vmem:[%s1 + $0x24c] sm:$0xf]
  %v191 = vld [vmem:[%s1 + $0x250] sm:$0xf]
  %v192 = vld [vmem:[%s1 + $0x254] sm:$0xf]
  %v193 = vld [vmem:[%s1 + $0x258] sm:$0xf]
  %v194 = vld [vmem:[%s1 + $0x25c] sm:$0xf]
  %v195 = vld [vmem:[%s1 + $0x260] sm:$0xf]
  %v196 = vld [vmem:[%s1 + $0x264] sm:$0xf]
  %v197 = vld [vmem:[%s1 + $0x268] sm:$0xf]
  %v198 = vld [vmem:[%s1 + $0x26c] sm:$0xf]
  %v199 = vld [vmem:[%s1 + $0x270] sm:$0xf]
  %v200 = vld [vmem:[%s1 + $0x274] sm:$0xf]
  %v201 = vld [vmem:[%s1 + $0x278] sm:$0xf]
  %v202 = vld [vmem:[%s1 + $0x27c] sm:$0xf]
  %v203 = vld [vmem:[%s1 + $0x280] sm:$0xf]
  %v204 = vld [vmem:[%s1 + $0x284] sm:$0xf]
  %v205 = vld [vmem:[%s1 + $0x288] sm:$0xf]
  %v206 = vld [vmem:[%s1 + $0x28c] sm:$0xf]
  %v207 = vld [vmem:[%s1 + $0x290] sm:$0xf]
  %v208 = vld [vmem:[%s1 + $0x294] sm:$0xf]
  %v209 = vld [vmem:[%s1 + $0x298] sm:$0xf]
  %v210 = vld [vmem:[%s1 + $0x29c] sm:$0xf]
  %v211 = vld [vmem:[%s1 + $0x2a0] sm:$0xf]
  %v212 = vld [vmem:[%s1 + $0x2a4] sm:$0xf]
  %v213 = vld [vmem:[%s1 + $0x2a8] sm:$0xf]
  %v214 = vld [vmem:[%s1 + $0x2ac] sm:$0xf]
  %v215 = vld [vmem:[%s1 + $0x2b0] sm:$0xf]
  %v216 = vld [vmem:[%s1 + $0x2b4] sm:$0xf]
  %v217 = vld [vmem:[%s1 + $0x2b8] sm:$0xf]
  %v218 = vld [vmem:[%s1 + $0x2bc] sm:$0xf]
  %v219 = vld [vmem:[%s1 + $0x2c0] sm:$0xf]
  %v220 = vld [vmem:[%s1 + $0x2c4] sm:$0xf]
  %v221 = vld [vmem:[%s1 + $0x2c8] sm:$0xf]
  %v222 = vld [vmem:[%s1 + $0x2cc] sm:$0xf]
  %v223 = vld [vmem:[%s1 + $0x2d0] sm:$0xf]
  %v224 = vld [vmem:[%s1 + $0x2d4] sm:$0xf]
  %v225 = vld [vmem:[%s1 + $0x2d8] sm:$0xf]
  %v226 = vld [vmem:[%s1 + $0x2dc] sm:$0xf]
  %v227 = vld [vmem:[%s1 + $0x2e0] sm:$0xf]
  %v228 = vld [vmem:[%s1 + $0x2e4] sm:$0xf]
  %v229 = vld [vmem:[%s1 + $0x2e8] sm:$0xf]
  %v230 = vld [vmem:[%s1 + $0x2ec] sm:$0xf]
  %v231 = vld [vmem:[%s1 + $0x2f0] sm:$0xf]
  %v232 = vld [vmem:[%s1 + $0x2f4] sm:$0xf]
  %v233 = vld [vmem:[%s1 + $0x2f8] sm:$0xf]
  %v234 = vld [vmem:[%s1 + $0x2fc] sm:$0xf]
  %v235 = vld [vmem:[%s1 + $0x300] sm:$0xf]
  %v236 = vld [vmem:[%s1 + $0x304] sm:$0xf]
  %v237 = vld [vmem:[%s1 + $0x308] sm:$0xf]
  %v238 = vld [vmem:[%s1 + $0x30c] sm:$0xf]
  %v239 = vld [vmem:[%s1 + $0x310] sm:$0xf]
  %v240 = vld [vmem:[%s1 + $0x314] sm:$0xf]
  %v241 = vld [vmem:[%s1 + $0x318] sm:$0xf]
  %v242 = vld [vmem:[%s1 + $0x31c] sm:$0xf]
  %v243 = vld [vmem:[%s1 + $0x320] sm:$0xf]
  %v244 = vld [vmem:[%s1 + $0x324] sm:$0xf]
  %v245 = vld [vmem:[%s1 + $0x328] sm:$0xf]
  %v246 = vld [vmem:[%s1 + $0x32c] sm:$0xf]
  %v247 = vld [vmem:[%s1 + $0x330] sm:$0xf]
  %v248 = vld [vmem:[%s1 + $0x334] sm:$0xf]
  %v249 = vld [vmem:[%s1 + $0x338] sm:$0xf]
  %v250 = vld [vmem:[%s1 + $0x33c] sm:$0xf]
  %v251 = vld [vmem:[%s1 + $0x340] sm:$0xf]
  %v252 = vld [vmem:[%s1 + $0x344] sm:$0xf]
  %v253 = vld [vmem:[%s1 + $0x348] sm:$0xf]
  %v254 = vld [vmem:[%s1 + $0x34c] sm:$0xf]
  %v255 = vld [vmem:[%s1 + $0x350] sm:$0xf]
  %v256 = vld [vmem:[%s1 + $0x354] sm:$0xf]
  %v257 = vld [vmem:[%s1 + $0x358] sm:$0xf]
  %v258 = vld [vmem:[%s1 + $0x35c] sm:$0xf]
  %v259 = vld [vmem:[%s1 + $0x360] sm:$0xf]
  %v260 = vld [vmem:[%s1 + $0x364] sm:$0xf]
  %v261 = vld [vmem:[%s1 + $0x368] sm:$0xf]
  %v262 = vld [vmem:[%s1 + $0x36c] sm:$0xf]
  %v263 = vld [vmem:[%s1 + $0x370] sm:$0xf]
  %v264 = vld [vmem:[%s1 + $0x374] sm:$0xf]
  %v265 = vld [vmem:[%s1 + $0x378] sm:$0xf]
  %v266 = vld [vmem:[%s1 + $0x37c] sm:$0xf]
  %v267 = vld [vmem:[%s1 + $0x380] sm:$0xf]
  %v268 = vld [vmem:[%s1 + $0x384] sm:$0xf]
  %v269 = vld [vmem:[%s1 + $0x388] sm:$0xf]
  %v270 = vld [vmem:[%s1 + $0x38c] sm:$0xf]
  %v271 = vld [vmem:[%s1 + $0x390] sm:$0xf]
  %v272 = vld [vmem:[%s1 + $0x394] sm:$0xf]
  %v273 = vld [vmem:[%s1 + $0x398] sm:$0xf]
  %v274 = vld [vmem:[%s1 + $0x39c] sm:$0xf]
  %v275 = vld [vmem:[%s1 + $0x3a0] sm:$0xf]
  %v276 = vld [vmem:[%s1 + $0x3a4] sm:$0xf]
  %v277 = vld [vmem:[%s1 + $0x3a8] sm:$0xf]
  %v278 = vld [vmem:[%s1 + $0x3ac] sm:$0xf]
  %v279 = vld [vmem:[%s1 + $0x3b0] sm:$0xf]
  %v280 = vld [vmem:[%s1 + $0x3b4] sm:$0xf]
  %v281 = vld [vmem:[%s1 + $0x3b8] sm:$0xf]
  %v282 = vld [vmem:[%s1 + $0x3bc] sm:$0xf]
  %v283 = vld [vmem:[%s1 + $0x3c0] sm:$0xf]
  %v284 = vld [vmem:[%s1 + $0x3c4] sm:$0xf]
  %v285 = vld [vmem:[%s1 + $0x3c8] sm:$0xf]
  %v286 = vld [vmem:[%s1 + $0x3cc] sm:$0xf]
  %v287 = vld [vmem:[%s1 + $0x3d0] sm:$0xf]
  %v288 = vld [vmem:[%s1 + $0x3d4] sm:$0xf]
  %v289 = vld [vmem:[%s1 + $0x3d8] sm:$0xf]
  %v290 = vld [vmem:[%s1 + $0x3dc] sm:$0xf]
  %v291 = vld [vmem:[%s1 + $0x3e0] sm:$0xf]
  %v292 = vld [vmem:[%s1 + $0x3e4] sm:$0xf]
  %v293 = vld [vmem:[%s1 + $0x3e8] sm:$0xf]
  %v294 = vld [vmem:[%s1 + $0x3ec] sm:$0xf]
  %v295 = vld [vmem:[%s1 + $0x3f0] sm:$0xf]
  %v296 = vld [vmem:[%s1 + $0x3f4] sm:$0xf]
  %v297 = vld [vmem:[%s1 + $0x3f8] sm:$0xf]
  %v298 = vld [vmem:[%s1 + $0x3fc] sm:$0xf]
  %v299 = vld [vmem:[%s1 + $0x400] sm:$0xf]
  %v300 = vld [vmem:[%s1 + $0x404] sm:$0xf]
  %v301 = vld [vmem:[%s1 + $0x408] sm:$0xf]
  %v302 = vld [vmem:[%s1 + $0x40c] sm:$0xf]
  %v303 = vld [vmem:[%s1 + $0x410] sm:$0xf]
  %v304 = vld [vmem:[%s1 + $0x414] sm:$0xf]
  %v305 = vld [vmem:[%s1 + $0x418] sm:$0xf]
  %v306 = vld [vmem:[%s1 + $0x41c] sm:$0xf]
  %v307 = vld [vmem:[%s1 + $0x420] sm:$0xf]
  %v308 = vld [vmem:[%s1 + $0x424] sm:$0xf]
  %v309 = vld [vmem:[%s1 + $0x428] sm:$0xf]
  %v310 = vld [vmem:[%s1 + $0x42c] sm:$0xf]
  %v311 = vld [vmem:[%s1 + $0x430] sm:$0xf]
  %v312 = vld [vmem:[%s1 + $0x434] sm:$0xf]
  %v313 = vld [vmem:[%s1 + $0x438] sm:$0xf]
  %v314 = vld [vmem:[%s1 + $0x43c] sm:$0xf]
  %v315 = vld [vmem:[%s1 + $0x440] sm:$0xf]
  %v316 = vld [vmem:[%s1 + $0x444] sm:$0xf]
  %v317 = vld [vmem:[%s1 + $0x448] sm:$0xf]
  %v318 = vld [vmem:[%s1 + $0x44c] sm:$0xf]
  %v319 = vld [vmem:[%s1 + $0x450] sm:$0xf]
  %v320 = vld [vmem:[%s1 + $0x454] sm:$0xf]
  %v321 = vld [vmem:[%s1 + $0x458] sm:$0xf]
  %v322 = vld [vmem:[%s1 + $0x45c] sm:$0xf]
  %v323 = vld [vmem:[%s1 + $0x460] sm:$0xf]
  %v324 = vld [vmem:[%s1 + $0x464] sm:$0xf]
  %v325 = vld [vmem:[%s1 + $0x468] sm:$0xf]
  %v326 = vld [vmem:[%s1 + $0x46c] sm:$0xf]
  %v327 = vld [vmem:[%s1 + $0x470] sm:$0xf]
  %v328 = vld [vmem:[%s1 + $0x474] sm:$0xf]
  %v329 = vld [vmem:[%s1 + $0x478] sm:$0xf]
  %v330 = vld [vmem:[%s1 + $0x47c] sm:$0xf]
  %v331 = vld [vmem:[%s1 + $0x480] sm:$0xf]
  %v332 = vld [vmem:[%s1 + $0x484] sm:$0xf]
  %v333 = vld [vmem:[%s1 + $0x488] sm:$0xf]
  %v334 = vld [vmem:[%s1 + $0x48c] sm:$0xf]
  %v335 = vld [vmem:[%s1 + $0x490] sm:$0xf]
  %v336 = vld [vmem:[%s1 + $0x494] sm:$0xf]
  %v337 = vld [vmem:[%s1 + $0x498] sm:$0xf]
  %v338 = vld [vmem:[%s1 + $0x49c] sm:$0xf]
  %v339 = vld [vmem:[%s1 + $0x4a0] sm:$0xf]
  %v340 = vld [vmem:[%s1 + $0x4a4] sm:$0xf]
  %v341 = vld [vmem:[%s1 + $0x4a8] sm:$0xf]
  %v342 = vld [vmem:[%s1 + $0x4ac] sm:$0xf]
  %v343 = vld [vmem:[%s1 + $0x4b0] sm:$0xf]
  %v344 = vld [vmem:[%s1 + $0x4b4] sm:$0xf]
  %v345 = vld [vmem:[%s1 + $0x4b8] sm:$0xf]
  %v346 = vld [vmem:[%s1 + $0x4bc] sm:$0xf]
  %v347 = vld [vmem:[%s1 + $0x4c0] sm:$0xf]
  %v348 = vld [vmem:[%s1 + $0x4c4] sm:$0xf]
  %v349 = vld [vmem:[%s1 + $0x4c8] sm:$0xf]
  %v350 = vld [vmem:[%s1 + $0x4cc] sm:$0xf]
  %v351 = vld [vmem:[%s1 + $0x4d0] sm:$0xf]
  %v352 = vld [vmem:[%s1 + $0x4d4] sm:$0xf]
  %v353 = vld [vmem:[%s1 + $0x4d8] sm:$0xf]
  %v354 = vld [vmem:[%s1 + $0x4dc] sm:$0xf]
  %v355 = vld [vmem:[%s1 + $0x4e0] sm:$0xf]
  %v356 = vld [vmem:[%s1 + $0x4e4] sm:$0xf]
  %v357 = vld [vmem:[%s1 + $0x4e8] sm:$0xf]
  %v358 = vld [vmem:[%s1 + $0x4ec] sm:$0xf]
  %v359 = vld [vmem:[%s1 + $0x4f0] sm:$0xf]
  %v360 = vld [vmem:[%s1 + $0x4f4] sm:$0xf]
  %v361 = vld [vmem:[%s1 + $0x4f8] sm:$0xf]
  %v362 = vld [vmem:[%s1 + $0x4fc] sm:$0xf]
  %v363 = vld [vmem:[%s1 + $0x500] sm:$0xf]
  %v364 = vld [vmem:[%s1 + $0x504] sm:$0xf]
  %v365 = vld [vmem:[%s1 + $0x508] sm:$0xf]
  %v366 = vld [vmem:[%s1 + $0x50c] sm:$0xf]
  %v367 = vld [vmem:[%s1 + $0x510] sm:$0xf]
  %v368 = vld [vmem:[%s1 + $0x514] sm:$0xf]
  %v369 = vld [vmem:[%s1 + $0x518] sm:$0xf]
  %v370 = vld [vmem:[%s1 + $0x51c] sm:$0xf]
  %v371 = vld [vmem:[%s1 + $0x520] sm:$0xf]
  %v372 = vld [vmem:[%s1 + $0x524] sm:$0xf]
  %v373 = vld [vmem:[%s1 + $0x528] sm:$0xf]
  %v374 = vld [vmem:[%s1 + $0x52c] sm:$0xf]
  %v375 = vld [vmem:[%s1 + $0x530] sm:$0xf]
  %v376 = vld [vmem:[%s1 + $0x534] sm:$0xf]
  %v377 = vld [vmem:[%s1 + $0x538] sm:$0xf]
  %v378 = vld [vmem:[%s1 + $0x53c] sm:$0xf]
  %v379 = vld [vmem:[%s1 + $0x540] sm:$0xf]
  %v380 = vld [vmem:[%s1 + $0x544] sm:$0xf]
  %v381 = vld [vmem:[%s1 + $0x548] sm:$0xf]
  %v382 = vld [vmem:[%s1 + $0x54c] sm:$0xf]
  %v383 = vld [vmem:[%s1 + $0x550] sm:$0xf]
  %v384 = vld [vmem:[%s1 + $0x554] sm:$0xf]
  %v385 = vld [vmem:[%s1 + $0x558] sm:$0xf]
  %v386 = vld [vmem:[%s1 + $0x55c] sm:$0xf]
  %v387 = vld [vmem:[%s1 + $0x560] sm:$0xf]
  %v388 = vld [vmem:[%s1 + $0x564] sm:$0xf]
  %v389 = vld [vmem:[%s1 + $0x568] sm:$0xf]
  %v390 = vld [vmem:[%s1 + $0x56c] sm:$0xf]
  %v391 = vld [vmem:[%s1 + $0x570] sm:$0xf]
  %v392 = vld [vmem:[%s1 + $0x574] sm:$0xf]
  %v393 = vld [vmem:[%s1 + $0x578] sm:$0xf]
  %v394 = vld [vmem:[%s1 + $0x57c] sm:$0xf]
  %v395 = vld [vmem:[%s1 + $0x580] sm:$0xf]
  %v396 = vld [vmem:[%s1 + $0x584] sm:$0xf]
  %v397 = vld [vmem:[%s1 + $0x588] sm:$0xf]
  %v398 = vld [vmem:[%s1 + $0x58c] sm:$0xf]
  %v399 = vld [vmem:[%s1 + $0x590] sm:$0xf]
  %v400 = vld [vmem:[%s1 + $0x594] sm:$0xf]
  %v401 = vld [vmem:[%s1 + $0x598] sm:$0xf]
  %v402 = vld [vmem:[%s1 + $0x59c] sm:$0xf]
  %v403 = vld [vmem:[%s1 + $0x5a0] sm:$0xf]
  %v404 = vld [vmem:[%s1 + $0x5a4] sm:$0xf]
  %v405 = vld [vmem:[%s1 + $0x5a8] sm:$0xf]
  %v406 = vld [vmem:[%s1 + $0x5ac] sm:$0xf]
  %v407 = vld [vmem:[%s1 + $0x5b0] sm:$0xf]
  %v408 = vld [vmem:[%s1 + $0x5b4] sm:$0xf]
  %v409 = vld [vmem:[%s1 + $0x5b8] sm:$0xf]
  %v410 = vld [vmem:[%s1 + $0x5bc] sm:$0xf]
  %v411 = vld [vmem:[%s1 + $0x5c0] sm:$0xf]
  %v412 = vld [vmem:[%s1 + $0x5c4] sm:$0xf]
  %v413 = vld [vmem:[%s1 + $0x5c8] sm:$0xf]
  %v414 = vld [vmem:[%s1 + $0x5cc] sm:$0xf]
  %v415 = vld [vmem:[%s1 + $0x5d0] sm:$0xf]
  %v416 = vld [vmem:[%s1 + $0x5d4] sm:$0xf]
  %v417 = vld [vmem:[%s1 + $0x5d8] sm:$0xf]
  %v418 = vld [vmem:[%s1 + $0x5dc] sm:$0xf]
  %v419 = vld [vmem:[%s1 + $0x5e0] sm:$0xf]
  %v420 = vld [vmem:[%s1 + $0x5e4] sm:$0xf]
  %v421 = vld [vmem:[%s1 + $0x5e8] sm:$0xf]
  %v422 = vld [vmem:[%s1 + $0x5ec] sm:$0xf]
  %v423 = vld [vmem:[%s1 + $0x5f0] sm:$0xf]
  %v424 = vld [vmem:[%s1 + $0x5f4] sm:$0xf]
  %v425 = vld [vmem:[%s1 + $0x5f8] sm:$0xf]
  %v426 = vld [vmem:[%s1 + $0x5fc] sm:$0xf]
  %v427 = vld [vmem:[%s1 + $0x600] sm:$0xf]
  %v428 = vld [vmem:[%s1 + $0x604] sm:$0xf]
  %v429 = vld [vmem:[%s1 + $0x608] sm:$0xf]
  %v430 = vld [vmem:[%s1 + $0x60c] sm:$0xf]
  %v431 = vld [vmem:[%s1 + $0x610] sm:$0xf]
  %v432 = vld [vmem:[%s1 + $0x614] sm:$0xf]
  %v433 = vld [vmem:[%s1 + $0x618] sm:$0xf]
  %v434 = vld [vmem:[%s1 + $0x61c] sm:$0xf]
  %v435 = vld [vmem:[%s1 + $0x620] sm:$0xf]
  %v436 = vld [vmem:[%s1 + $0x624] sm:$0xf]
  %v437 = vld [vmem:[%s1 + $0x628] sm:$0xf]
  %v438 = vld [vmem:[%s1 + $0x62c] sm:$0xf]
  %v439 = vld [vmem:[%s1 + $0x630] sm:$0xf]
  %v440 = vld [vmem:[%s1 + $0x634] sm:$0xf]
  %v441 = vld [vmem:[%s1 + $0x638] sm:$0xf]
  %v442 = vld [vmem:[%s1 + $0x63c] sm:$0xf]
  %v443 = vld [vmem:[%s1 + $0x640] sm:$0xf]
  %v444 = vld [vmem:[%s1 + $0x644] sm:$0xf]
  %v445 = vld [vmem:[%s1 + $0x648] sm:$0xf]
  %v446 = vld [vmem:[%s1 + $0x64c] sm:$0xf]
  %v447 = vld [vmem:[%s1 + $0x650] sm:$0xf]
  %v448 = vld [vmem:[%s1 + $0x654] sm:$0xf]
  %v449 = vld [vmem:[%s1 + $0x658] sm:$0xf]
  %v450 = vld [vmem:[%s1 + $0x65c] sm:$0xf]
  %v451 = vld [vmem:[%s1 + $0x660] sm:$0xf]
  %v452 = vld [vmem:[%s1 + $0x664] sm:$0xf]
  %v453 = vld [vmem:[%s1 + $0x668] sm:$0xf]
  %v454 = vld [vmem:[%s1 + $0x66c] sm:$0xf]
  %v455 = vld [vmem:[%s1 + $0x670] sm:$0xf]
  %v456 = vld [vmem:[%s1 + $0x674] sm:$0xf]
  %v457 = vld [vmem:[%s1 + $0x678] sm:$0xf]
  %v458 = vld [vmem:[%s1 + $0x67c] sm:$0xf]
  %v459 = vld [vmem:[%s1 + $0x680] sm:$0xf]
  %v460 = vld [vmem:[%s1 + $0x684] sm:$0xf]
  %v461 = vld [vmem:[%s1 + $0x688] sm:$0xf]
  %v462 = vld [vmem:[%s1 + $0x68c] sm:$0xf]
  %v463 = vld [vmem:[%s1 + $0x690] sm:$0xf]
  %v464 = vld [vmem:[%s1 + $0x694] sm:$0xf]
  %v465 = vld [vmem:[%s1 + $0x698] sm:$0xf]
  %v466 = vld [vmem:[%s1 + $0x69c] sm:$0xf]
  %v467 = vld [vmem:[%s1 + $0x6a0] sm:$0xf]
  %v468 = vld [vmem:[%s1 + $0x6a4] sm:$0xf]
  %v469 = vld [vmem:[%s1 + $0x6a8] sm:$0xf]
  %v470 = vld [vmem:[%s1 + $0x6ac] sm:$0xf]
  %v471 = vld [vmem:[%s1 + $0x6b0] sm:$0xf]
  %v472 = vld [vmem:[%s1 + $0x6b4] sm:$0xf]
  %v473 = vld [vmem:[%s1 + $0x6b8] sm:$0xf]
  %v474 = vld [vmem:[%s1 + $0x6bc] sm:$0xf]
  %v475 = vld [vmem:[%s1 + $0x6c0] sm:$0xf]
  %v476 = vld [vmem:[%s1 + $0x6c4] sm:$0xf]
  %v477 = vld [vmem:[%s1 + $0x6c8] sm:$0xf]
  %v478 = vld [vmem:[%s1 + $0x6cc] sm:$0xf]
  %v479 = vld [vmem:[%s1 + $0x6d0] sm:$0xf]
  %v480 = vld [vmem:[%s1 + $0x6d4] sm:$0xf]
  %v481 = vld [vmem:[%s1 + $0x6d8] sm:$0xf]
  %v482 = vld [vmem:[%s1 + $0x6dc] sm:$0xf]
  %v483 = vld [vmem:[%s1 + $0x6e0] sm:$0xf]
  %v484 = vld [vmem:[%s1 + $0x6e4] sm:$0xf]
  %v485 = vld [vmem:[%s1 + $0x6e8] sm:$0xf]
  %v486 = vld [vmem:[%s1 + $0x6ec] sm:$0xf]
  %v487 = vld [vmem:[%s1 + $0x6f0] sm:$0xf]
  %v488 = vld [vmem:[%s1 + $0x6f4] sm:$0xf]
  %v489 = vld [vmem:[%s1 + $0x6f8] sm:$0xf]
  %v490 = vld [vmem:[%s1 + $0x6fc] sm:$0xf]
  %v491 = vld [vmem:[%s1 + $0x700] sm:$0xf]
  %v492 = vld [vmem:[%s1 + $0x704] sm:$0xf]
  %v493 = vld [vmem:[%s1 + $0x708] sm:$0xf]
  %v494 = vld [vmem:[%s1 + $0x70c] sm:$0xf]
  %v495 = vld [vmem:[%s1 + $0x710] sm:$0xf]
  %v496 = vld [vmem:[%s1 + $0x714] sm:$0xf]
  %v497 = vld [vmem:[%s1 + $0x718] sm:$0xf]
  %v498 = vld [vmem:[%s1 + $0x71c] sm:$0xf]
  %v499 = vld [vmem:[%s1 + $0x720] sm:$0xf]
  %v500 = vld [vmem:[%s1 + $0x724] sm:$0xf]
  %v501 = vld [vmem:[%s1 + $0x728] sm:$0xf]
  %v502 = vld [vmem:[%s1 + $0x72c] sm:$0xf]
  %v503 = vld [vmem:[%s1 + $0x730] sm:$0xf]
  %v504 = vld [vmem:[%s1 + $0x734] sm:$0xf]
  %v505 = vld [vmem:[%s1 + $0x738] sm:$0xf]
  %v506 = vld [vmem:[%s1 + $0x73c] sm:$0xf]
  %v507 = vld [vmem:[%s1 + $0x740] sm:$0xf]
  %v508 = vld [vmem:[%s1 + $0x744] sm:$0xf]
  %v509 = vld [vmem:[%s1 + $0x748] sm:$0xf]
  %v510 = vld [vmem:[%s1 + $0x74c] sm:$0xf]
  %v511 = vld [vmem:[%s1 + $0x750] sm:$0xf]
  %v512 = vld [vmem:[%s1 + $0x754] sm:$0xf]
  %v513 = vld [vmem:[%s1 + $0x758] sm:$0xf]
  %v514 = vld [vmem:[%s1 + $0x75c] sm:$0xf]
  %v515 = vld [vmem:[%s1 + $0x760] sm:$0xf]
  %v516 = vld [vmem:[%s1 + $0x764] sm:$0xf]
  %v517 = vld [vmem:[%s1 + $0x768] sm:$0xf]
  %v518 = vld [vmem:[%s1 + $0x76c] sm:$0xf]
  %v519 = vld [vmem:[%s1 + $0x770] sm:$0xf]
  %v520 = vld [vmem:[%s1 + $0x774] sm:$0xf]
  %v521 = vld [vmem:[%s1 + $0x778] sm:$0xf]
  %v522 = vld [vmem:[%s1 + $0x77c] sm:$0xf]
  %v523 = vld [vmem:[%s1 + $0x780] sm:$0xf]
  %v524 = vld [vmem:[%s1 + $0x784] sm:$0xf]
  %v525 = vld [vmem:[%s1 + $0x788] sm:$0xf]
  %v526 = vld [vmem:[%s1 + $0x78c] sm:$0xf]
  %v527 = vld [vmem:[%s1 + $0x790] sm:$0xf]
  %v528 = vld [vmem:[%s1 + $0x794] sm:$0xf]
  %v529 = vld [vmem:[%s1 + $0x798] sm:$0xf]
  %v530 = vld [vmem:[%s1 + $0x79c] sm:$0xf]
  %v531 = vld [vmem:[%s1 + $0x7a0] sm:$0xf]
  %v532 = vld [vmem:[%s1 + $0x7a4] sm:$0xf]
  %v533 = vld [vmem:[%s1 + $0x7a8] sm:$0xf]
  %v534 = vld [vmem:[%s1 + $0x7ac] sm:$0xf]
  %v535 = vld [vmem:[%s1 + $0x7b0] sm:$0xf]
  %v536 = vld [vmem:[%s1 + $0x7b4] sm:$0xf]
  %v537 = vld [vmem:[%s1 + $0x7b8] sm:$0xf]
  %v538 = vld [vmem:[%s1 + $0x7bc] sm:$0xf]
  %v539 = vld [vmem:[%s1 + $0x7c0] sm:$0xf]
  %v540 = vld [vmem:[%s1 + $0x7c4] sm:$0xf]
  %v541 = vld [vmem:[%s1 + $0x7c8] sm:$0xf]
  %v542 = vld [vmem:[%s1 + $0x7cc] sm:$0xf]
  %v543 = vld [vmem:[%s1 + $0x7d0] sm:$0xf]
  %v544 = vld [vmem:[%s1 + $0x7d4] sm:$0xf]
  %v545 = vld [vmem:[%s1 + $0x7d8] sm:$0xf]
  %v546 = vld [vmem:[%s1 + $0x7dc] sm:$0xf]
  %v547 = vld [vmem:[%s1 + $0x7e0] sm:$0xf]
  %v548 = vld [vmem:[%s1 + $0x7e4] sm:$0xf]
  %v549 = vld [vmem:[%s1 + $0x7e8] sm:$0xf]
  %v550 = vld [vmem:[%s1 + $0x7ec] sm:$0xf]
  %v551 = vld [vmem:[%s1 + $0x7f0] sm:$0xf]
  %v552 = vld [vmem:[%s1 + $0x7f4] sm:$0xf]
  %v553 = vld [vmem:[%s1 + $0x7f8] sm:$0xf]
  %v554 = vld [vmem:[%s1 + $0x7fc] sm:$0xf]
  %v555 = vld [vmem:[%s2] sm:$0x1]
  %v557 = vlaneseq
  %v558 = vshrl.u32 %v557, 7
  %v559 = vsub.s32 0, %v558
  %v560 = vrot.slane %v555, %v559
  %v578 = vunpack.c.l.b16 %v27
  %v579 = vunpack.c.h.b16 %v27
  %v580 = vunpack.c.l.b16 %v28
  %v581 = vunpack.c.h.b16 %v28
  %v582 = vunpack.c.l.b16 %v29
  %v583 = vunpack.c.h.b16 %v29
  %v584 = vunpack.c.l.b16 %v30
  %v585 = vunpack.c.h.b16 %v30
  %v586 = vunpack.c.l.b16 %v31
  %v587 = vunpack.c.h.b16 %v31
  %v588 = vunpack.c.l.b16 %v32
  %v589 = vunpack.c.h.b16 %v32
  %v590 = vunpack.c.l.b16 %v33
  %v591 = vunpack.c.h.b16 %v33
  %v592 = vunpack.c.l.b16 %v34
  %v593 = vunpack.c.h.b16 %v34
  %v594 = vunpack.c.l.b16 %v35
  %v595 = vunpack.c.h.b16 %v35
  %v596 = vunpack.c.l.b16 %v36
  %v597 = vunpack.c.h.b16 %v36
  %v598 = vunpack.c.l.b16 %v37
  %v599 = vunpack.c.h.b16 %v37
  %v600 = vunpack.c.l.b16 %v38
  %v601 = vunpack.c.h.b16 %v38
  %v602 = vunpack.c.l.b16 %v39
  %v603 = vunpack.c.h.b16 %v39
  %v604 = vunpack.c.l.b16 %v40
  %v605 = vunpack.c.h.b16 %v40
  %v606 = vunpack.c.l.b16 %v41
  %v607 = vunpack.c.h.b16 %v41
  %v608 = vunpack.c.l.b16 %v42
  %v609 = vunpack.c.h.b16 %v42
  %v610 = vpack.c.b16 %v578, %v578
  %v611 = vpack.c.b16 %v579, %v579
  %v612 = vpack.c.b16 %v580, %v580
  %v613 = vpack.c.b16 %v581, %v581
  %v614 = vpack.c.b16 %v582, %v582
  %v615 = vpack.c.b16 %v583, %v583
  %v616 = vpack.c.b16 %v584, %v584
  %v617 = vpack.c.b16 %v585, %v585
  %v618 = vpack.c.b16 %v586, %v586
  %v619 = vpack.c.b16 %v587, %v587
  %v620 = vpack.c.b16 %v588, %v588
  %v621 = vpack.c.b16 %v589, %v589
  %v622 = vpack.c.b16 %v590, %v590
  %v623 = vpack.c.b16 %v591, %v591
  %v624 = vpack.c.b16 %v592, %v592
  %v625 = vpack.c.b16 %v593, %v593
  %v626 = vpack.c.b16 %v594, %v594
  %v627 = vpack.c.b16 %v595, %v595
  %v628 = vpack.c.b16 %v596, %v596
  %v629 = vpack.c.b16 %v597, %v597
  %v630 = vpack.c.b16 %v598, %v598
  %v631 = vpack.c.b16 %v599, %v599
  %v632 = vpack.c.b16 %v600, %v600
  %v633 = vpack.c.b16 %v601, %v601
  %v634 = vpack.c.b16 %v602, %v602
  %v635 = vpack.c.b16 %v603, %v603
  %v636 = vpack.c.b16 %v604, %v604
  %v637 = vpack.c.b16 %v605, %v605
  %v638 = vpack.c.b16 %v606, %v606
  %v639 = vpack.c.b16 %v607, %v607
  %v640 = vpack.c.b16 %v608, %v608
  %v641 = vpack.c.b16 %v609, %v609
  %v1186 = vunpack.c.l.b16 %v43
  %v1187 = vunpack.c.l.b16 %v44
  %v1188 = vunpack.c.l.b16 %v45
  %v1189 = vunpack.c.l.b16 %v46
  %v1190 = vunpack.c.l.b16 %v47
  %v1191 = vunpack.c.l.b16 %v48
  %v1192 = vunpack.c.l.b16 %v49
  %v1193 = vunpack.c.l.b16 %v50
  %v1194 = vunpack.c.l.b16 %v51
  %v1195 = vunpack.c.l.b16 %v52
  %v1196 = vunpack.c.l.b16 %v53
  %v1197 = vunpack.c.l.b16 %v54
  %v1198 = vunpack.c.l.b16 %v55
  %v1199 = vunpack.c.l.b16 %v56
  %v1200 = vunpack.c.l.b16 %v57
  %v1201 = vunpack.c.l.b16 %v58
  %v1202 = vunpack.c.l.b16 %v59
  %v1203 = vunpack.c.l.b16 %v60
  %v1204 = vunpack.c.l.b16 %v61
  %v1205 = vunpack.c.l.b16 %v62
  %v1206 = vunpack.c.l.b16 %v63
  %v1207 = vunpack.c.l.b16 %v64
  %v1208 = vunpack.c.l.b16 %v65
  %v1209 = vunpack.c.l.b16 %v66
  %v1210 = vunpack.c.l.b16 %v67
  %v1211 = vunpack.c.l.b16 %v68
  %v1212 = vunpack.c.l.b16 %v69
  %v1213 = vunpack.c.l.b16 %v70
  %v1214 = vunpack.c.l.b16 %v71
  %v1215 = vunpack.c.l.b16 %v72
  %v1216 = vunpack.c.l.b16 %v73
  %v1217 = vunpack.c.l.b16 %v74
  %v1218 = vunpack.c.l.b16 %v75
  %v1219 = vunpack.c.l.b16 %v76
  %v1220 = vunpack.c.l.b16 %v77
  %v1221 = vunpack.c.l.b16 %v78
  %v1222 = vunpack.c.l.b16 %v79
  %v1223 = vunpack.c.l.b16 %v80
  %v1224 = vunpack.c.l.b16 %v81
  %v1225 = vunpack.c.l.b16 %v82
  %v1226 = vunpack.c.l.b16 %v83
  %v1227 = vunpack.c.l.b16 %v84
  %v1228 = vunpack.c.l.b16 %v85
  %v1229 = vunpack.c.l.b16 %v86
  %v1230 = vunpack.c.l.b16 %v87
  %v1231 = vunpack.c.l.b16 %v88
  %v1232 = vunpack.c.l.b16 %v89
  %v1233 = vunpack.c.l.b16 %v90
  %v1234 = vunpack.c.l.b16 %v91
  %v1235 = vunpack.c.l.b16 %v92
  %v1236 = vunpack.c.l.b16 %v93
  %v1237 = vunpack.c.l.b16 %v94
  %v1238 = vunpack.c.l.b16 %v95
  %v1239 = vunpack.c.l.b16 %v96
  %v1240 = vunpack.c.l.b16 %v97
  %v1241 = vunpack.c.l.b16 %v98
  %v1242 = vunpack.c.l.b16 %v99
  %v1243 = vunpack.c.l.b16 %v100
  %v1244 = vunpack.c.l.b16 %v101
  %v1245 = vunpack.c.l.b16 %v102
  %v1246 = vunpack.c.l.b16 %v103
  %v1247 = vunpack.c.l.b16 %v104
  %v1248 = vunpack.c.l.b16 %v105
  %v1249 = vunpack.c.l.b16 %v106
  %v1250 = vunpack.c.l.b16 %v107
  %v1251 = vunpack.c.l.b16 %v108
  %v1252 = vunpack.c.l.b16 %v109
  %v1253 = vunpack.c.l.b16 %v110
  %v1254 = vunpack.c.l.b16 %v111
  %v1255 = vunpack.c.l.b16 %v112
  %v1256 = vunpack.c.l.b16 %v113
  %v1257 = vunpack.c.l.b16 %v114
  %v1258 = vunpack.c.l.b16 %v115
  %v1259 = vunpack.c.l.b16 %v116
  %v1260 = vunpack.c.l.b16 %v117
  %v1261 = vunpack.c.l.b16 %v118
  %v1262 = vunpack.c.l.b16 %v119
  %v1263 = vunpack.c.l.b16 %v120
  %v1264 = vunpack.c.l.b16 %v121
  %v1265 = vunpack.c.l.b16 %v122
  %v1266 = vunpack.c.l.b16 %v123
  %v1267 = vunpack.c.l.b16 %v124
  %v1268 = vunpack.c.l.b16 %v125
  %v1269 = vunpack.c.l.b16 %v126
  %v1270 = vunpack.c.l.b16 %v127
  %v1271 = vunpack.c.l.b16 %v128
  %v1272 = vunpack.c.l.b16 %v129
  %v1273 = vunpack.c.l.b16 %v130
  %v1274 = vunpack.c.l.b16 %v131
  %v1275 = vunpack.c.l.b16 %v132
  %v1276 = vunpack.c.l.b16 %v133
  %v1277 = vunpack.c.l.b16 %v134
  %v1278 = vunpack.c.l.b16 %v135
  %v1279 = vunpack.c.l.b16 %v136
  %v1280 = vunpack.c.l.b16 %v137
  %v1281 = vunpack.c.l.b16 %v138
  %v1282 = vunpack.c.l.b16 %v139
  %v1283 = vunpack.c.l.b16 %v140
  %v1284 = vunpack.c.l.b16 %v141
  %v1285 = vunpack.c.l.b16 %v142
  %v1286 = vunpack.c.l.b16 %v143
  %v1287 = vunpack.c.l.b16 %v144
  %v1288 = vunpack.c.l.b16 %v145
  %v1289 = vunpack.c.l.b16 %v146
  %v1290 = vunpack.c.l.b16 %v147
  %v1291 = vunpack.c.l.b16 %v148
  %v1292 = vunpack.c.l.b16 %v149
  %v1293 = vunpack.c.l.b16 %v150
  %v1294 = vunpack.c.l.b16 %v151
  %v1295 = vunpack.c.l.b16 %v152
  %v1296 = vunpack.c.l.b16 %v153
  %v1297 = vunpack.c.l.b16 %v154
  %v1298 = vunpack.c.l.b16 %v155
  %v1299 = vunpack.c.l.b16 %v156
  %v1300 = vunpack.c.l.b16 %v157
  %v1301 = vunpack.c.l.b16 %v158
  %v1302 = vunpack.c.l.b16 %v159
  %v1303 = vunpack.c.l.b16 %v160
  %v1304 = vunpack.c.l.b16 %v161
  %v1305 = vunpack.c.l.b16 %v162
  %v1306 = vunpack.c.l.b16 %v163
  %v1307 = vunpack.c.l.b16 %v164
  %v1308 = vunpack.c.l.b16 %v165
  %v1309 = vunpack.c.l.b16 %v166
  %v1310 = vunpack.c.l.b16 %v167
  %v1311 = vunpack.c.l.b16 %v168
  %v1312 = vunpack.c.l.b16 %v169
  %v1313 = vunpack.c.l.b16 %v170
  %v1314 = vunpack.c.l.b16 %v171
  %v1315 = vunpack.c.l.b16 %v172
  %v1316 = vunpack.c.l.b16 %v173
  %v1317 = vunpack.c.l.b16 %v174
  %v1318 = vunpack.c.l.b16 %v175
  %v1319 = vunpack.c.l.b16 %v176
  %v1320 = vunpack.c.l.b16 %v177
  %v1321 = vunpack.c.l.b16 %v178
  %v1322 = vunpack.c.l.b16 %v179
  %v1323 = vunpack.c.l.b16 %v180
  %v1324 = vunpack.c.l.b16 %v181
  %v1325 = vunpack.c.l.b16 %v182
  %v1326 = vunpack.c.l.b16 %v183
  %v1327 = vunpack.c.l.b16 %v184
  %v1328 = vunpack.c.l.b16 %v185
  %v1329 = vunpack.c.l.b16 %v186
  %v1330 = vunpack.c.l.b16 %v187
  %v1331 = vunpack.c.l.b16 %v188
  %v1332 = vunpack.c.l.b16 %v189
  %v1333 = vunpack.c.l.b16 %v190
  %v1334 = vunpack.c.l.b16 %v191
  %v1335 = vunpack.c.l.b16 %v192
  %v1336 = vunpack.c.l.b16 %v193
  %v1337 = vunpack.c.l.b16 %v194
  %v1338 = vunpack.c.l.b16 %v195
  %v1339 = vunpack.c.l.b16 %v196
  %v1340 = vunpack.c.l.b16 %v197
  %v1341 = vunpack.c.l.b16 %v198
  %v1342 = vunpack.c.l.b16 %v199
  %v1343 = vunpack.c.l.b16 %v200
  %v1344 = vunpack.c.l.b16 %v201
  %v1345 = vunpack.c.l.b16 %v202
  %v1346 = vunpack.c.l.b16 %v203
  %v1347 = vunpack.c.l.b16 %v204
  %v1348 = vunpack.c.l.b16 %v205
  %v1349 = vunpack.c.l.b16 %v206
  %v1350 = vunpack.c.l.b16 %v207
  %v1351 = vunpack.c.l.b16 %v208
  %v1352 = vunpack.c.l.b16 %v209
  %v1353 = vunpack.c.l.b16 %v210
  %v1354 = vunpack.c.l.b16 %v211
  %v1355 = vunpack.c.l.b16 %v212
  %v1356 = vunpack.c.l.b16 %v213
  %v1357 = vunpack.c.l.b16 %v214
  %v1358 = vunpack.c.l.b16 %v215
  %v1359 = vunpack.c.l.b16 %v216
  %v1360 = vunpack.c.l.b16 %v217
  %v1361 = vunpack.c.l.b16 %v218
  %v1362 = vunpack.c.l.b16 %v219
  %v1363 = vunpack.c.l.b16 %v220
  %v1364 = vunpack.c.l.b16 %v221
  %v1365 = vunpack.c.l.b16 %v222
  %v1366 = vunpack.c.l.b16 %v223
  %v1367 = vunpack.c.l.b16 %v224
  %v1368 = vunpack.c.l.b16 %v225
  %v1369 = vunpack.c.l.b16 %v226
  %v1370 = vunpack.c.l.b16 %v227
  %v1371 = vunpack.c.l.b16 %v228
  %v1372 = vunpack.c.l.b16 %v229
  %v1373 = vunpack.c.l.b16 %v230
  %v1374 = vunpack.c.l.b16 %v231
  %v1375 = vunpack.c.l.b16 %v232
  %v1376 = vunpack.c.l.b16 %v233
  %v1377 = vunpack.c.l.b16 %v234
  %v1378 = vunpack.c.l.b16 %v235
  %v1379 = vunpack.c.l.b16 %v236
  %v1380 = vunpack.c.l.b16 %v237
  %v1381 = vunpack.c.l.b16 %v238
  %v1382 = vunpack.c.l.b16 %v239
  %v1383 = vunpack.c.l.b16 %v240
  %v1384 = vunpack.c.l.b16 %v241
  %v1385 = vunpack.c.l.b16 %v242
  %v1386 = vunpack.c.l.b16 %v243
  %v1387 = vunpack.c.l.b16 %v244
  %v1388 = vunpack.c.l.b16 %v245
  %v1389 = vunpack.c.l.b16 %v246
  %v1390 = vunpack.c.l.b16 %v247
  %v1391 = vunpack.c.l.b16 %v248
  %v1392 = vunpack.c.l.b16 %v249
  %v1393 = vunpack.c.l.b16 %v250
  %v1394 = vunpack.c.l.b16 %v251
  %v1395 = vunpack.c.l.b16 %v252
  %v1396 = vunpack.c.l.b16 %v253
  %v1397 = vunpack.c.l.b16 %v254
  %v1398 = vunpack.c.l.b16 %v255
  %v1399 = vunpack.c.l.b16 %v256
  %v1400 = vunpack.c.l.b16 %v257
  %v1401 = vunpack.c.l.b16 %v258
  %v1402 = vunpack.c.l.b16 %v259
  %v1403 = vunpack.c.l.b16 %v260
  %v1404 = vunpack.c.l.b16 %v261
  %v1405 = vunpack.c.l.b16 %v262
  %v1406 = vunpack.c.l.b16 %v263
  %v1407 = vunpack.c.l.b16 %v264
  %v1408 = vunpack.c.l.b16 %v265
  %v1409 = vunpack.c.l.b16 %v266
  %v1410 = vunpack.c.l.b16 %v267
  %v1411 = vunpack.c.l.b16 %v268
  %v1412 = vunpack.c.l.b16 %v269
  %v1413 = vunpack.c.l.b16 %v270
  %v1414 = vunpack.c.l.b16 %v271
  %v1415 = vunpack.c.l.b16 %v272
  %v1416 = vunpack.c.l.b16 %v273
  %v1417 = vunpack.c.l.b16 %v274
  %v1418 = vunpack.c.l.b16 %v275
  %v1419 = vunpack.c.l.b16 %v276
  %v1420 = vunpack.c.l.b16 %v277
  %v1421 = vunpack.c.l.b16 %v278
  %v1422 = vunpack.c.l.b16 %v279
  %v1423 = vunpack.c.l.b16 %v280
  %v1424 = vunpack.c.l.b16 %v281
  %v1425 = vunpack.c.l.b16 %v282
  %v1426 = vunpack.c.l.b16 %v283
  %v1427 = vunpack.c.l.b16 %v284
  %v1428 = vunpack.c.l.b16 %v285
  %v1429 = vunpack.c.l.b16 %v286
  %v1430 = vunpack.c.l.b16 %v287
  %v1431 = vunpack.c.l.b16 %v288
  %v1432 = vunpack.c.l.b16 %v289
  %v1433 = vunpack.c.l.b16 %v290
  %v1434 = vunpack.c.l.b16 %v291
  %v1435 = vunpack.c.l.b16 %v292
  %v1436 = vunpack.c.l.b16 %v293
  %v1437 = vunpack.c.l.b16 %v294
  %v1438 = vunpack.c.l.b16 %v295
  %v1439 = vunpack.c.l.b16 %v296
  %v1440 = vunpack.c.l.b16 %v297
  %v1441 = vunpack.c.l.b16 %v298
  %v1442 = vunpack.c.l.b16 %v299
  %v1443 = vunpack.c.l.b16 %v300
  %v1444 = vunpack.c.l.b16 %v301
  %v1445 = vunpack.c.l.b16 %v302
  %v1446 = vunpack.c.l.b16 %v303
  %v1447 = vunpack.c.l.b16 %v304
  %v1448 = vunpack.c.l.b16 %v305
  %v1449 = vunpack.c.l.b16 %v306
  %v1450 = vunpack.c.l.b16 %v307
  %v1451 = vunpack.c.l.b16 %v308
  %v1452 = vunpack.c.l.b16 %v309
  %v1453 = vunpack.c.l.b16 %v310
  %v1454 = vunpack.c.l.b16 %v311
  %v1455 = vunpack.c.l.b16 %v312
  %v1456 = vunpack.c.l.b16 %v313
  %v1457 = vunpack.c.l.b16 %v314
  %v1458 = vunpack.c.l.b16 %v315
  %v1459 = vunpack.c.l.b16 %v316
  %v1460 = vunpack.c.l.b16 %v317
  %v1461 = vunpack.c.l.b16 %v318
  %v1462 = vunpack.c.l.b16 %v319
  %v1463 = vunpack.c.l.b16 %v320
  %v1464 = vunpack.c.l.b16 %v321
  %v1465 = vunpack.c.l.b16 %v322
  %v1466 = vunpack.c.l.b16 %v323
  %v1467 = vunpack.c.l.b16 %v324
  %v1468 = vunpack.c.l.b16 %v325
  %v1469 = vunpack.c.l.b16 %v326
  %v1470 = vunpack.c.l.b16 %v327
  %v1471 = vunpack.c.l.b16 %v328
  %v1472 = vunpack.c.l.b16 %v329
  %v1473 = vunpack.c.l.b16 %v330
  %v1474 = vunpack.c.l.b16 %v331
  %v1475 = vunpack.c.l.b16 %v332
  %v1476 = vunpack.c.l.b16 %v333
  %v1477 = vunpack.c.l.b16 %v334
  %v1478 = vunpack.c.l.b16 %v335
  %v1479 = vunpack.c.l.b16 %v336
  %v1480 = vunpack.c.l.b16 %v337
  %v1481 = vunpack.c.l.b16 %v338
  %v1482 = vunpack.c.l.b16 %v339
  %v1483 = vunpack.c.l.b16 %v340
  %v1484 = vunpack.c.l.b16 %v341
  %v1485 = vunpack.c.l.b16 %v342
  %v1486 = vunpack.c.l.b16 %v343
  %v1487 = vunpack.c.l.b16 %v344
  %v1488 = vunpack.c.l.b16 %v345
  %v1489 = vunpack.c.l.b16 %v346
  %v1490 = vunpack.c.l.b16 %v347
  %v1491 = vunpack.c.l.b16 %v348
  %v1492 = vunpack.c.l.b16 %v349
  %v1493 = vunpack.c.l.b16 %v350
  %v1494 = vunpack.c.l.b16 %v351
  %v1495 = vunpack.c.l.b16 %v352
  %v1496 = vunpack.c.l.b16 %v353
  %v1497 = vunpack.c.l.b16 %v354
  %v1498 = vunpack.c.l.b16 %v355
  %v1499 = vunpack.c.l.b16 %v356
  %v1500 = vunpack.c.l.b16 %v357
  %v1501 = vunpack.c.l.b16 %v358
  %v1502 = vunpack.c.l.b16 %v359
  %v1503 = vunpack.c.l.b16 %v360
  %v1504 = vunpack.c.l.b16 %v361
  %v1505 = vunpack.c.l.b16 %v362
  %v1506 = vunpack.c.l.b16 %v363
  %v1507 = vunpack.c.l.b16 %v364
  %v1508 = vunpack.c.l.b16 %v365
  %v1509 = vunpack.c.l.b16 %v366
  %v1510 = vunpack.c.l.b16 %v367
  %v1511 = vunpack.c.l.b16 %v368
  %v1512 = vunpack.c.l.b16 %v369
  %v1513 = vunpack.c.l.b16 %v370
  %v1514 = vunpack.c.l.b16 %v371
  %v1515 = vunpack.c.l.b16 %v372
  %v1516 = vunpack.c.l.b16 %v373
  %v1517 = vunpack.c.l.b16 %v374
  %v1518 = vunpack.c.l.b16 %v375
  %v1519 = vunpack.c.l.b16 %v376
  %v1520 = vunpack.c.l.b16 %v377
  %v1521 = vunpack.c.l.b16 %v378
  %v1522 = vunpack.c.l.b16 %v379
  %v1523 = vunpack.c.l.b16 %v380
  %v1524 = vunpack.c.l.b16 %v381
  %v1525 = vunpack.c.l.b16 %v382
  %v1526 = vunpack.c.l.b16 %v383
  %v1527 = vunpack.c.l.b16 %v384
  %v1528 = vunpack.c.l.b16 %v385
  %v1529 = vunpack.c.l.b16 %v386
  %v1530 = vunpack.c.l.b16 %v387
  %v1531 = vunpack.c.l.b16 %v388
  %v1532 = vunpack.c.l.b16 %v389
  %v1533 = vunpack.c.l.b16 %v390
  %v1534 = vunpack.c.l.b16 %v391
  %v1535 = vunpack.c.l.b16 %v392
  %v1536 = vunpack.c.l.b16 %v393
  %v1537 = vunpack.c.l.b16 %v394
  %v1538 = vunpack.c.l.b16 %v395
  %v1539 = vunpack.c.l.b16 %v396
  %v1540 = vunpack.c.l.b16 %v397
  %v1541 = vunpack.c.l.b16 %v398
  %v1542 = vunpack.c.l.b16 %v399
  %v1543 = vunpack.c.l.b16 %v400
  %v1544 = vunpack.c.l.b16 %v401
  %v1545 = vunpack.c.l.b16 %v402
  %v1546 = vunpack.c.l.b16 %v403
  %v1547 = vunpack.c.l.b16 %v404
  %v1548 = vunpack.c.l.b16 %v405
  %v1549 = vunpack.c.l.b16 %v406
  %v1550 = vunpack.c.l.b16 %v407
  %v1551 = vunpack.c.l.b16 %v408
  %v1552 = vunpack.c.l.b16 %v409
  %v1553 = vunpack.c.l.b16 %v410
  %v1554 = vunpack.c.l.b16 %v411
  %v1555 = vunpack.c.l.b16 %v412
  %v1556 = vunpack.c.l.b16 %v413
  %v1557 = vunpack.c.l.b16 %v414
  %v1558 = vunpack.c.l.b16 %v415
  %v1559 = vunpack.c.l.b16 %v416
  %v1560 = vunpack.c.l.b16 %v417
  %v1561 = vunpack.c.l.b16 %v418
  %v1562 = vunpack.c.l.b16 %v419
  %v1563 = vunpack.c.l.b16 %v420
  %v1564 = vunpack.c.l.b16 %v421
  %v1565 = vunpack.c.l.b16 %v422
  %v1566 = vunpack.c.l.b16 %v423
  %v1567 = vunpack.c.l.b16 %v424
  %v1568 = vunpack.c.l.b16 %v425
  %v1569 = vunpack.c.l.b16 %v426
  %v1570 = vunpack.c.l.b16 %v427
  %v1571 = vunpack.c.l.b16 %v428
  %v1572 = vunpack.c.l.b16 %v429
  %v1573 = vunpack.c.l.b16 %v430
  %v1574 = vunpack.c.l.b16 %v431
  %v1575 = vunpack.c.l.b16 %v432
  %v1576 = vunpack.c.l.b16 %v433
  %v1577 = vunpack.c.l.b16 %v434
  %v1578 = vunpack.c.l.b16 %v435
  %v1579 = vunpack.c.l.b16 %v436
  %v1580 = vunpack.c.l.b16 %v437
  %v1581 = vunpack.c.l.b16 %v438
  %v1582 = vunpack.c.l.b16 %v439
  %v1583 = vunpack.c.l.b16 %v440
  %v1584 = vunpack.c.l.b16 %v441
  %v1585 = vunpack.c.l.b16 %v442
  %v1586 = vunpack.c.l.b16 %v443
  %v1587 = vunpack.c.l.b16 %v444
  %v1588 = vunpack.c.l.b16 %v445
  %v1589 = vunpack.c.l.b16 %v446
  %v1590 = vunpack.c.l.b16 %v447
  %v1591 = vunpack.c.l.b16 %v448
  %v1592 = vunpack.c.l.b16 %v449
  %v1593 = vunpack.c.l.b16 %v450
  %v1594 = vunpack.c.l.b16 %v451
  %v1595 = vunpack.c.l.b16 %v452
  %v1596 = vunpack.c.l.b16 %v453
  %v1597 = vunpack.c.l.b16 %v454
  %v1598 = vunpack.c.l.b16 %v455
  %v1599 = vunpack.c.l.b16 %v456
  %v1600 = vunpack.c.l.b16 %v457
  %v1601 = vunpack.c.l.b16 %v458
  %v1602 = vunpack.c.l.b16 %v459
  %v1603 = vunpack.c.l.b16 %v460
  %v1604 = vunpack.c.l.b16 %v461
  %v1605 = vunpack.c.l.b16 %v462
  %v1606 = vunpack.c.l.b16 %v463
  %v1607 = vunpack.c.l.b16 %v464
  %v1608 = vunpack.c.l.b16 %v465
  %v1609 = vunpack.c.l.b16 %v466
  %v1610 = vunpack.c.l.b16 %v467
  %v1611 = vunpack.c.l.b16 %v468
  %v1612 = vunpack.c.l.b16 %v469
  %v1613 = vunpack.c.l.b16 %v470
  %v1614 = vunpack.c.l.b16 %v471
  %v1615 = vunpack.c.l.b16 %v472
  %v1616 = vunpack.c.l.b16 %v473
  %v1617 = vunpack.c.l.b16 %v474
  %v1618 = vunpack.c.l.b16 %v475
  %v1619 = vunpack.c.l.b16 %v476
  %v1620 = vunpack.c.l.b16 %v477
  %v1621 = vunpack.c.l.b16 %v478
  %v1622 = vunpack.c.l.b16 %v479
  %v1623 = vunpack.c.l.b16 %v480
  %v1624 = vunpack.c.l.b16 %v481
  %v1625 = vunpack.c.l.b16 %v482
  %v1626 = vunpack.c.l.b16 %v483
  %v1627 = vunpack.c.l.b16 %v484
  %v1628 = vunpack.c.l.b16 %v485
  %v1629 = vunpack.c.l.b16 %v486
  %v1630 = vunpack.c.l.b16 %v487
  %v1631 = vunpack.c.l.b16 %v488
  %v1632 = vunpack.c.l.b16 %v489
  %v1633 = vunpack.c.l.b16 %v490
  %v1634 = vunpack.c.l.b16 %v491
  %v1635 = vunpack.c.l.b16 %v492
  %v1636 = vunpack.c.l.b16 %v493
  %v1637 = vunpack.c.l.b16 %v494
  %v1638 = vunpack.c.l.b16 %v495
  %v1639 = vunpack.c.l.b16 %v496
  %v1640 = vunpack.c.l.b16 %v497
  %v1641 = vunpack.c.l.b16 %v498
  %v1642 = vunpack.c.l.b16 %v499
  %v1643 = vunpack.c.l.b16 %v500
  %v1644 = vunpack.c.l.b16 %v501
  %v1645 = vunpack.c.l.b16 %v502
  %v1646 = vunpack.c.l.b16 %v503
  %v1647 = vunpack.c.l.b16 %v504
  %v1648 = vunpack.c.l.b16 %v505
  %v1649 = vunpack.c.l.b16 %v506
  %v1650 = vunpack.c.l.b16 %v507
  %v1651 = vunpack.c.l.b16 %v508
  %v1652 = vunpack.c.l.b16 %v509
  %v1653 = vunpack.c.l.b16 %v510
  %v1654 = vunpack.c.l.b16 %v511
  %v1655 = vunpack.c.l.b16 %v512
  %v1656 = vunpack.c.l.b16 %v513
  %v1657 = vunpack.c.l.b16 %v514
  %v1658 = vunpack.c.l.b16 %v515
  %v1659 = vunpack.c.l.b16 %v516
  %v1660 = vunpack.c.l.b16 %v517
  %v1661 = vunpack.c.l.b16 %v518
  %v1662 = vunpack.c.l.b16 %v519
  %v1663 = vunpack.c.l.b16 %v520
  %v1664 = vunpack.c.l.b16 %v521
  %v1665 = vunpack.c.l.b16 %v522
  %v1666 = vunpack.c.l.b16 %v523
  %v1667 = vunpack.c.l.b16 %v524
  %v1668 = vunpack.c.l.b16 %v525
  %v1669 = vunpack.c.l.b16 %v526
  %v1670 = vunpack.c.l.b16 %v527
  %v1671 = vunpack.c.l.b16 %v528
  %v1672 = vunpack.c.l.b16 %v529
  %v1673 = vunpack.c.l.b16 %v530
  %v1674 = vunpack.c.l.b16 %v531
  %v1675 = vunpack.c.l.b16 %v532
  %v1676 = vunpack.c.l.b16 %v533
  %v1677 = vunpack.c.l.b16 %v534
  %v1678 = vunpack.c.l.b16 %v535
  %v1679 = vunpack.c.l.b16 %v536
  %v1680 = vunpack.c.l.b16 %v537
  %v1681 = vunpack.c.l.b16 %v538
  %v1682 = vunpack.c.l.b16 %v539
  %v1683 = vunpack.c.l.b16 %v540
  %v1684 = vunpack.c.l.b16 %v541
  %v1685 = vunpack.c.l.b16 %v542
  %v1686 = vunpack.c.l.b16 %v543
  %v1687 = vunpack.c.l.b16 %v544
  %v1688 = vunpack.c.l.b16 %v545
  %v1689 = vunpack.c.l.b16 %v546
  %v1690 = vunpack.c.l.b16 %v547
  %v1691 = vunpack.c.l.b16 %v548
  %v1692 = vunpack.c.l.b16 %v549
  %v1693 = vunpack.c.l.b16 %v550
  %v1694 = vunpack.c.l.b16 %v551
  %v1695 = vunpack.c.l.b16 %v552
  %v1696 = vunpack.c.l.b16 %v553
  %v1697 = vunpack.c.l.b16 %v554
  %v1698 = vpack.c.b16 %v1187, %v1186
  %v1699 = vpack.c.b16 %v1189, %v1188
  %v1700 = vpack.c.b16 %v1191, %v1190
  %v1701 = vpack.c.b16 %v1193, %v1192
  %v1702 = vpack.c.b16 %v1195, %v1194
  %v1703 = vpack.c.b16 %v1197, %v1196
  %v1704 = vpack.c.b16 %v1199, %v1198
  %v1705 = vpack.c.b16 %v1201, %v1200
  %v1706 = vpack.c.b16 %v1203, %v1202
  %v1707 = vpack.c.b16 %v1205, %v1204
  %v1708 = vpack.c.b16 %v1207, %v1206
  %v1709 = vpack.c.b16 %v1209, %v1208
  %v1710 = vpack.c.b16 %v1211, %v1210
  %v1711 = vpack.c.b16 %v1213, %v1212
  %v1712 = vpack.c.b16 %v1215, %v1214
  %v1713 = vpack.c.b16 %v1217, %v1216
  %v1714 = vpack.c.b16 %v1219, %v1218
  %v1715 = vpack.c.b16 %v1221, %v1220
  %v1716 = vpack.c.b16 %v1223, %v1222
  %v1717 = vpack.c.b16 %v1225, %v1224
  %v1718 = vpack.c.b16 %v1227, %v1226
  %v1719 = vpack.c.b16 %v1229, %v1228
  %v1720 = vpack.c.b16 %v1231, %v1230
  %v1721 = vpack.c.b16 %v1233, %v1232
  %v1722 = vpack.c.b16 %v1235, %v1234
  %v1723 = vpack.c.b16 %v1237, %v1236
  %v1724 = vpack.c.b16 %v1239, %v1238
  %v1725 = vpack.c.b16 %v1241, %v1240
  %v1726 = vpack.c.b16 %v1243, %v1242
  %v1727 = vpack.c.b16 %v1245, %v1244
  %v1728 = vpack.c.b16 %v1247, %v1246
  %v1729 = vpack.c.b16 %v1249, %v1248
  %v1730 = vpack.c.b16 %v1251, %v1250
  %v1731 = vpack.c.b16 %v1253, %v1252
  %v1732 = vpack.c.b16 %v1255, %v1254
  %v1733 = vpack.c.b16 %v1257, %v1256
  %v1734 = vpack.c.b16 %v1259, %v1258
  %v1735 = vpack.c.b16 %v1261, %v1260
  %v1736 = vpack.c.b16 %v1263, %v1262
  %v1737 = vpack.c.b16 %v1265, %v1264
  %v1738 = vpack.c.b16 %v1267, %v1266
  %v1739 = vpack.c.b16 %v1269, %v1268
  %v1740 = vpack.c.b16 %v1271, %v1270
  %v1741 = vpack.c.b16 %v1273, %v1272
  %v1742 = vpack.c.b16 %v1275, %v1274
  %v1743 = vpack.c.b16 %v1277, %v1276
  %v1744 = vpack.c.b16 %v1279, %v1278
  %v1745 = vpack.c.b16 %v1281, %v1280
  %v1746 = vpack.c.b16 %v1283, %v1282
  %v1747 = vpack.c.b16 %v1285, %v1284
  %v1748 = vpack.c.b16 %v1287, %v1286
  %v1749 = vpack.c.b16 %v1289, %v1288
  %v1750 = vpack.c.b16 %v1291, %v1290
  %v1751 = vpack.c.b16 %v1293, %v1292
  %v1752 = vpack.c.b16 %v1295, %v1294
  %v1753 = vpack.c.b16 %v1297, %v1296
  %v1754 = vpack.c.b16 %v1299, %v1298
  %v1755 = vpack.c.b16 %v1301, %v1300
  %v1756 = vpack.c.b16 %v1303, %v1302
  %v1757 = vpack.c.b16 %v1305, %v1304
  %v1758 = vpack.c.b16 %v1307, %v1306
  %v1759 = vpack.c.b16 %v1309, %v1308
  %v1760 = vpack.c.b16 %v1311, %v1310
  %v1761 = vpack.c.b16 %v1313, %v1312
  %v1762 = vpack.c.b16 %v1315, %v1314
  %v1763 = vpack.c.b16 %v1317, %v1316
  %v1764 = vpack.c.b16 %v1319, %v1318
  %v1765 = vpack.c.b16 %v1321, %v1320
  %v1766 = vpack.c.b16 %v1323, %v1322
  %v1767 = vpack.c.b16 %v1325, %v1324
  %v1768 = vpack.c.b16 %v1327, %v1326
  %v1769 = vpack.c.b16 %v1329, %v1328
  %v1770 = vpack.c.b16 %v1331, %v1330
  %v1771 = vpack.c.b16 %v1333, %v1332
  %v1772 = vpack.c.b16 %v1335, %v1334
  %v1773 = vpack.c.b16 %v1337, %v1336
  %v1774 = vpack.c.b16 %v1339, %v1338
  %v1775 = vpack.c.b16 %v1341, %v1340
  %v1776 = vpack.c.b16 %v1343, %v1342
  %v1777 = vpack.c.b16 %v1345, %v1344
  %v1778 = vpack.c.b16 %v1347, %v1346
  %v1779 = vpack.c.b16 %v1349, %v1348
  %v1780 = vpack.c.b16 %v1351, %v1350
  %v1781 = vpack.c.b16 %v1353, %v1352
  %v1782 = vpack.c.b16 %v1355, %v1354
  %v1783 = vpack.c.b16 %v1357, %v1356
  %v1784 = vpack.c.b16 %v1359, %v1358
  %v1785 = vpack.c.b16 %v1361, %v1360
  %v1786 = vpack.c.b16 %v1363, %v1362
  %v1787 = vpack.c.b16 %v1365, %v1364
  %v1788 = vpack.c.b16 %v1367, %v1366
  %v1789 = vpack.c.b16 %v1369, %v1368
  %v1790 = vpack.c.b16 %v1371, %v1370
  %v1791 = vpack.c.b16 %v1373, %v1372
  %v1792 = vpack.c.b16 %v1375, %v1374
  %v1793 = vpack.c.b16 %v1377, %v1376
  %v1794 = vpack.c.b16 %v1379, %v1378
  %v1795 = vpack.c.b16 %v1381, %v1380
  %v1796 = vpack.c.b16 %v1383, %v1382
  %v1797 = vpack.c.b16 %v1385, %v1384
  %v1798 = vpack.c.b16 %v1387, %v1386
  %v1799 = vpack.c.b16 %v1389, %v1388
  %v1800 = vpack.c.b16 %v1391, %v1390
  %v1801 = vpack.c.b16 %v1393, %v1392
  %v1802 = vpack.c.b16 %v1395, %v1394
  %v1803 = vpack.c.b16 %v1397, %v1396
  %v1804 = vpack.c.b16 %v1399, %v1398
  %v1805 = vpack.c.b16 %v1401, %v1400
  %v1806 = vpack.c.b16 %v1403, %v1402
  %v1807 = vpack.c.b16 %v1405, %v1404
  %v1808 = vpack.c.b16 %v1407, %v1406
  %v1809 = vpack.c.b16 %v1409, %v1408
  %v1810 = vpack.c.b16 %v1411, %v1410
  %v1811 = vpack.c.b16 %v1413, %v1412
  %v1812 = vpack.c.b16 %v1415, %v1414
  %v1813 = vpack.c.b16 %v1417, %v1416
  %v1814 = vpack.c.b16 %v1419, %v1418
  %v1815 = vpack.c.b16 %v1421, %v1420
  %v1816 = vpack.c.b16 %v1423, %v1422
  %v1817 = vpack.c.b16 %v1425, %v1424
  %v1818 = vpack.c.b16 %v1427, %v1426
  %v1819 = vpack.c.b16 %v1429, %v1428
  %v1820 = vpack.c.b16 %v1431, %v1430
  %v1821 = vpack.c.b16 %v1433, %v1432
  %v1822 = vpack.c.b16 %v1435, %v1434
  %v1823 = vpack.c.b16 %v1437, %v1436
  %v1824 = vpack.c.b16 %v1439, %v1438
  %v1825 = vpack.c.b16 %v1441, %v1440
  %v1826 = vpack.c.b16 %v1443, %v1442
  %v1827 = vpack.c.b16 %v1445, %v1444
  %v1828 = vpack.c.b16 %v1447, %v1446
  %v1829 = vpack.c.b16 %v1449, %v1448
  %v1830 = vpack.c.b16 %v1451, %v1450
  %v1831 = vpack.c.b16 %v1453, %v1452
  %v1832 = vpack.c.b16 %v1455, %v1454
  %v1833 = vpack.c.b16 %v1457, %v1456
  %v1834 = vpack.c.b16 %v1459, %v1458
  %v1835 = vpack.c.b16 %v1461, %v1460
  %v1836 = vpack.c.b16 %v1463, %v1462
  %v1837 = vpack.c.b16 %v1465, %v1464
  %v1838 = vpack.c.b16 %v1467, %v1466
  %v1839 = vpack.c.b16 %v1469, %v1468
  %v1840 = vpack.c.b16 %v1471, %v1470
  %v1841 = vpack.c.b16 %v1473, %v1472
  %v1842 = vpack.c.b16 %v1475, %v1474
  %v1843 = vpack.c.b16 %v1477, %v1476
  %v1844 = vpack.c.b16 %v1479, %v1478
  %v1845 = vpack.c.b16 %v1481, %v1480
  %v1846 = vpack.c.b16 %v1483, %v1482
  %v1847 = vpack.c.b16 %v1485, %v1484
  %v1848 = vpack.c.b16 %v1487, %v1486
  %v1849 = vpack.c.b16 %v1489, %v1488
  %v1850 = vpack.c.b16 %v1491, %v1490
  %v1851 = vpack.c.b16 %v1493, %v1492
  %v1852 = vpack.c.b16 %v1495, %v1494
  %v1853 = vpack.c.b16 %v1497, %v1496
  %v1854 = vpack.c.b16 %v1499, %v1498
  %v1855 = vpack.c.b16 %v1501, %v1500
  %v1856 = vpack.c.b16 %v1503, %v1502
  %v1857 = vpack.c.b16 %v1505, %v1504
  %v1858 = vpack.c.b16 %v1507, %v1506
  %v1859 = vpack.c.b16 %v1509, %v1508
  %v1860 = vpack.c.b16 %v1511, %v1510
  %v1861 = vpack.c.b16 %v1513, %v1512
  %v1862 = vpack.c.b16 %v1515, %v1514
  %v1863 = vpack.c.b16 %v1517, %v1516
  %v1864 = vpack.c.b16 %v1519, %v1518
  %v1865 = vpack.c.b16 %v1521, %v1520
  %v1866 = vpack.c.b16 %v1523, %v1522
  %v1867 = vpack.c.b16 %v1525, %v1524
  %v1868 = vpack.c.b16 %v1527, %v1526
  %v1869 = vpack.c.b16 %v1529, %v1528
  %v1870 = vpack.c.b16 %v1531, %v1530
  %v1871 = vpack.c.b16 %v1533, %v1532
  %v1872 = vpack.c.b16 %v1535, %v1534
  %v1873 = vpack.c.b16 %v1537, %v1536
  %v1874 = vpack.c.b16 %v1539, %v1538
  %v1875 = vpack.c.b16 %v1541, %v1540
  %v1876 = vpack.c.b16 %v1543, %v1542
  %v1877 = vpack.c.b16 %v1545, %v1544
  %v1878 = vpack.c.b16 %v1547, %v1546
  %v1879 = vpack.c.b16 %v1549, %v1548
  %v1880 = vpack.c.b16 %v1551, %v1550
  %v1881 = vpack.c.b16 %v1553, %v1552
  %v1882 = vpack.c.b16 %v1555, %v1554
  %v1883 = vpack.c.b16 %v1557, %v1556
  %v1884 = vpack.c.b16 %v1559, %v1558
  %v1885 = vpack.c.b16 %v1561, %v1560
  %v1886 = vpack.c.b16 %v1563, %v1562
  %v1887 = vpack.c.b16 %v1565, %v1564
  %v1888 = vpack.c.b16 %v1567, %v1566
  %v1889 = vpack.c.b16 %v1569, %v1568
  %v1890 = vpack.c.b16 %v1571, %v1570
  %v1891 = vpack.c.b16 %v1573, %v1572
  %v1892 = vpack.c.b16 %v1575, %v1574
  %v1893 = vpack.c.b16 %v1577, %v1576
  %v1894 = vpack.c.b16 %v1579, %v1578
  %v1895 = vpack.c.b16 %v1581, %v1580
  %v1896 = vpack.c.b16 %v1583, %v1582
  %v1897 = vpack.c.b16 %v1585, %v1584
  %v1898 = vpack.c.b16 %v1587, %v1586
  %v1899 = vpack.c.b16 %v1589, %v1588
  %v1900 = vpack.c.b16 %v1591, %v1590
  %v1901 = vpack.c.b16 %v1593, %v1592
  %v1902 = vpack.c.b16 %v1595, %v1594
  %v1903 = vpack.c.b16 %v1597, %v1596
  %v1904 = vpack.c.b16 %v1599, %v1598
  %v1905 = vpack.c.b16 %v1601, %v1600
  %v1906 = vpack.c.b16 %v1603, %v1602
  %v1907 = vpack.c.b16 %v1605, %v1604
  %v1908 = vpack.c.b16 %v1607, %v1606
  %v1909 = vpack.c.b16 %v1609, %v1608
  %v1910 = vpack.c.b16 %v1611, %v1610
  %v1911 = vpack.c.b16 %v1613, %v1612
  %v1912 = vpack.c.b16 %v1615, %v1614
  %v1913 = vpack.c.b16 %v1617, %v1616
  %v1914 = vpack.c.b16 %v1619, %v1618
  %v1915 = vpack.c.b16 %v1621, %v1620
  %v1916 = vpack.c.b16 %v1623, %v1622
  %v1917 = vpack.c.b16 %v1625, %v1624
  %v1918 = vpack.c.b16 %v1627, %v1626
  %v1919 = vpack.c.b16 %v1629, %v1628
  %v1920 = vpack.c.b16 %v1631, %v1630
  %v1921 = vpack.c.b16 %v1633, %v1632
  %v1922 = vpack.c.b16 %v1635, %v1634
  %v1923 = vpack.c.b16 %v1637, %v1636
  %v1924 = vpack.c.b16 %v1639, %v1638
  %v1925 = vpack.c.b16 %v1641, %v1640
  %v1926 = vpack.c.b16 %v1643, %v1642
  %v1927 = vpack.c.b16 %v1645, %v1644
  %v1928 = vpack.c.b16 %v1647, %v1646
  %v1929 = vpack.c.b16 %v1649, %v1648
  %v1930 = vpack.c.b16 %v1651, %v1650
  %v1931 = vpack.c.b16 %v1653, %v1652
  %v1932 = vpack.c.b16 %v1655, %v1654
  %v1933 = vpack.c.b16 %v1657, %v1656
  %v1934 = vpack.c.b16 %v1659, %v1658
  %v1935 = vpack.c.b16 %v1661, %v1660
  %v1936 = vpack.c.b16 %v1663, %v1662
  %v1937 = vpack.c.b16 %v1665, %v1664
  %v1938 = vpack.c.b16 %v1667, %v1666
  %v1939 = vpack.c.b16 %v1669, %v1668
  %v1940 = vpack.c.b16 %v1671, %v1670
  %v1941 = vpack.c.b16 %v1673, %v1672
  %v1942 = vpack.c.b16 %v1675, %v1674
  %v1943 = vpack.c.b16 %v1677, %v1676
  %v1944 = vpack.c.b16 %v1679, %v1678
  %v1945 = vpack.c.b16 %v1681, %v1680
  %v1946 = vpack.c.b16 %v1683, %v1682
  %v1947 = vpack.c.b16 %v1685, %v1684
  %v1948 = vpack.c.b16 %v1687, %v1686
  %v1949 = vpack.c.b16 %v1689, %v1688
  %v1950 = vpack.c.b16 %v1691, %v1690
  %v1951 = vpack.c.b16 %v1693, %v1692
  %v1952 = vpack.c.b16 %v1695, %v1694
  %v1953 = vpack.c.b16 %v1697, %v1696
  %2210 = vmatprep.subr.bf16.mxu0 0
  %2211 = vmatpush1.bf16.msra.mxu0 %v1698
  %2212 = vmatprep.subr.bf16.mxu0 0
  %2213 = vmatpush1.bf16.msra.mxu0 %v1699
  %2214 = vmatprep.subr.bf16.mxu0 0
  %2215 = vmatpush1.bf16.msra.mxu0 %v1700
  %2216 = vmatprep.subr.bf16.mxu0 0
  %2217 = vmatpush1.bf16.msra.mxu0 %v1701
  %2218 = vmatprep.subr.bf16.mxu0 0
  %2219 = vmatpush1.bf16.msra.mxu0 %v1702
  %2220 = vmatprep.subr.bf16.mxu0 0
  %2221 = vmatpush1.bf16.msra.mxu0 %v1703
  %2222 = vmatprep.subr.bf16.mxu0 0
  %2223 = vmatpush1.bf16.msra.mxu0 %v1704
  %2224 = vmatprep.subr.bf16.mxu0 0
  %2225 = vmatpush1.bf16.msra.mxu0 %v1705
  %2226 = vmatprep.subr.bf16.mxu0 0
  %2227 = vmatpush1.bf16.msra.mxu0 %v1706
  %2228 = vmatprep.subr.bf16.mxu0 0
  %2229 = vmatpush1.bf16.msra.mxu0 %v1707
  %2230 = vmatprep.subr.bf16.mxu0 0
  %2231 = vmatpush1.bf16.msra.mxu0 %v1708
  %2232 = vmatprep.subr.bf16.mxu0 0
  %2233 = vmatpush1.bf16.msra.mxu0 %v1709
  %2234 = vmatprep.subr.bf16.mxu0 0
  %2235 = vmatpush1.bf16.msra.mxu0 %v1710
  %2236 = vmatprep.subr.bf16.mxu0 0
  %2237 = vmatpush1.bf16.msra.mxu0 %v1711
  %2238 = vmatprep.subr.bf16.mxu0 0
  %2239 = vmatpush1.bf16.msra.mxu0 %v1712
  %2240 = vmatprep.subr.bf16.mxu0 0
  %2241 = vmatpush1.bf16.msra.mxu0 %v1713
  %2242 = vmatprep.mubr.bf16.mxu0 %v611
  %2243 = vmatmul.mubr.bf16.gmra.mrb[0].mxu0 %v610
  %v2244 = vpop.f32.mrb[0].mxu0
  %v2245 = vadd.f32 %v560, %v2244
  %v2246 = vpop.f32.mrb[0].mxu0
  %v2247 = vpop.f32.mrb[0].mxu0
  %v2248 = vpop.f32.mrb[0].mxu0
  %2249 = vdwg.mxu0
  %2250 = vmatprep.subr.bf16.mxu0 0
  %2251 = vmatpush1.bf16.msra.mxu0 %v1714
  %2252 = vmatprep.subr.bf16.mxu0 0
  %2253 = vmatpush1.bf16.msra.mxu0 %v1715
  %2254 = vmatprep.subr.bf16.mxu0 0
  %2255 = vmatpush1.bf16.msra.mxu0 %v1716
  %2256 = vmatprep.subr.bf16.mxu0 0
  %2257 = vmatpush1.bf16.msra.mxu0 %v1717
  %2258 = vmatprep.subr.bf16.mxu0 0
  %2259 = vmatpush1.bf16.msra.mxu0 %v1718
  %2260 = vmatprep.subr.bf16.mxu0 0
  %2261 = vmatpush1.bf16.msra.mxu0 %v1719
  %2262 = vmatprep.subr.bf16.mxu0 0
  %2263 = vmatpush1.bf16.msra.mxu0 %v1720
  %2264 = vmatprep.subr.bf16.mxu0 0
  %2265 = vmatpush1.bf16.msra.mxu0 %v1721
  %2266 = vmatprep.subr.bf16.mxu0 0
  %2267 = vmatpush1.bf16.msra.mxu0 %v1722
  %2268 = vmatprep.subr.bf16.mxu0 0
  %2269 = vmatpush1.bf16.msra.mxu0 %v1723
  %2270 = vmatprep.subr.bf16.mxu0 0
  %2271 = vmatpush1.bf16.msra.mxu0 %v1724
  %2272 = vmatprep.subr.bf16.mxu0 0
  %2273 = vmatpush1.bf16.msra.mxu0 %v1725
  %2274 = vmatprep.subr.bf16.mxu0 0
  %2275 = vmatpush1.bf16.msra.mxu0 %v1726
  %2276 = vmatprep.subr.bf16.mxu0 0
  %2277 = vmatpush1.bf16.msra.mxu0 %v1727
  %2278 = vmatprep.subr.bf16.mxu0 0
  %2279 = vmatpush1.bf16.msra.mxu0 %v1728
  %2280 = vmatprep.subr.bf16.mxu0 0
  %2281 = vmatpush1.bf16.msra.mxu0 %v1729
  %2282 = vmatprep.mubr.bf16.mxu0 %v613
  %2283 = vmatmul.mubr.bf16.gmra.mrb[0].mxu0 %v612
  %v2284 = vpop.f32.mrb[0].mxu0
  %v2285 = vadd.f32 %v2245, %v2284
  %v2286 = vpop.f32.mrb[0].mxu0
  %v2287 = vpop.f32.mrb[0].mxu0
  %v2288 = vpop.f32.mrb[0].mxu0
  %2289 = vdwg.mxu0
  %2290 = vmatprep.subr.bf16.mxu0 0
  %2291 = vmatpush1.bf16.msra.mxu0 %v1730
  %2292 = vmatprep.subr.bf16.mxu0 0
  %2293 = vmatpush1.bf16.msra.mxu0 %v1731
  %2294 = vmatprep.subr.bf16.mxu0 0
  %2295 = vmatpush1.bf16.msra.mxu0 %v1732
  %2296 = vmatprep.subr.bf16.mxu0 0
  %2297 = vmatpush1.bf16.msra.mxu0 %v1733
  %2298 = vmatprep.subr.bf16.mxu0 0
  %2299 = vmatpush1.bf16.msra.mxu0 %v1734
  %2300 = vmatprep.subr.bf16.mxu0 0
  %2301 = vmatpush1.bf16.msra.mxu0 %v1735
  %2302 = vmatprep.subr.bf16.mxu0 0
  %2303 = vmatpush1.bf16.msra.mxu0 %v1736
  %2304 = vmatprep.subr.bf16.mxu0 0
  %2305 = vmatpush1.bf16.msra.mxu0 %v1737
  %2306 = vmatprep.subr.bf16.mxu0 0
  %2307 = vmatpush1.bf16.msra.mxu0 %v1738
  %2308 = vmatprep.subr.bf16.mxu0 0
  %2309 = vmatpush1.bf16.msra.mxu0 %v1739
  %2310 = vmatprep.subr.bf16.mxu0 0
  %2311 = vmatpush1.bf16.msra.mxu0 %v1740
  %2312 = vmatprep.subr.bf16.mxu0 0
  %2313 = vmatpush1.bf16.msra.mxu0 %v1741
  %2314 = vmatprep.subr.bf16.mxu0 0
  %2315 = vmatpush1.bf16.msra.mxu0 %v1742
  %2316 = vmatprep.subr.bf16.mxu0 0
  %2317 = vmatpush1.bf16.msra.mxu0 %v1743
  %2318 = vmatprep.subr.bf16.mxu0 0
  %2319 = vmatpush1.bf16.msra.mxu0 %v1744
  %2320 = vmatprep.subr.bf16.mxu0 0
  %2321 = vmatpush1.bf16.msra.mxu0 %v1745
  %2322 = vmatprep.mubr.bf16.mxu0 %v615
  %2323 = vmatmul.mubr.bf16.gmra.mrb[0].mxu0 %v614
  %v2324 = vpop.f32.mrb[0].mxu0
  %v2325 = vadd.f32 %v2285, %v2324
  %v2326 = vpop.f32.mrb[0].mxu0
  %v2327 = vpop.f32.mrb[0].mxu0
  %v2328 = vpop.f32.mrb[0].mxu0
  %2329 = vdwg.mxu0
  %2330 = vmatprep.subr.bf16.mxu0 0
  %2331 = vmatpush1.bf16.msra.mxu0 %v1746
  %2332 = vmatprep.subr.bf16.mxu0 0
  %2333 = vmatpush1.bf16.msra.mxu0 %v1747
  %2334 = vmatprep.subr.bf16.mxu0 0
  %2335 = vmatpush1.bf16.msra.mxu0 %v1748
  %2336 = vmatprep.subr.bf16.mxu0 0
  %2337 = vmatpush1.bf16.msra.mxu0 %v1749
  %2338 = vmatprep.subr.bf16.mxu0 0
  %2339 = vmatpush1.bf16.msra.mxu0 %v1750
  %2340 = vmatprep.subr.bf16.mxu0 0
  %2341 = vmatpush1.bf16.msra.mxu0 %v1751
  %2342 = vmatprep.subr.bf16.mxu0 0
  %2343 = vmatpush1.bf16.msra.mxu0 %v1752
  %2344 = vmatprep.subr.bf16.mxu0 0
  %2345 = vmatpush1.bf16.msra.mxu0 %v1753
  %2346 = vmatprep.subr.bf16.mxu0 0
  %2347 = vmatpush1.bf16.msra.mxu0 %v1754
  %2348 = vmatprep.subr.bf16.mxu0 0
  %2349 = vmatpush1.bf16.msra.mxu0 %v1755
  %2350 = vmatprep.subr.bf16.mxu0 0
  %2351 = vmatpush1.bf16.msra.mxu0 %v1756
  %2352 = vmatprep.subr.bf16.mxu0 0
  %2353 = vmatpush1.bf16.msra.mxu0 %v1757
  %2354 = vmatprep.subr.bf16.mxu0 0
  %2355 = vmatpush1.bf16.msra.mxu0 %v1758
  %2356 = vmatprep.subr.bf16.mxu0 0
  %2357 = vmatpush1.bf16.msra.mxu0 %v1759
  %2358 = vmatprep.subr.bf16.mxu0 0
  %2359 = vmatpush1.bf16.msra.mxu0 %v1760
  %2360 = vmatprep.subr.bf16.mxu0 0
  %2361 = vmatpush1.bf16.msra.mxu0 %v1761
  %2362 = vmatprep.mubr.bf16.mxu0 %v617
  %2363 = vmatmul.mubr.bf16.gmra.mrb[0].mxu0 %v616
  %v2364 = vpop.f32.mrb[0].mxu0
  %v2365 = vadd.f32 %v2325, %v2364
  %v2366 = vpop.f32.mrb[0].mxu0
  %v2367 = vpop.f32.mrb[0].mxu0
  %v2368 = vpop.f32.mrb[0].mxu0
  %2369 = vdwg.mxu0
  %2370 = vmatprep.subr.bf16.mxu0 0
  %2371 = vmatpush1.bf16.msra.mxu0 %v1762
  %2372 = vmatprep.subr.bf16.mxu0 0
  %2373 = vmatpush1.bf16.msra.mxu0 %v1763
  %2374 = vmatprep.subr.bf16.mxu0 0
  %2375 = vmatpush1.bf16.msra.mxu0 %v1764
  %2376 = vmatprep.subr.bf16.mxu0 0
  %2377 = vmatpush1.bf16.msra.mxu0 %v1765
  %2378 = vmatprep.subr.bf16.mxu0 0
  %2379 = vmatpush1.bf16.msra.mxu0 %v1766
  %2380 = vmatprep.subr.bf16.mxu0 0
  %2381 = vmatpush1.bf16.msra.mxu0 %v1767
  %2382 = vmatprep.subr.bf16.mxu0 0
  %2383 = vmatpush1.bf16.msra.mxu0 %v1768
  %2384 = vmatprep.subr.bf16.mxu0 0
  %2385 = vmatpush1.bf16.msra.mxu0 %v1769
  %2386 = vmatprep.subr.bf16.mxu0 0
  %2387 = vmatpush1.bf16.msra.mxu0 %v1770
  %2388 = vmatprep.subr.bf16.mxu0 0
  %2389 = vmatpush1.bf16.msra.mxu0 %v1771
  %2390 = vmatprep.subr.bf16.mxu0 0
  %2391 = vmatpush1.bf16.msra.mxu0 %v1772
  %2392 = vmatprep.subr.bf16.mxu0 0
  %2393 = vmatpush1.bf16.msra.mxu0 %v1773
  %2394 = vmatprep.subr.bf16.mxu0 0
  %2395 = vmatpush1.bf16.msra.mxu0 %v1774
  %2396 = vmatprep.subr.bf16.mxu0 0
  %2397 = vmatpush1.bf16.msra.mxu0 %v1775
  %2398 = vmatprep.subr.bf16.mxu0 0
  %2399 = vmatpush1.bf16.msra.mxu0 %v1776
  %2400 = vmatprep.subr.bf16.mxu0 0
  %2401 = vmatpush1.bf16.msra.mxu0 %v1777
  %2402 = vmatprep.mubr.bf16.mxu0 %v619
  %2403 = vmatmul.mubr.bf16.gmra.mrb[0].mxu0 %v618
  %v2404 = vpop.f32.mrb[0].mxu0
  %v2405 = vadd.f32 %v2365, %v2404
  %v2406 = vpop.f32.mrb[0].mxu0
  %v2407 = vpop.f32.mrb[0].mxu0
  %v2408 = vpop.f32.mrb[0].mxu0
  %2409 = vdwg.mxu0
  %2410 = vmatprep.subr.bf16.mxu0 0
  %2411 = vmatpush1.bf16.msra.mxu0 %v1778
  %2412 = vmatprep.subr.bf16.mxu0 0
  %2413 = vmatpush1.bf16.msra.mxu0 %v1779
  %2414 = vmatprep.subr.bf16.mxu0 0
  %2415 = vmatpush1.bf16.msra.mxu0 %v1780
  %2416 = vmatprep.subr.bf16.mxu0 0
  %2417 = vmatpush1.bf16.msra.mxu0 %v1781
  %2418 = vmatprep.subr.bf16.mxu0 0
  %2419 = vmatpush1.bf16.msra.mxu0 %v1782
  %2420 = vmatprep.subr.bf16.mxu0 0
  %2421 = vmatpush1.bf16.msra.mxu0 %v1783
  %2422 = vmatprep.subr.bf16.mxu0 0
  %2423 = vmatpush1.bf16.msra.mxu0 %v1784
  %2424 = vmatprep.subr.bf16.mxu0 0
  %2425 = vmatpush1.bf16.msra.mxu0 %v1785
  %2426 = vmatprep.subr.bf16.mxu0 0
  %2427 = vmatpush1.bf16.msra.mxu0 %v1786
  %2428 = vmatprep.subr.bf16.mxu0 0
  %2429 = vmatpush1.bf16.msra.mxu0 %v1787
  %2430 = vmatprep.subr.bf16.mxu0 0
  %2431 = vmatpush1.bf16.msra.mxu0 %v1788
  %2432 = vmatprep.subr.bf16.mxu0 0
  %2433 = vmatpush1.bf16.msra.mxu0 %v1789
  %2434 = vmatprep.subr.bf16.mxu0 0
  %2435 = vmatpush1.bf16.msra.mxu0 %v1790
  %2436 = vmatprep.subr.bf16.mxu0 0
  %2437 = vmatpush1.bf16.msra.mxu0 %v1791
  %2438 = vmatprep.subr.bf16.mxu0 0
  %2439 = vmatpush1.bf16.msra.mxu0 %v1792
  %2440 = vmatprep.subr.bf16.mxu0 0
  %2441 = vmatpush1.bf16.msra.mxu0 %v1793
  %2442 = vmatprep.mubr.bf16.mxu0 %v621
  %2443 = vmatmul.mubr.bf16.gmra.mrb[0].mxu0 %v620
  %v2444 = vpop.f32.mrb[0].mxu0
  %v2445 = vadd.f32 %v2405, %v2444
  %v2446 = vpop.f32.mrb[0].mxu0
  %v2447 = vpop.f32.mrb[0].mxu0
  %v2448 = vpop.f32.mrb[0].mxu0
  %2449 = vdwg.mxu0
  %2450 = vmatprep.subr.bf16.mxu0 0
  %2451 = vmatpush1.bf16.msra.mxu0 %v1794
  %2452 = vmatprep.subr.bf16.mxu0 0
  %2453 = vmatpush1.bf16.msra.mxu0 %v1795
  %2454 = vmatprep.subr.bf16.mxu0 0
  %2455 = vmatpush1.bf16.msra.mxu0 %v1796
  %2456 = vmatprep.subr.bf16.mxu0 0
  %2457 = vmatpush1.bf16.msra.mxu0 %v1797
  %2458 = vmatprep.subr.bf16.mxu0 0
  %2459 = vmatpush1.bf16.msra.mxu0 %v1798
  %2460 = vmatprep.subr.bf16.mxu0 0
  %2461 = vmatpush1.bf16.msra.mxu0 %v1799
  %2462 = vmatprep.subr.bf16.mxu0 0
  %2463 = vmatpush1.bf16.msra.mxu0 %v1800
  %2464 = vmatprep.subr.bf16.mxu0 0
  %2465 = vmatpush1.bf16.msra.mxu0 %v1801
  %2466 = vmatprep.subr.bf16.mxu0 0
  %2467 = vmatpush1.bf16.msra.mxu0 %v1802
  %2468 = vmatprep.subr.bf16.mxu0 0
  %2469 = vmatpush1.bf16.msra.mxu0 %v1803
  %2470 = vmatprep.subr.bf16.mxu0 0
  %2471 = vmatpush1.bf16.msra.mxu0 %v1804
  %2472 = vmatprep.subr.bf16.mxu0 0
  %2473 = vmatpush1.bf16.msra.mxu0 %v1805
  %2474 = vmatprep.subr.bf16.mxu0 0
  %2475 = vmatpush1.bf16.msra.mxu0 %v1806
  %2476 = vmatprep.subr.bf16.mxu0 0
  %2477 = vmatpush1.bf16.msra.mxu0 %v1807
  %2478 = vmatprep.subr.bf16.mxu0 0
  %2479 = vmatpush1.bf16.msra.mxu0 %v1808
  %2480 = vmatprep.subr.bf16.mxu0 0
  %2481 = vmatpush1.bf16.msra.mxu0 %v1809
  %2482 = vmatprep.mubr.bf16.mxu0 %v623
  %2483 = vmatmul.mubr.bf16.gmra.mrb[0].mxu0 %v622
  %v2484 = vpop.f32.mrb[0].mxu0
  %v2485 = vadd.f32 %v2445, %v2484
  %v2486 = vpop.f32.mrb[0].mxu0
  %v2487 = vpop.f32.mrb[0].mxu0
  %v2488 = vpop.f32.mrb[0].mxu0
  %2489 = vdwg.mxu0
  %2490 = vmatprep.subr.bf16.mxu0 0
  %2491 = vmatpush1.bf16.msra.mxu0 %v1810
  %2492 = vmatprep.subr.bf16.mxu0 0
  %2493 = vmatpush1.bf16.msra.mxu0 %v1811
  %2494 = vmatprep.subr.bf16.mxu0 0
  %2495 = vmatpush1.bf16.msra.mxu0 %v1812
  %2496 = vmatprep.subr.bf16.mxu0 0
  %2497 = vmatpush1.bf16.msra.mxu0 %v1813
  %2498 = vmatprep.subr.bf16.mxu0 0
  %2499 = vmatpush1.bf16.msra.mxu0 %v1814
  %2500 = vmatprep.subr.bf16.mxu0 0
  %2501 = vmatpush1.bf16.msra.mxu0 %v1815
  %2502 = vmatprep.subr.bf16.mxu0 0
  %2503 = vmatpush1.bf16.msra.mxu0 %v1816
  %2504 = vmatprep.subr.bf16.mxu0 0
  %2505 = vmatpush1.bf16.msra.mxu0 %v1817
  %2506 = vmatprep.subr.bf16.mxu0 0
  %2507 = vmatpush1.bf16.msra.mxu0 %v1818
  %2508 = vmatprep.subr.bf16.mxu0 0
  %2509 = vmatpush1.bf16.msra.mxu0 %v1819
  %2510 = vmatprep.subr.bf16.mxu0 0
  %2511 = vmatpush1.bf16.msra.mxu0 %v1820
  %2512 = vmatprep.subr.bf16.mxu0 0
  %2513 = vmatpush1.bf16.msra.mxu0 %v1821
  %2514 = vmatprep.subr.bf16.mxu0 0
  %2515 = vmatpush1.bf16.msra.mxu0 %v1822
  %2516 = vmatprep.subr.bf16.mxu0 0
  %2517 = vmatpush1.bf16.msra.mxu0 %v1823
  %2518 = vmatprep.subr.bf16.mxu0 0
  %2519 = vmatpush1.bf16.msra.mxu0 %v1824
  %2520 = vmatprep.subr.bf16.mxu0 0
  %2521 = vmatpush1.bf16.msra.mxu0 %v1825
  %2522 = vmatprep.mubr.bf16.mxu0 %v625
  %2523 = vmatmul.mubr.bf16.gmra.mrb[0].mxu0 %v624
  %v2524 = vpop.f32.mrb[0].mxu0
  %v2525 = vadd.f32 %v2485, %v2524
  %v2526 = vpop.f32.mrb[0].mxu0
  %v2527 = vpop.f32.mrb[0].mxu0
  %v2528 = vpop.f32.mrb[0].mxu0
  %2529 = vdwg.mxu0
  %2530 = vmatprep.subr.bf16.mxu0 0
  %2531 = vmatpush1.bf16.msra.mxu0 %v1826
  %2532 = vmatprep.subr.bf16.mxu0 0
  %2533 = vmatpush1.bf16.msra.mxu0 %v1827
  %2534 = vmatprep.subr.bf16.mxu0 0
  %2535 = vmatpush1.bf16.msra.mxu0 %v1828
  %2536 = vmatprep.subr.bf16.mxu0 0
  %2537 = vmatpush1.bf16.msra.mxu0 %v1829
  %2538 = vmatprep.subr.bf16.mxu0 0
  %2539 = vmatpush1.bf16.msra.mxu0 %v1830
  %2540 = vmatprep.subr.bf16.mxu0 0
  %2541 = vmatpush1.bf16.msra.mxu0 %v1831
  %2542 = vmatprep.subr.bf16.mxu0 0
  %2543 = vmatpush1.bf16.msra.mxu0 %v1832
  %2544 = vmatprep.subr.bf16.mxu0 0
  %2545 = vmatpush1.bf16.msra.mxu0 %v1833
  %2546 = vmatprep.subr.bf16.mxu0 0
  %2547 = vmatpush1.bf16.msra.mxu0 %v1834
  %2548 = vmatprep.subr.bf16.mxu0 0
  %2549 = vmatpush1.bf16.msra.mxu0 %v1835
  %2550 = vmatprep.subr.bf16.mxu0 0
  %2551 = vmatpush1.bf16.msra.mxu0 %v1836
  %2552 = vmatprep.subr.bf16.mxu0 0
  %2553 = vmatpush1.bf16.msra.mxu0 %v1837
  %2554 = vmatprep.subr.bf16.mxu0 0
  %2555 = vmatpush1.bf16.msra.mxu0 %v1838
  %2556 = vmatprep.subr.bf16.mxu0 0
  %2557 = vmatpush1.bf16.msra.mxu0 %v1839
  %2558 = vmatprep.subr.bf16.mxu0 0
  %2559 = vmatpush1.bf16.msra.mxu0 %v1840
  %2560 = vmatprep.subr.bf16.mxu0 0
  %2561 = vmatpush1.bf16.msra.mxu0 %v1841
  %2562 = vmatprep.mubr.bf16.mxu0 %v627
  %2563 = vmatmul.mubr.bf16.gmra.mrb[0].mxu0 %v626
  %v2564 = vpop.f32.mrb[0].mxu0
  %v2565 = vadd.f32 %v2525, %v2564
  %v2566 = vpop.f32.mrb[0].mxu0
  %v2567 = vpop.f32.mrb[0].mxu0
  %v2568 = vpop.f32.mrb[0].mxu0
  %2569 = vdwg.mxu0
  %2570 = vmatprep.subr.bf16.mxu0 0
  %2571 = vmatpush1.bf16.msra.mxu0 %v1842
  %2572 = vmatprep.subr.bf16.mxu0 0
  %2573 = vmatpush1.bf16.msra.mxu0 %v1843
  %2574 = vmatprep.subr.bf16.mxu0 0
  %2575 = vmatpush1.bf16.msra.mxu0 %v1844
  %2576 = vmatprep.subr.bf16.mxu0 0
  %2577 = vmatpush1.bf16.msra.mxu0 %v1845
  %2578 = vmatprep.subr.bf16.mxu0 0
  %2579 = vmatpush1.bf16.msra.mxu0 %v1846
  %2580 = vmatprep.subr.bf16.mxu0 0
  %2581 = vmatpush1.bf16.msra.mxu0 %v1847
  %2582 = vmatprep.subr.bf16.mxu0 0
  %2583 = vmatpush1.bf16.msra.mxu0 %v1848
  %2584 = vmatprep.subr.bf16.mxu0 0
  %2585 = vmatpush1.bf16.msra.mxu0 %v1849
  %2586 = vmatprep.subr.bf16.mxu0 0
  %2587 = vmatpush1.bf16.msra.mxu0 %v1850
  %2588 = vmatprep.subr.bf16.mxu0 0
  %2589 = vmatpush1.bf16.msra.mxu0 %v1851
  %2590 = vmatprep.subr.bf16.mxu0 0
  %2591 = vmatpush1.bf16.msra.mxu0 %v1852
  %2592 = vmatprep.subr.bf16.mxu0 0
  %2593 = vmatpush1.bf16.msra.mxu0 %v1853
  %2594 = vmatprep.subr.bf16.mxu0 0
  %2595 = vmatpush1.bf16.msra.mxu0 %v1854
  %2596 = vmatprep.subr.bf16.mxu0 0
  %2597 = vmatpush1.bf16.msra.mxu0 %v1855
  %2598 = vmatprep.subr.bf16.mxu0 0
  %2599 = vmatpush1.bf16.msra.mxu0 %v1856
  %2600 = vmatprep.subr.bf16.mxu0 0
  %2601 = vmatpush1.bf16.msra.mxu0 %v1857
  %2602 = vmatprep.mubr.bf16.mxu0 %v629
  %2603 = vmatmul.mubr.bf16.gmra.mrb[0].mxu0 %v628
  %v2604 = vpop.f32.mrb[0].mxu0
  %v2605 = vadd.f32 %v2565, %v2604
  %v2606 = vpop.f32.mrb[0].mxu0
  %v2607 = vpop.f32.mrb[0].mxu0
  %v2608 = vpop.f32.mrb[0].mxu0
  %2609 = vdwg.mxu0
  %2610 = vmatprep.subr.bf16.mxu0 0
  %2611 = vmatpush1.bf16.msra.mxu0 %v1858
  %2612 = vmatprep.subr.bf16.mxu0 0
  %2613 = vmatpush1.bf16.msra.mxu0 %v1859
  %2614 = vmatprep.subr.bf16.mxu0 0
  %2615 = vmatpush1.bf16.msra.mxu0 %v1860
  %2616 = vmatprep.subr.bf16.mxu0 0
  %2617 = vmatpush1.bf16.msra.mxu0 %v1861
  %2618 = vmatprep.subr.bf16.mxu0 0
  %2619 = vmatpush1.bf16.msra.mxu0 %v1862
  %2620 = vmatprep.subr.bf16.mxu0 0
  %2621 = vmatpush1.bf16.msra.mxu0 %v1863
  %2622 = vmatprep.subr.bf16.mxu0 0
  %2623 = vmatpush1.bf16.msra.mxu0 %v1864
  %2624 = vmatprep.subr.bf16.mxu0 0
  %2625 = vmatpush1.bf16.msra.mxu0 %v1865
  %2626 = vmatprep.subr.bf16.mxu0 0
  %2627 = vmatpush1.bf16.msra.mxu0 %v1866
  %2628 = vmatprep.subr.bf16.mxu0 0
  %2629 = vmatpush1.bf16.msra.mxu0 %v1867
  %2630 = vmatprep.subr.bf16.mxu0 0
  %2631 = vmatpush1.bf16.msra.mxu0 %v1868
  %2632 = vmatprep.subr.bf16.mxu0 0
  %2633 = vmatpush1.bf16.msra.mxu0 %v1869
  %2634 = vmatprep.subr.bf16.mxu0 0
  %2635 = vmatpush1.bf16.msra.mxu0 %v1870
  %2636 = vmatprep.subr.bf16.mxu0 0
  %2637 = vmatpush1.bf16.msra.mxu0 %v1871
  %2638 = vmatprep.subr.bf16.mxu0 0
  %2639 = vmatpush1.bf16.msra.mxu0 %v1872
  %2640 = vmatprep.subr.bf16.mxu0 0
  %2641 = vmatpush1.bf16.msra.mxu0 %v1873
  %2642 = vmatprep.mubr.bf16.mxu0 %v631
  %2643 = vmatmul.mubr.bf16.gmra.mrb[0].mxu0 %v630
  %v2644 = vpop.f32.mrb[0].mxu0
  %v2645 = vadd.f32 %v2605, %v2644
  %v2646 = vpop.f32.mrb[0].mxu0
  %v2647 = vpop.f32.mrb[0].mxu0
  %v2648 = vpop.f32.mrb[0].mxu0
  %2649 = vdwg.mxu0
  %2650 = vmatprep.subr.bf16.mxu0 0
  %2651 = vmatpush1.bf16.msra.mxu0 %v1874
  %2652 = vmatprep.subr.bf16.mxu0 0
  %2653 = vmatpush1.bf16.msra.mxu0 %v1875
  %2654 = vmatprep.subr.bf16.mxu0 0
  %2655 = vmatpush1.bf16.msra.mxu0 %v1876
  %2656 = vmatprep.subr.bf16.mxu0 0
  %2657 = vmatpush1.bf16.msra.mxu0 %v1877
  %2658 = vmatprep.subr.bf16.mxu0 0
  %2659 = vmatpush1.bf16.msra.mxu0 %v1878
  %2660 = vmatprep.subr.bf16.mxu0 0
  %2661 = vmatpush1.bf16.msra.mxu0 %v1879
  %2662 = vmatprep.subr.bf16.mxu0 0
  %2663 = vmatpush1.bf16.msra.mxu0 %v1880
  %2664 = vmatprep.subr.bf16.mxu0 0
  %2665 = vmatpush1.bf16.msra.mxu0 %v1881
  %2666 = vmatprep.subr.bf16.mxu0 0
  %2667 = vmatpush1.bf16.msra.mxu0 %v1882
  %2668 = vmatprep.subr.bf16.mxu0 0
  %2669 = vmatpush1.bf16.msra.mxu0 %v1883
  %2670 = vmatprep.subr.bf16.mxu0 0
  %2671 = vmatpush1.bf16.msra.mxu0 %v1884
  %2672 = vmatprep.subr.bf16.mxu0 0
  %2673 = vmatpush1.bf16.msra.mxu0 %v1885
  %2674 = vmatprep.subr.bf16.mxu0 0
  %2675 = vmatpush1.bf16.msra.mxu0 %v1886
  %2676 = vmatprep.subr.bf16.mxu0 0
  %2677 = vmatpush1.bf16.msra.mxu0 %v1887
  %2678 = vmatprep.subr.bf16.mxu0 0
  %2679 = vmatpush1.bf16.msra.mxu0 %v1888
  %2680 = vmatprep.subr.bf16.mxu0 0
  %2681 = vmatpush1.bf16.msra.mxu0 %v1889
  %2682 = vmatprep.mubr.bf16.mxu0 %v633
  %2683 = vmatmul.mubr.bf16.gmra.mrb[0].mxu0 %v632
  %v2684 = vpop.f32.mrb[0].mxu0
  %v2685 = vadd.f32 %v2645, %v2684
  %v2686 = vpop.f32.mrb[0].mxu0
  %v2687 = vpop.f32.mrb[0].mxu0
  %v2688 = vpop.f32.mrb[0].mxu0
  %2689 = vdwg.mxu0
  %2690 = vmatprep.subr.bf16.mxu0 0
  %2691 = vmatpush1.bf16.msra.mxu0 %v1890
  %2692 = vmatprep.subr.bf16.mxu0 0
  %2693 = vmatpush1.bf16.msra.mxu0 %v1891
  %2694 = vmatprep.subr.bf16.mxu0 0
  %2695 = vmatpush1.bf16.msra.mxu0 %v1892
  %2696 = vmatprep.subr.bf16.mxu0 0
  %2697 = vmatpush1.bf16.msra.mxu0 %v1893
  %2698 = vmatprep.subr.bf16.mxu0 0
  %2699 = vmatpush1.bf16.msra.mxu0 %v1894
  %2700 = vmatprep.subr.bf16.mxu0 0
  %2701 = vmatpush1.bf16.msra.mxu0 %v1895
  %2702 = vmatprep.subr.bf16.mxu0 0
  %2703 = vmatpush1.bf16.msra.mxu0 %v1896
  %2704 = vmatprep.subr.bf16.mxu0 0
  %2705 = vmatpush1.bf16.msra.mxu0 %v1897
  %2706 = vmatprep.subr.bf16.mxu0 0
  %2707 = vmatpush1.bf16.msra.mxu0 %v1898
  %2708 = vmatprep.subr.bf16.mxu0 0
  %2709 = vmatpush1.bf16.msra.mxu0 %v1899
  %2710 = vmatprep.subr.bf16.mxu0 0
  %2711 = vmatpush1.bf16.msra.mxu0 %v1900
  %2712 = vmatprep.subr.bf16.mxu0 0
  %2713 = vmatpush1.bf16.msra.mxu0 %v1901
  %2714 = vmatprep.subr.bf16.mxu0 0
  %2715 = vmatpush1.bf16.msra.mxu0 %v1902
  %2716 = vmatprep.subr.bf16.mxu0 0
  %2717 = vmatpush1.bf16.msra.mxu0 %v1903
  %2718 = vmatprep.subr.bf16.mxu0 0
  %2719 = vmatpush1.bf16.msra.mxu0 %v1904
  %2720 = vmatprep.subr.bf16.mxu0 0
  %2721 = vmatpush1.bf16.msra.mxu0 %v1905
  %2722 = vmatprep.mubr.bf16.mxu0 %v635
  %2723 = vmatmul.mubr.bf16.gmra.mrb[0].mxu0 %v634
  %v2724 = vpop.f32.mrb[0].mxu0
  %v2725 = vadd.f32 %v2685, %v2724
  %v2726 = vpop.f32.mrb[0].mxu0
  %v2727 = vpop.f32.mrb[0].mxu0
  %v2728 = vpop.f32.mrb[0].mxu0
  %2729 = vdwg.mxu0
  %2730 = vmatprep.subr.bf16.mxu0 0
  %2731 = vmatpush1.bf16.msra.mxu0 %v1906
  %2732 = vmatprep.subr.bf16.mxu0 0
  %2733 = vmatpush1.bf16.msra.mxu0 %v1907
  %2734 = vmatprep.subr.bf16.mxu0 0
  %2735 = vmatpush1.bf16.msra.mxu0 %v1908
  %2736 = vmatprep.subr.bf16.mxu0 0
  %2737 = vmatpush1.bf16.msra.mxu0 %v1909
  %2738 = vmatprep.subr.bf16.mxu0 0
  %2739 = vmatpush1.bf16.msra.mxu0 %v1910
  %2740 = vmatprep.subr.bf16.mxu0 0
  %2741 = vmatpush1.bf16.msra.mxu0 %v1911
  %2742 = vmatprep.subr.bf16.mxu0 0
  %2743 = vmatpush1.bf16.msra.mxu0 %v1912
  %2744 = vmatprep.subr.bf16.mxu0 0
  %2745 = vmatpush1.bf16.msra.mxu0 %v1913
  %2746 = vmatprep.subr.bf16.mxu0 0
  %2747 = vmatpush1.bf16.msra.mxu0 %v1914
  %2748 = vmatprep.subr.bf16.mxu0 0
  %2749 = vmatpush1.bf16.msra.mxu0 %v1915
  %2750 = vmatprep.subr.bf16.mxu0 0
  %2751 = vmatpush1.bf16.msra.mxu0 %v1916
  %2752 = vmatprep.subr.bf16.mxu0 0
  %2753 = vmatpush1.bf16.msra.mxu0 %v1917
  %2754 = vmatprep.subr.bf16.mxu0 0
  %2755 = vmatpush1.bf16.msra.mxu0 %v1918
  %2756 = vmatprep.subr.bf16.mxu0 0
  %2757 = vmatpush1.bf16.msra.mxu0 %v1919
  %2758 = vmatprep.subr.bf16.mxu0 0
  %2759 = vmatpush1.bf16.msra.mxu0 %v1920
  %2760 = vmatprep.subr.bf16.mxu0 0
  %2761 = vmatpush1.bf16.msra.mxu0 %v1921
  %2762 = vmatprep.mubr.bf16.mxu0 %v637
  %2763 = vmatmul.mubr.bf16.gmra.mrb[0].mxu0 %v636
  %v2764 = vpop.f32.mrb[0].mxu0
  %v2765 = vadd.f32 %v2725, %v2764
  %v2766 = vpop.f32.mrb[0].mxu0
  %v2767 = vpop.f32.mrb[0].mxu0
  %v2768 = vpop.f32.mrb[0].mxu0
  %2769 = vdwg.mxu0
  %2770 = vmatprep.subr.bf16.mxu0 0
  %2771 = vmatpush1.bf16.msra.mxu0 %v1922
  %2772 = vmatprep.subr.bf16.mxu0 0
  %2773 = vmatpush1.bf16.msra.mxu0 %v1923
  %2774 = vmatprep.subr.bf16.mxu0 0
  %2775 = vmatpush1.bf16.msra.mxu0 %v1924
  %2776 = vmatprep.subr.bf16.mxu0 0
  %2777 = vmatpush1.bf16.msra.mxu0 %v1925
  %2778 = vmatprep.subr.bf16.mxu0 0
  %2779 = vmatpush1.bf16.msra.mxu0 %v1926
  %2780 = vmatprep.subr.bf16.mxu0 0
  %2781 = vmatpush1.bf16.msra.mxu0 %v1927
  %2782 = vmatprep.subr.bf16.mxu0 0
  %2783 = vmatpush1.bf16.msra.mxu0 %v1928
  %2784 = vmatprep.subr.bf16.mxu0 0
  %2785 = vmatpush1.bf16.msra.mxu0 %v1929
  %2786 = vmatprep.subr.bf16.mxu0 0
  %2787 = vmatpush1.bf16.msra.mxu0 %v1930
  %2788 = vmatprep.subr.bf16.mxu0 0
  %2789 = vmatpush1.bf16.msra.mxu0 %v1931
  %2790 = vmatprep.subr.bf16.mxu0 0
  %2791 = vmatpush1.bf16.msra.mxu0 %v1932
  %2792 = vmatprep.subr.bf16.mxu0 0
  %2793 = vmatpush1.bf16.msra.mxu0 %v1933
  %2794 = vmatprep.subr.bf16.mxu0 0
  %2795 = vmatpush1.bf16.msra.mxu0 %v1934
  %2796 = vmatprep.subr.bf16.mxu0 0
  %2797 = vmatpush1.bf16.msra.mxu0 %v1935
  %2798 = vmatprep.subr.bf16.mxu0 0
  %2799 = vmatpush1.bf16.msra.mxu0 %v1936
  %2800 = vmatprep.subr.bf16.mxu0 0
  %2801 = vmatpush1.bf16.msra.mxu0 %v1937
  %2802 = vmatprep.mubr.bf16.mxu0 %v639
  %2803 = vmatmul.mubr.bf16.gmra.mrb[0].mxu0 %v638
  %v2804 = vpop.f32.mrb[0].mxu0
  %v2805 = vadd.f32 %v2765, %v2804
  %v2806 = vpop.f32.mrb[0].mxu0
  %v2807 = vpop.f32.mrb[0].mxu0
  %v2808 = vpop.f32.mrb[0].mxu0
  %2809 = vdwg.mxu0
  %2810 = vmatprep.subr.bf16.mxu0 0
  %2811 = vmatpush1.bf16.msra.mxu0 %v1938
  %2812 = vmatprep.subr.bf16.mxu0 0
  %2813 = vmatpush1.bf16.msra.mxu0 %v1939
  %2814 = vmatprep.subr.bf16.mxu0 0
  %2815 = vmatpush1.bf16.msra.mxu0 %v1940
  %2816 = vmatprep.subr.bf16.mxu0 0
  %2817 = vmatpush1.bf16.msra.mxu0 %v1941
  %2818 = vmatprep.subr.bf16.mxu0 0
  %2819 = vmatpush1.bf16.msra.mxu0 %v1942
  %2820 = vmatprep.subr.bf16.mxu0 0
  %2821 = vmatpush1.bf16.msra.mxu0 %v1943
  %2822 = vmatprep.subr.bf16.mxu0 0
  %2823 = vmatpush1.bf16.msra.mxu0 %v1944
  %2824 = vmatprep.subr.bf16.mxu0 0
  %2825 = vmatpush1.bf16.msra.mxu0 %v1945
  %2826 = vmatprep.subr.bf16.mxu0 0
  %2827 = vmatpush1.bf16.msra.mxu0 %v1946
  %2828 = vmatprep.subr.bf16.mxu0 0
  %2829 = vmatpush1.bf16.msra.mxu0 %v1947
  %2830 = vmatprep.subr.bf16.mxu0 0
  %2831 = vmatpush1.bf16.msra.mxu0 %v1948
  %2832 = vmatprep.subr.bf16.mxu0 0
  %2833 = vmatpush1.bf16.msra.mxu0 %v1949
  %2834 = vmatprep.subr.bf16.mxu0 0
  %2835 = vmatpush1.bf16.msra.mxu0 %v1950
  %2836 = vmatprep.subr.bf16.mxu0 0
  %2837 = vmatpush1.bf16.msra.mxu0 %v1951
  %2838 = vmatprep.subr.bf16.mxu0 0
  %2839 = vmatpush1.bf16.msra.mxu0 %v1952
  %2840 = vmatprep.subr.bf16.mxu0 0
  %2841 = vmatpush1.bf16.msra.mxu0 %v1953
  %2842 = vmatprep.mubr.bf16.mxu0 %v641
  %2843 = vmatmul.mubr.bf16.gmra.mrb[0].mxu0 %v640
  %v2844 = vpop.f32.mrb[0].mxu0
  %v2845 = vadd.f32 %v2805, %v2844
  %v2846 = vpop.f32.mrb[0].mxu0
  %v2847 = vpop.f32.mrb[0].mxu0
  %v2848 = vpop.f32.mrb[0].mxu0
  %2849 = vdwg.mxu0
  %v2850 = vmax.f32 %v2845, 0.0
  %v2851 = vpack.c.bf16 %v2850, %v2850
  %v2852 = vld [vmem:[%s3] sm:$0xf]
  %v2853 = vld [vmem:[%s3 + $0x4] sm:$0xf]
  %v2854 = vld [vmem:[%s3 + $0x8] sm:$0xf]
  %v2855 = vld [vmem:[%s3 + $0xc] sm:$0xf]
  %v2856 = vld [vmem:[%s3 + $0x10] sm:$0xf]
  %v2857 = vld [vmem:[%s3 + $0x14] sm:$0xf]
  %v2858 = vld [vmem:[%s3 + $0x18] sm:$0xf]
  %v2859 = vld [vmem:[%s3 + $0x1c] sm:$0xf]
  %v2860 = vld [vmem:[%s3 + $0x20] sm:$0xf]
  %v2861 = vld [vmem:[%s3 + $0x24] sm:$0xf]
  %v2862 = vld [vmem:[%s3 + $0x28] sm:$0xf]
  %v2863 = vld [vmem:[%s3 + $0x2c] sm:$0xf]
  %v2864 = vld [vmem:[%s3 + $0x30] sm:$0xf]
  %v2865 = vld [vmem:[%s3 + $0x34] sm:$0xf]
  %v2866 = vld [vmem:[%s3 + $0x38] sm:$0xf]
  %v2867 = vld [vmem:[%s3 + $0x3c] sm:$0xf]
  %v2868 = vld [vmem:[%s4] sm:$0x1]
  %v2870 = vlaneseq
  %v2871 = vshrl.u32 %v2870, 7
  %v2872 = vsub.s32 0, %v2871
  %v2873 = vrot.slane %v2868, %v2872
  %v2891 = vunpack.c.l.b16 %v2852
  %v2892 = vunpack.c.l.b16 %v2853
  %v2893 = vunpack.c.l.b16 %v2854
  %v2894 = vunpack.c.l.b16 %v2855
  %v2895 = vunpack.c.l.b16 %v2856
  %v2896 = vunpack.c.l.b16 %v2857
  %v2897 = vunpack.c.l.b16 %v2858
  %v2898 = vunpack.c.l.b16 %v2859
  %v2899 = vunpack.c.l.b16 %v2860
  %v2900 = vunpack.c.l.b16 %v2861
  %v2901 = vunpack.c.l.b16 %v2862
  %v2902 = vunpack.c.l.b16 %v2863
  %v2903 = vunpack.c.l.b16 %v2864
  %v2904 = vunpack.c.l.b16 %v2865
  %v2905 = vunpack.c.l.b16 %v2866
  %v2906 = vunpack.c.l.b16 %v2867
  %v2907 = vpack.c.b16 %v2892, %v2891
  %v2908 = vpack.c.b16 %v2894, %v2893
  %v2909 = vpack.c.b16 %v2896, %v2895
  %v2910 = vpack.c.b16 %v2898, %v2897
  %v2911 = vpack.c.b16 %v2900, %v2899
  %v2912 = vpack.c.b16 %v2902, %v2901
  %v2913 = vpack.c.b16 %v2904, %v2903
  %v2914 = vpack.c.b16 %v2906, %v2905
  %2923 = vmatprep.subr.bf16.mxu0 0
  %2924 = vmatpush1.bf16.msra.mxu0 %v2907
  %2925 = vmatprep.subr.bf16.mxu0 0
  %2926 = vmatpush1.bf16.msra.mxu0 %v2908
  %2927 = vmatprep.subr.bf16.mxu0 0
  %2928 = vmatpush1.bf16.msra.mxu0 %v2909
  %2929 = vmatprep.subr.bf16.mxu0 0
  %2930 = vmatpush1.bf16.msra.mxu0 %v2910
  %2931 = vmatprep.subr.bf16.mxu0 0
  %2932 = vmatpush1.bf16.msra.mxu0 %v2911
  %2933 = vmatprep.subr.bf16.mxu0 0
  %2934 = vmatpush1.bf16.msra.mxu0 %v2912
  %2935 = vmatprep.subr.bf16.mxu0 0
  %2936 = vmatpush1.bf16.msra.mxu0 %v2913
  %2937 = vmatprep.subr.bf16.mxu0 0
  %2938 = vmatpush1.bf16.msra.mxu0 %v2914
  %2939 = vmatprep.subr.bf16.mxu0 0
  %2940 = vmatpush1.bf16.msra.mxu0 0
  %2941 = vmatprep.subr.bf16.mxu0 0
  %2942 = vmatpush1.bf16.msra.mxu0 0
  %2943 = vmatprep.subr.bf16.mxu0 0
  %2944 = vmatpush1.bf16.msra.mxu0 0
  %2945 = vmatprep.subr.bf16.mxu0 0
  %2946 = vmatpush1.bf16.msra.mxu0 0
  %2947 = vmatprep.subr.bf16.mxu0 0
  %2948 = vmatpush1.bf16.msra.mxu0 0
  %2949 = vmatprep.subr.bf16.mxu0 0
  %2950 = vmatpush1.bf16.msra.mxu0 0
  %2951 = vmatprep.subr.bf16.mxu0 0
  %2952 = vmatpush1.bf16.msra.mxu0 0
  %2953 = vmatprep.subr.bf16.mxu0 0
  %2954 = vmatpush1.bf16.msra.mxu0 0
  %2955 = vmatprep.mubr.bf16.mxu0 0
  %2956 = vmatmul.mubr.bf16.gmra.mrb[0].mxu0 %v2851
  %v2957 = vpop.f32.mrb[0].mxu0
  %v2958 = vadd.f32 %v2873, %v2957
  %v2959 = vpop.f32.mrb[0].mxu0
  %v2960 = vpop.f32.mrb[0].mxu0
  %v2961 = vpop.f32.mrb[0].mxu0
  %2962 = vdwg.mxu0
  %v2963 = vmax.f32 %v2958, 0.0
  %v2964 = vpack.c.bf16 %v2963, %v2963
  %v2965 = vld [vmem:[%s5] sm:$0xf]
  %v2966 = vld [vmem:[%s5 + $0x4] sm:$0xf]
  %v2967 = vld [vmem:[%s5 + $0x8] sm:$0xf]
  %v2968 = vld [vmem:[%s5 + $0xc] sm:$0xf]
  %v2969 = vld [vmem:[%s5 + $0x10] sm:$0xf]
  %v2970 = vld [vmem:[%s5 + $0x14] sm:$0xf]
  %v2971 = vld [vmem:[%s5 + $0x18] sm:$0xf]
  %v2972 = vld [vmem:[%s5 + $0x1c] sm:$0xf]
  %v2973 = vld [vmem:[%s5 + $0x20] sm:$0xf]
  %v2974 = vld [vmem:[%s5 + $0x24] sm:$0xf]
  %v2975 = vld [vmem:[%s5 + $0x28] sm:$0xf]
  %v2976 = vld [vmem:[%s5 + $0x2c] sm:$0xf]
  %v2977 = vld [vmem:[%s5 + $0x30] sm:$0xf]
  %v2978 = vld [vmem:[%s5 + $0x34] sm:$0xf]
  %v2979 = vld [vmem:[%s5 + $0x38] sm:$0xf]
  %v2980 = vld [vmem:[%s5 + $0x3c] sm:$0xf]
  %v2981 = vld [vmem:[%s6] sm:$0x1]
  %v2983 = vlaneseq
  %v2984 = vshrl.u32 %v2983, 7
  %v2985 = vsub.s32 0, %v2984
  %v2986 = vrot.slane %v2981, %v2985
  %v3004 = vunpack.c.l.b16 %v2965
  %v3005 = vunpack.c.l.b16 %v2966
  %v3006 = vunpack.c.l.b16 %v2967
  %v3007 = vunpack.c.l.b16 %v2968
  %v3008 = vunpack.c.l.b16 %v2969
  %v3009 = vunpack.c.l.b16 %v2970
  %v3010 = vunpack.c.l.b16 %v2971
  %v3011 = vunpack.c.l.b16 %v2972
  %v3012 = vunpack.c.l.b16 %v2973
  %v3013 = vunpack.c.l.b16 %v2974
  %v3014 = vunpack.c.l.b16 %v2975
  %v3015 = vunpack.c.l.b16 %v2976
  %v3016 = vunpack.c.l.b16 %v2977
  %v3017 = vunpack.c.l.b16 %v2978
  %v3018 = vunpack.c.l.b16 %v2979
  %v3019 = vunpack.c.l.b16 %v2980
  %v3020 = vpack.c.b16 %v3005, %v3004
  %v3021 = vpack.c.b16 %v3007, %v3006
  %v3022 = vpack.c.b16 %v3009, %v3008
  %v3023 = vpack.c.b16 %v3011, %v3010
  %v3024 = vpack.c.b16 %v3013, %v3012
  %v3025 = vpack.c.b16 %v3015, %v3014
  %v3026 = vpack.c.b16 %v3017, %v3016
  %v3027 = vpack.c.b16 %v3019, %v3018
  %3036 = vmatprep.subr.bf16.mxu0 0
  %3037 = vmatpush1.bf16.msra.mxu0 %v3020
  %3038 = vmatprep.subr.bf16.mxu0 0
  %3039 = vmatpush1.bf16.msra.mxu0 %v3021
  %3040 = vmatprep.subr.bf16.mxu0 0
  %3041 = vmatpush1.bf16.msra.mxu0 %v3022
  %3042 = vmatprep.subr.bf16.mxu0 0
  %3043 = vmatpush1.bf16.msra.mxu0 %v3023
  %3044 = vmatprep.subr.bf16.mxu0 0
  %3045 = vmatpush1.bf16.msra.mxu0 %v3024
  %3046 = vmatprep.subr.bf16.mxu0 0
  %3047 = vmatpush1.bf16.msra.mxu0 %v3025
  %3048 = vmatprep.subr.bf16.mxu0 0
  %3049 = vmatpush1.bf16.msra.mxu0 %v3026
  %3050 = vmatprep.subr.bf16.mxu0 0
  %3051 = vmatpush1.bf16.msra.mxu0 %v3027
  %3052 = vmatprep.subr.bf16.mxu0 0
  %3053 = vmatpush1.bf16.msra.mxu0 0
  %3054 = vmatprep.subr.bf16.mxu0 0
  %3055 = vmatpush1.bf16.msra.mxu0 0
  %3056 = vmatprep.subr.bf16.mxu0 0
  %3057 = vmatpush1.bf16.msra.mxu0 0
  %3058 = vmatprep.subr.bf16.mxu0 0
  %3059 = vmatpush1.bf16.msra.mxu0 0
  %3060 = vmatprep.subr.bf16.mxu0 0
  %3061 = vmatpush1.bf16.msra.mxu0 0
  %3062 = vmatprep.subr.bf16.mxu0 0
  %3063 = vmatpush1.bf16.msra.mxu0 0
  %3064 = vmatprep.subr.bf16.mxu0 0
  %3065 = vmatpush1.bf16.msra.mxu0 0
  %3066 = vmatprep.subr.bf16.mxu0 0
  %3067 = vmatpush1.bf16.msra.mxu0 0
  %3068 = vmatprep.mubr.bf16.mxu0 0
  %3069 = vmatmul.mubr.bf16.gmra.mrb[0].mxu0 %v2964
  %v3070 = vpop.f32.mrb[0].mxu0
  %v3071 = vadd.f32 %v2986, %v3070
  %v3072 = vpop.f32.mrb[0].mxu0
  %v3073 = vpop.f32.mrb[0].mxu0
  %v3074 = vpop.f32.mrb[0].mxu0
  %3075 = vdwg.mxu0
  %3076 = vst [vmem:[%s7] sm:$0xff] %v3071
  // Predicated region
  $region30: #{convnet_forward.5} parent=0 // pred_check
    _
  $region31: #{convnet_forward.5} parent=0 // pred_check_branch
    %3078 = sbr.rel (0) target = $region33
  $region32: #{convnet_forward.5} parent=0 // pred_region
    _
  $region33: #{convnet_forward.5} parent=0 // pred_fallthru
    _
  // Predicated region
  $region34: #{convnet_forward.5} parent=0 // pred_check
    _
  $region35: #{convnet_forward.5} parent=0 // pred_check_branch
    %3080 = sbr.rel (0) target = $region37
  $region36: #{convnet_forward.5} parent=0 // pred_region
    _
  $region37: #{convnet_forward.5} parent=0 // pred_fallthru
    _

</llo_original>
